<compile_context>
chip_gen: v7x
topology: tpu7x:2x2x1
jax: 0.10.0
libtpu: 0.0.40
codegen_flags: <defaults>
</compile_context>

<pallas_src>
import math

import jax
import jax.numpy as jnp
from jax.experimental import pallas as pl
from jax.experimental.pallas import tpu as pltpu

# ---------------- model config (small, synthetic "Settings") ----------------
VOCAB = 100          # vocab size
TYPE_VOCAB = 2       # token_type vocab
MAX_POS = 16         # max position embeddings
H = 128              # hidden size   (Settings.input_dim)
NH = 4               # attention heads
HD = H // NH         # head dim
FF = 256             # intermediate (FFN) size
NUM_LAYERS = 2       # encoder layers
OUT = 1              # Settings.output_dim
B = 2                # batch
S = 8                # sequence length
BS = B * S
LN_EPS = 1e-12
ATT_SCALE = 1.0 / math.sqrt(HD)


# ---------------- in-kernel helpers (all f32 elementwise math) ----------------
def _layer_norm(x, gamma, beta):
    mu = jnp.mean(x, axis=-1, keepdims=True)
    var = jnp.mean((x - mu) * (x - mu), axis=-1, keepdims=True)
    return (x - mu) * jax.lax.rsqrt(var + LN_EPS) * gamma + beta


def _gelu(x):
    # exact (erf) GELU as used by BERT-base
    return 0.5 * x * (1.0 + jax.lax.erf(x * 0.7071067811865476))


def _softmax_last(x):
    x = x - jnp.max(x, axis=-1, keepdims=True)
    e = jnp.exp(x)
    return e * pl.reciprocal(jnp.sum(e, axis=-1, keepdims=True), approx=True)


# ---------------- fused kernel: embed-LN + encoder stack + pooler + head ----------------
def bert_fused_kernel(emb_ref, bias_ref, eg_ref, eb_ref,
                      wq_ref, bq_ref, wk_ref, bk_ref, wv_ref, bv_ref,
                      wo_ref, bo_ref, g1_ref, b1_ref,
                      w1_ref, bi1_ref, w2_ref, bi2_ref, g2_ref, b2_ref,
                      wp_ref, bp_ref, ow_ref, ob_ref,
                      out_ref, hid_ref):
    l = pl.program_id(0)

    # ---- embedding LayerNorm prologue (runs once, at layer 0) ----
    @pl.when(l == 0)
    def _():
        hid_ref[...] = _layer_norm(emb_ref[...], eg_ref[...], eb_ref[...])

    # ---- one transformer encoder layer on the VMEM-resident hidden state ----
    xf = hid_ref[...]                              # (B*S, H) f32
    xb = xf.astype(jnp.bfloat16)                   # MXU operands in bf16
    bias = bias_ref[...]                           # (B, 1, S) additive mask, f32

    attn = jnp.zeros((BS, H), jnp.float32)
    for h in range(NH):                            # static unroll; per-head pre-split weights
        qh = jnp.dot(xb, wq_ref[0, h], preferred_element_type=jnp.float32) + bq_ref[0, h]
        kh = jnp.dot(xb, wk_ref[0, h], preferred_element_type=jnp.float32) + bk_ref[0, h]
        vh = jnp.dot(xb, wv_ref[0, h], preferred_element_type=jnp.float32) + bv_ref[0, h]
        q3 = qh.reshape(B, S, HD).astype(jnp.bfloat16)
        k3 = kh.reshape(B, S, HD).astype(jnp.bfloat16)
        v3 = vh.reshape(B, S, HD).astype(jnp.bfloat16)
        sc = jnp.einsum("bqd,bkd->bqk", q3, k3,
                        preferred_element_type=jnp.float32) * ATT_SCALE + bias
        p = _softmax_last(sc).astype(jnp.bfloat16)
        ctx = jnp.einsum("bqk,bkd->bqd", p, v3,
                         preferred_element_type=jnp.float32)       # (B, S, HD) f32
        # concat_h(ctx_h) @ Wo == sum_h ctx_h @ Wo_h
        attn = attn + jnp.dot(ctx.reshape(BS, HD).astype(jnp.bfloat16), wo_ref[0, h],
                              preferred_element_type=jnp.float32)
    attn = attn + bo_ref[0]
    # attention-output dropout: eval-mode identity
    h1 = _layer_norm(xf + attn, g1_ref[0], b1_ref[0])

    ff = _gelu(jnp.dot(h1.astype(jnp.bfloat16), w1_ref[0],
                       preferred_element_type=jnp.float32) + bi1_ref[0])
    ff = jnp.dot(ff.astype(jnp.bfloat16), w2_ref[0],
                 preferred_element_type=jnp.float32) + bi2_ref[0]
    # FFN-output dropout: eval-mode identity
    h_out = _layer_norm(h1 + ff, g2_ref[0], b2_ref[0])
    hid_ref[...] = h_out

    # ---- pooler + dropout(eval) + Linear head epilogue (runs once, last layer) ----
    @pl.when(l == pl.num_programs(0) - 1)
    def _():
        # CLS rows are rows 0 and S of the flattened (B*S, H) hidden state.
        cls = jnp.concatenate([h_out[b * S:b * S + 1, :] for b in range(B)], axis=0)
        pooled = jnp.tanh(jnp.dot(cls.astype(jnp.bfloat16), wp_ref[...],
                                  preferred_element_type=jnp.float32) + bp_ref[...])
        # self.bert_drop: eval-mode identity
        # OUT == 1 head as multiply + lane reduction (avoids degenerate (H,1) matmul)
        out_ref[...] = (jnp.sum(pooled * ow_ref[...], axis=-1, keepdims=True)
                        + ob_ref[...])


# ---------------- BlockSpec helpers ----------------
def _res_spec(shape):
    # resident across all layers (constant block index -> loaded once, stays in VMEM)
    n = len(shape)
    return pl.BlockSpec(shape, lambda l, n=n: (0,) * n)


def _layer_spec(shape):
    # per-layer streamed block: arrays stacked on a leading (NUM_LAYERS, ...) axis
    n = len(shape)
    return pl.BlockSpec((1,) + shape, lambda l, n=n: (l,) + (0,) * n)


# ---------------- full forward ----------------
@jax.jit
def bert_classifier_forward(packed, ids, mask, token_type_ids):
    # embedding gathers (data-dependent) in plain JAX, then summed & flattened
    we = jnp.take(packed["word_emb"], ids, axis=0)                 # (B, S, H)
    te = jnp.take(packed["type_emb"], token_type_ids, axis=0)      # (B, S, H)
    pe = packed["pos_emb"][:S][None, :, :]                         # (1, S, H)
    emb = (we + pe + te).reshape(BS, H).astype(jnp.float32)        # (B*S, H)
    attn_bias = ((1.0 - mask.astype(jnp.float32)) * -10000.0).reshape(B, 1, S)

    in_specs = [
        _res_spec((BS, H)),                                   # embedding sum
        _res_spec((B, 1, S)),                                 # additive attention bias
        _res_spec((1, H)), _res_spec((1, H)),                 # embedding LayerNorm
        _layer_spec((NH, H, HD)), _layer_spec((NH, 1, HD)),   # Wq, bq (per head)
        _layer_spec((NH, H, HD)), _layer_spec((NH, 1, HD)),   # Wk, bk
        _layer_spec((NH, H, HD)), _layer_spec((NH, 1, HD)),   # Wv, bv
        _layer_spec((NH, HD, H)), _layer_spec((1, H)),        # Wo (per head), bo
        _layer_spec((1, H)), _layer_spec((1, H)),             # attn LayerNorm g/b
        _layer_spec((H, FF)), _layer_spec((1, FF)),           # FFN intermediate
        _layer_spec((FF, H)), _layer_spec((1, H)),            # FFN output
        _layer_spec((1, H)), _layer_spec((1, H)),             # output LayerNorm g/b
        _res_spec((H, H)), _res_spec((1, H)),                 # pooler dense
        _res_spec((1, H)), _res_spec((1, 1)),                 # classifier head (OUT==1)
    ]

    grid_spec = pltpu.PrefetchScalarGridSpec(
        num_scalar_prefetch=0,
        grid=(NUM_LAYERS,),
        in_specs=in_specs,
        out_specs=pl.BlockSpec((B, OUT), lambda l: (0, 0)),
        scratch_shapes=[pltpu.VMEM((BS, H), jnp.float32)],    # resident hidden state
    )

    return pl.pallas_call(
        bert_fused_kernel,
        out_shape=jax.ShapeDtypeStruct((B, OUT), jnp.float32),
        grid_spec=grid_spec,
        compiler_params=pltpu.CompilerParams(dimension_semantics=("arbitrary",)),
    )(emb, attn_bias, packed["emb_ln_g"], packed["emb_ln_b"],
      packed["wq"], packed["bq"], packed["wk"], packed["bk"],
      packed["wv"], packed["bv"], packed["wo"], packed["bo"],
      packed["ln1_g"], packed["ln1_b"], packed["w1"], packed["b1"],
      packed["w2"], packed["b2"], packed["ln2_g"], packed["ln2_b"],
      packed["pooler_w"], packed["pooler_b"], packed["out_w_row"], packed["out_b"])


# ---------------- deterministic parameter init (linear weights stored (in, out)) ----------------
def init_params(key):
    keys = iter(jax.random.split(key, 64))

    def nrm(shape, scale=0.02):
        return (scale * jax.random.normal(next(keys), shape)).astype(jnp.float32)

    def ones(shape):
        return jnp.ones(shape, jnp.float32)

    def zeros(shape):
        return jnp.zeros(shape, jnp.float32)

    params = {
        "word_emb": nrm((VOCAB, H)),
        "pos_emb": nrm((MAX_POS, H)),
        "type_emb": nrm((TYPE_VOCAB, H)),
        "emb_ln_g": ones((1, H)),
        "emb_ln_b": zeros((1, H)),
        "layers": [],
        "pooler_w": nrm((H, H)),
        "pooler_b": zeros((1, H)),
        "out_w": nrm((H, OUT)),
        "out_b": zeros((1, OUT)),
    }
    for _ in range(NUM_LAYERS):
        params["layers"].append({
            "wq": nrm((H, H)), "bq": zeros((1, H)),
            "wk": nrm((H, H)), "bk": zeros((1, H)),
            "wv": nrm((H, H)), "bv": zeros((1, H)),
            "wo": nrm((H, H)), "bo": zeros((1, H)),
            "ln1_g": ones((1, H)), "ln1_b": zeros((1, H)),
            "w1": nrm((H, FF)), "b1": zeros((1, FF)),
            "w2": nrm((FF, H)), "b2": zeros((1, H)),
            "ln2_g": ones((1, H)), "ln2_b": zeros((1, H)),
        })
    return params


def pack_params(params):
    """Stack per-layer weights on a leading layer axis, pre-split heads, cast MXU
    operands to bf16 (biases / LN params / head reduction weights stay f32)."""
    layers = params["layers"]

    def split_qkv_w(w):    # (H, H) -> (NH, H, HD): split output columns per head
        return w.reshape(H, NH, HD).transpose(1, 0, 2)

    def split_qkv_b(b):    # (1, H) -> (NH, 1, HD)
        return b.reshape(NH, HD)[:, None, :]

    def split_o_w(w):      # (H, H) -> (NH, HD, H): split input rows per head
        return w.reshape(NH, HD, H)

    def stack(name):
        return jnp.stack([lw[name] for lw in layers])

    return {
        "word_emb": params["word_emb"],
        "pos_emb": params["pos_emb"],
        "type_emb": params["type_emb"],
        "emb_ln_g": params["emb_ln_g"],
        "emb_ln_b": params["emb_ln_b"],
        "wq": jnp.stack([split_qkv_w(lw["wq"]) for lw in layers]).astype(jnp.bfloat16),
        "bq": jnp.stack([split_qkv_b(lw["bq"]) for lw in layers]),
        "wk": jnp.stack([split_qkv_w(lw["wk"]) for lw in layers]).astype(jnp.bfloat16),
        "bk": jnp.stack([split_qkv_b(lw["bk"]) for lw in layers]),
        "wv": jnp.stack([split_qkv_w(lw["wv"]) for lw in layers]).astype(jnp.bfloat16),
        "bv": jnp.stack([split_qkv_b(lw["bv"]) for lw in layers]),
        "wo": jnp.stack([split_o_w(lw["wo"]) for lw in layers]).astype(jnp.bfloat16),
        "bo": stack("bo"),
        "ln1_g": stack("ln1_g"), "ln1_b": stack("ln1_b"),
        "w1": stack("w1").astype(jnp.bfloat16), "b1": stack("b1"),
        "w2": stack("w2").astype(jnp.bfloat16), "b2": stack("b2"),
        "ln2_g": stack("ln2_g"), "ln2_b": stack("ln2_b"),
        "pooler_w": params["pooler_w"].astype(jnp.bfloat16),
        "pooler_b": params["pooler_b"],
        "out_w_row": params["out_w"][:, 0].reshape(1, H),   # OUT == 1
        "out_b": params["out_b"].reshape(1, 1),
    }


if __name__ == "__main__":
    key = jax.random.PRNGKey(0)
    pkey, ikey = jax.random.split(key)

    params = init_params(pkey)
    packed = pack_params(params)

    ids = jax.random.randint(ikey, (B, S), 0, VOCAB, dtype=jnp.int32)
    mask = jnp.array([[1] * S, [1] * (S - 2) + [0] * 2], dtype=jnp.int32)
    token_type_ids = jnp.array([[0] * (S // 2) + [1] * (S // 2)] * B, dtype=jnp.int32)

    out = bert_classifier_forward(packed, ids, mask, token_type_ids)
    out = jax.block_until_ready(out)
    assert out.shape == (B, OUT) and out.dtype == jnp.float32
    assert bool(jnp.all(jnp.isfinite(out)))
    print("KERNEL_OK")
</pallas_src>

<mosaic_0001>
module attributes {stable_mosaic.version = 11 : i64} {
  func.func @bert_fused_kernel(%arg0: i32, %arg1: memref<16x128xf32, #tpu.memory_space<vmem>>, %arg2: memref<2x1x8xf32, #tpu.memory_space<vmem>>, %arg3: memref<1x128xf32, #tpu.memory_space<vmem>>, %arg4: memref<1x128xf32, #tpu.memory_space<vmem>>, %arg5: memref<1x4x128x32xbf16, #tpu.memory_space<vmem>>, %arg6: memref<1x4x1x32xf32, #tpu.memory_space<vmem>>, %arg7: memref<1x4x128x32xbf16, #tpu.memory_space<vmem>>, %arg8: memref<1x4x1x32xf32, #tpu.memory_space<vmem>>, %arg9: memref<1x4x128x32xbf16, #tpu.memory_space<vmem>>, %arg10: memref<1x4x1x32xf32, #tpu.memory_space<vmem>>, %arg11: memref<1x4x32x128xbf16, #tpu.memory_space<vmem>>, %arg12: memref<1x1x128xf32, #tpu.memory_space<vmem>>, %arg13: memref<1x1x128xf32, #tpu.memory_space<vmem>>, %arg14: memref<1x1x128xf32, #tpu.memory_space<vmem>>, %arg15: memref<1x128x256xbf16, #tpu.memory_space<vmem>>, %arg16: memref<1x1x256xf32, #tpu.memory_space<vmem>>, %arg17: memref<1x256x128xbf16, #tpu.memory_space<vmem>>, %arg18: memref<1x1x128xf32, #tpu.memory_space<vmem>>, %arg19: memref<1x1x128xf32, #tpu.memory_space<vmem>>, %arg20: memref<1x1x128xf32, #tpu.memory_space<vmem>>, %arg21: memref<128x128xbf16, #tpu.memory_space<vmem>>, %arg22: memref<1x128xf32, #tpu.memory_space<vmem>>, %arg23: memref<1x128xf32, #tpu.memory_space<vmem>>, %arg24: memref<1x1xf32, #tpu.memory_space<vmem>>, %arg25: memref<2x1xf32, #tpu.memory_space<vmem>>, %arg26: memref<16x128xf32, #tpu.memory_space<vmem>>) attributes {dimension_semantics = [#tpu.dimension_semantics<arbitrary>], iteration_bounds = array<i64: 2>, scalar_prefetch = 0 : i64, scratch_operands = 1 : i64, tpu.core_type = #tpu.core_type<tc>, window_params = [{pipeline_mode = #tpu.pipeline_mode<synchronous>, transform_indices = @transform_0, window_bounds = array<i64: 16, 128>}, {pipeline_mode = #tpu.pipeline_mode<synchronous>, transform_indices = @transform_1, window_bounds = array<i64: 2, 1, 8>}, {pipeline_mode = #tpu.pipeline_mode<synchronous>, transform_indices = @transform_2, window_bounds = array<i64: 1, 128>}, {pipeline_mode = #tpu.pipeline_mode<synchronous>, transform_indices = @transform_3, window_bounds = array<i64: 1, 128>}, {transform_indices = @transform_4, window_bounds = array<i64: 1, 4, 128, 32>}, {transform_indices = @transform_5, window_bounds = array<i64: 1, 4, 1, 32>}, {transform_indices = @transform_6, window_bounds = array<i64: 1, 4, 128, 32>}, {transform_indices = @transform_7, window_bounds = array<i64: 1, 4, 1, 32>}, {transform_indices = @transform_8, window_bounds = array<i64: 1, 4, 128, 32>}, {transform_indices = @transform_9, window_bounds = array<i64: 1, 4, 1, 32>}, {transform_indices = @transform_10, window_bounds = array<i64: 1, 4, 32, 128>}, {transform_indices = @transform_11, window_bounds = array<i64: 1, 1, 128>}, {transform_indices = @transform_12, window_bounds = array<i64: 1, 1, 128>}, {transform_indices = @transform_13, window_bounds = array<i64: 1, 1, 128>}, {transform_indices = @transform_14, window_bounds = array<i64: 1, 128, 256>}, {transform_indices = @transform_15, window_bounds = array<i64: 1, 1, 256>}, {transform_indices = @transform_16, window_bounds = array<i64: 1, 256, 128>}, {transform_indices = @transform_17, window_bounds = array<i64: 1, 1, 128>}, {transform_indices = @transform_18, window_bounds = array<i64: 1, 1, 128>}, {transform_indices = @transform_19, window_bounds = array<i64: 1, 1, 128>}, {pipeline_mode = #tpu.pipeline_mode<synchronous>, transform_indices = @transform_20, window_bounds = array<i64: 128, 128>}, {pipeline_mode = #tpu.pipeline_mode<synchronous>, transform_indices = @transform_21, window_bounds = array<i64: 1, 128>}, {pipeline_mode = #tpu.pipeline_mode<synchronous>, transform_indices = @transform_22, window_bounds = array<i64: 1, 128>}, {pipeline_mode = #tpu.pipeline_mode<synchronous>, transform_indices = @transform_23, window_bounds = array<i64: 1, 1>}, {pipeline_mode = #tpu.pipeline_mode<synchronous>, transform_indices = @transform_24, window_bounds = array<i64: 2, 1>}]} {
    %c0_i32 = arith.constant 0 : i32
    %0 = arith.cmpi eq, %arg0, %c0_i32 : i32
    %1 = arith.extui %0 : i1 to i32
    %c0_i32_0 = arith.constant 0 : i32
    %2 = arith.cmpi ne, %1, %c0_i32_0 : i32
    scf.if %2 {
      %c0_195 = arith.constant 0 : index
      %c0_196 = arith.constant 0 : index
      %297 = vector.load %arg1[%c0_195, %c0_196] : memref<16x128xf32, #tpu.memory_space<vmem>>, vector<16x128xf32>
      %c0_197 = arith.constant 0 : index
      %c0_198 = arith.constant 0 : index
      %298 = vector.load %arg3[%c0_197, %c0_198] : memref<1x128xf32, #tpu.memory_space<vmem>>, vector<1x128xf32>
      %c0_199 = arith.constant 0 : index
      %c0_200 = arith.constant 0 : index
      %299 = vector.load %arg4[%c0_199, %c0_200] : memref<1x128xf32, #tpu.memory_space<vmem>>, vector<1x128xf32>
      %cst_201 = arith.constant dense<0.000000e+00> : vector<16xf32>
      %300 = vector.multi_reduction <add>, %297, %cst_201 [1] : vector<16x128xf32> to vector<16xf32>
      %301 = vector.shape_cast %300 : vector<16xf32> to vector<16x1xf32>
      %cst_202 = arith.constant 1.280000e+02 : f32
      %302 = vector.broadcast %cst_202 : f32 to vector<16x1xf32>
      %303 = arith.divf %301, %302 : vector<16x1xf32>
      %304 = vector.broadcast %303 : vector<16x1xf32> to vector<16x128xf32>
      %305 = arith.subf %297, %304 : vector<16x128xf32>
      %306 = vector.broadcast %303 : vector<16x1xf32> to vector<16x128xf32>
      %307 = arith.subf %297, %306 : vector<16x128xf32>
      %308 = arith.mulf %305, %307 : vector<16x128xf32>
      %cst_203 = arith.constant dense<0.000000e+00> : vector<16xf32>
      %309 = vector.multi_reduction <add>, %308, %cst_203 [1] : vector<16x128xf32> to vector<16xf32>
      %310 = vector.shape_cast %309 : vector<16xf32> to vector<16x1xf32>
      %cst_204 = arith.constant 1.280000e+02 : f32
      %311 = vector.broadcast %cst_204 : f32 to vector<16x1xf32>
      %312 = arith.divf %310, %311 : vector<16x1xf32>
      %313 = vector.broadcast %303 : vector<16x1xf32> to vector<16x128xf32>
      %314 = arith.subf %297, %313 : vector<16x128xf32>
      %cst_205 = arith.constant 9.99999996E-13 : f32
      %315 = vector.broadcast %cst_205 : f32 to vector<16x1xf32>
      %316 = arith.addf %312, %315 : vector<16x1xf32>
      %317 = math.rsqrt %316 : vector<16x1xf32>
      %318 = vector.broadcast %317 : vector<16x1xf32> to vector<16x128xf32>
      %319 = arith.mulf %314, %318 : vector<16x128xf32>
      %320 = vector.broadcast %298 : vector<1x128xf32> to vector<16x128xf32>
      %321 = arith.mulf %319, %320 : vector<16x128xf32>
      %322 = vector.broadcast %299 : vector<1x128xf32> to vector<16x128xf32>
      %323 = arith.addf %321, %322 : vector<16x128xf32>
      %c0_206 = arith.constant 0 : index
      %c0_207 = arith.constant 0 : index
      %324 = vector.load %arg26[%c0_206, %c0_207] : memref<16x128xf32, #tpu.memory_space<vmem>>, vector<16x128xf32>
      tpu.vector_store %arg26[%c0_206, %c0_207], %323 {strides = array<i32>} : memref<16x128xf32, #tpu.memory_space<vmem>>, vector<16x128xf32>,
    } else {
    }
    %c0 = arith.constant 0 : index
    %c0_1 = arith.constant 0 : index
    %3 = vector.load %arg26[%c0, %c0_1] : memref<16x128xf32, #tpu.memory_space<vmem>>, vector<16x128xf32>
    %4 = arith.truncf %3 : vector<16x128xf32> to vector<16x128xbf16>
    %c0_2 = arith.constant 0 : index
    %c0_3 = arith.constant 0 : index
    %c0_4 = arith.constant 0 : index
    %5 = vector.load %arg2[%c0_2, %c0_3, %c0_4] : memref<2x1x8xf32, #tpu.memory_space<vmem>>, vector<2x1x8xf32>
    %cst = arith.constant 0.000000e+00 : f32
    %6 = vector.broadcast %cst : f32 to vector<16x128xf32>
    %c0_5 = arith.constant 0 : index
    %c0_6 = arith.constant 0 : index
    %c0_7 = arith.constant 0 : index
    %c0_8 = arith.constant 0 : index
    %7 = vector.load %arg5[%c0_5, %c0_6, %c0_7, %c0_8] : memref<1x4x128x32xbf16, #tpu.memory_space<vmem>>, vector<1x1x128x32xbf16>
    %8 = vector.shape_cast %7 : vector<1x1x128x32xbf16> to vector<128x32xbf16>
    %cst_9 = arith.constant dense<0.000000e+00> : vector<16x32xf32>
    %9 = tpu.matmul %4, %8, %cst_9 {dimension_numbers = #tpu.dot_dimension_numbers<[1], [0], [0], [1], [0, 0, 1, 1], [], []>} : vector<16x128xbf16>, vector<128x32xbf16>, vector<16x32xf32> -> vector<16x32xf32>
    %c0_10 = arith.constant 0 : index
    %c0_11 = arith.constant 0 : index
    %c0_12 = arith.constant 0 : index
    %c0_13 = arith.constant 0 : index
    %10 = vector.load %arg6[%c0_10, %c0_11, %c0_12, %c0_13] : memref<1x4x1x32xf32, #tpu.memory_space<vmem>>, vector<1x1x1x32xf32>
    %11 = vector.shape_cast %10 : vector<1x1x1x32xf32> to vector<1x32xf32>
    %12 = vector.broadcast %11 : vector<1x32xf32> to vector<16x32xf32>
    %13 = arith.addf %9, %12 : vector<16x32xf32>
    %c0_14 = arith.constant 0 : index
    %c0_15 = arith.constant 0 : index
    %c0_16 = arith.constant 0 : index
    %c0_17 = arith.constant 0 : index
    %14 = vector.load %arg7[%c0_14, %c0_15, %c0_16, %c0_17] : memref<1x4x128x32xbf16, #tpu.memory_space<vmem>>, vector<1x1x128x32xbf16>
    %15 = vector.shape_cast %14 : vector<1x1x128x32xbf16> to vector<128x32xbf16>
    %cst_18 = arith.constant dense<0.000000e+00> : vector<16x32xf32>
    %16 = tpu.matmul %4, %15, %cst_18 {dimension_numbers = #tpu.dot_dimension_numbers<[1], [0], [0], [1], [0, 0, 1, 1], [], []>} : vector<16x128xbf16>, vector<128x32xbf16>, vector<16x32xf32> -> vector<16x32xf32>
    %c0_19 = arith.constant 0 : index
    %c0_20 = arith.constant 0 : index
    %c0_21 = arith.constant 0 : index
    %c0_22 = arith.constant 0 : index
    %17 = vector.load %arg8[%c0_19, %c0_20, %c0_21, %c0_22] : memref<1x4x1x32xf32, #tpu.memory_space<vmem>>, vector<1x1x1x32xf32>
    %18 = vector.shape_cast %17 : vector<1x1x1x32xf32> to vector<1x32xf32>
    %19 = vector.broadcast %18 : vector<1x32xf32> to vector<16x32xf32>
    %20 = arith.addf %16, %19 : vector<16x32xf32>
    %c0_23 = arith.constant 0 : index
    %c0_24 = arith.constant 0 : index
    %c0_25 = arith.constant 0 : index
    %c0_26 = arith.constant 0 : index
    %21 = vector.load %arg9[%c0_23, %c0_24, %c0_25, %c0_26] : memref<1x4x128x32xbf16, #tpu.memory_space<vmem>>, vector<1x1x128x32xbf16>
    %22 = vector.shape_cast %21 : vector<1x1x128x32xbf16> to vector<128x32xbf16>
    %cst_27 = arith.constant dense<0.000000e+00> : vector<16x32xf32>
    %23 = tpu.matmul %4, %22, %cst_27 {dimension_numbers = #tpu.dot_dimension_numbers<[1], [0], [0], [1], [0, 0, 1, 1], [], []>} : vector<16x128xbf16>, vector<128x32xbf16>, vector<16x32xf32> -> vector<16x32xf32>
    %c0_28 = arith.constant 0 : index
    %c0_29 = arith.constant 0 : index
    %c0_30 = arith.constant 0 : index
    %c0_31 = arith.constant 0 : index
    %24 = vector.load %arg10[%c0_28, %c0_29, %c0_30, %c0_31] : memref<1x4x1x32xf32, #tpu.memory_space<vmem>>, vector<1x1x1x32xf32>
    %25 = vector.shape_cast %24 : vector<1x1x1x32xf32> to vector<1x32xf32>
    %26 = vector.broadcast %25 : vector<1x32xf32> to vector<16x32xf32>
    %27 = arith.addf %23, %26 : vector<16x32xf32>
    %28 = vector.shape_cast %13 : vector<16x32xf32> to vector<2x8x32xf32>
    %29 = arith.truncf %28 : vector<2x8x32xf32> to vector<2x8x32xbf16>
    %30 = vector.shape_cast %20 : vector<16x32xf32> to vector<2x8x32xf32>
    %31 = arith.truncf %30 : vector<2x8x32xf32> to vector<2x8x32xbf16>
    %32 = vector.shape_cast %27 : vector<16x32xf32> to vector<2x8x32xf32>
    %33 = arith.truncf %32 : vector<2x8x32xf32> to vector<2x8x32xbf16>
    "tpu.trace_start"() <{level = 10 : i32, message = "bqd,bkd->bqk"}> : () -> ()
    %cst_32 = arith.constant dense<0.000000e+00> : vector<2x8x8xf32>
    %34 = tpu.matmul %29, %31, %cst_32 {dimension_numbers = #tpu.dot_dimension_numbers<[2], [2], [1], [1], [0, 0, 0, 1, 1, 1], [0], [0]>} : vector<2x8x32xbf16>, vector<2x8x32xbf16>, vector<2x8x8xf32> -> vector<2x8x8xf32>
    "tpu.trace_stop"() : () -> ()
    %cst_33 = arith.constant 0.176776692 : f32
    %35 = vector.broadcast %cst_33 : f32 to vector<2x8x8xf32>
    %36 = arith.mulf %34, %35 : vector<2x8x8xf32>
    %37 = vector.broadcast %5 : vector<2x1x8xf32> to vector<2x8x8xf32>
    %38 = arith.addf %36, %37 : vector<2x8x8xf32>
    %cst_34 = arith.constant dense<0xFF800000> : vector<2x8xf32>
    %39 = vector.multi_reduction <maximumf>, %38, %cst_34 [2] : vector<2x8x8xf32> to vector<2x8xf32>
    %40 = vector.shape_cast %39 : vector<2x8xf32> to vector<2x8x1xf32>
    %41 = vector.broadcast %40 : vector<2x8x1xf32> to vector<2x8x8xf32>
    %42 = arith.subf %38, %41 : vector<2x8x8xf32>
    %43 = math.exp %42 : vector<2x8x8xf32>
    %cst_35 = arith.constant dense<0.000000e+00> : vector<2x8xf32>
    %44 = vector.multi_reduction <add>, %43, %cst_35 [2] : vector<2x8x8xf32> to vector<2x8xf32>
    %45 = vector.shape_cast %44 : vector<2x8xf32> to vector<2x8x1xf32>
    %46 = tpu.reciprocal %45 {approx = true} : vector<2x8x1xf32> -> vector<2x8x1xf32>
    %47 = vector.broadcast %46 : vector<2x8x1xf32> to vector<2x8x8xf32>
    %48 = arith.mulf %43, %47 : vector<2x8x8xf32>
    %49 = arith.truncf %48 : vector<2x8x8xf32> to vector<2x8x8xbf16>
    "tpu.trace_start"() <{level = 10 : i32, message = "bqk,bkd->bqd"}> : () -> ()
    %cst_36 = arith.constant dense<0.000000e+00> : vector<2x8x32xf32>
    %50 = tpu.matmul %49, %33, %cst_36 {dimension_numbers = #tpu.dot_dimension_numbers<[2], [1], [1], [2], [0, 0, 0, 1, 1, 2], [0], [0]>} : vector<2x8x8xbf16>, vector<2x8x32xbf16>, vector<2x8x32xf32> -> vector<2x8x32xf32>
    "tpu.trace_stop"() : () -> ()
    %51 = vector.shape_cast %50 : vector<2x8x32xf32> to vector<16x32xf32>
    %52 = arith.truncf %51 : vector<16x32xf32> to vector<16x32xbf16>
    %c0_37 = arith.constant 0 : index
    %c0_38 = arith.constant 0 : index
    %c0_39 = arith.constant 0 : index
    %c0_40 = arith.constant 0 : index
    %53 = vector.load %arg11[%c0_37, %c0_38, %c0_39, %c0_40] : memref<1x4x32x128xbf16, #tpu.memory_space<vmem>>, vector<1x1x32x128xbf16>
    %54 = vector.shape_cast %53 : vector<1x1x32x128xbf16> to vector<32x128xbf16>
    %cst_41 = arith.constant dense<0.000000e+00> : vector<16x128xf32>
    %55 = tpu.matmul %52, %54, %cst_41 {dimension_numbers = #tpu.dot_dimension_numbers<[1], [0], [0], [1], [0, 0, 1, 1], [], []>} : vector<16x32xbf16>, vector<32x128xbf16>, vector<16x128xf32> -> vector<16x128xf32>
    %56 = arith.addf %6, %55 : vector<16x128xf32>
    %c0_42 = arith.constant 0 : index
    %c1 = arith.constant 1 : index
    %c0_43 = arith.constant 0 : index
    %c0_44 = arith.constant 0 : index
    %57 = vector.load %arg5[%c0_42, %c1, %c0_43, %c0_44] : memref<1x4x128x32xbf16, #tpu.memory_space<vmem>>, vector<1x1x128x32xbf16>
    %58 = vector.shape_cast %57 : vector<1x1x128x32xbf16> to vector<128x32xbf16>
    %cst_45 = arith.constant dense<0.000000e+00> : vector<16x32xf32>
    %59 = tpu.matmul %4, %58, %cst_45 {dimension_numbers = #tpu.dot_dimension_numbers<[1], [0], [0], [1], [0, 0, 1, 1], [], []>} : vector<16x128xbf16>, vector<128x32xbf16>, vector<16x32xf32> -> vector<16x32xf32>
    %c0_46 = arith.constant 0 : index
    %c1_47 = arith.constant 1 : index
    %c0_48 = arith.constant 0 : index
    %c0_49 = arith.constant 0 : index
    %60 = vector.load %arg6[%c0_46, %c1_47, %c0_48, %c0_49] : memref<1x4x1x32xf32, #tpu.memory_space<vmem>>, vector<1x1x1x32xf32>
    %61 = vector.shape_cast %60 : vector<1x1x1x32xf32> to vector<1x32xf32>
    %62 = vector.broadcast %61 : vector<1x32xf32> to vector<16x32xf32>
    %63 = arith.addf %59, %62 : vector<16x32xf32>
    %c0_50 = arith.constant 0 : index
    %c1_51 = arith.constant 1 : index
    %c0_52 = arith.constant 0 : index
    %c0_53 = arith.constant 0 : index
    %64 = vector.load %arg7[%c0_50, %c1_51, %c0_52, %c0_53] : memref<1x4x128x32xbf16, #tpu.memory_space<vmem>>, vector<1x1x128x32xbf16>
    %65 = vector.shape_cast %64 : vector<1x1x128x32xbf16> to vector<128x32xbf16>
    %cst_54 = arith.constant dense<0.000000e+00> : vector<16x32xf32>
    %66 = tpu.matmul %4, %65, %cst_54 {dimension_numbers = #tpu.dot_dimension_numbers<[1], [0], [0], [1], [0, 0, 1, 1], [], []>} : vector<16x128xbf16>, vector<128x32xbf16>, vector<16x32xf32> -> vector<16x32xf32>
    %c0_55 = arith.constant 0 : index
    %c1_56 = arith.constant 1 : index
    %c0_57 = arith.constant 0 : index
    %c0_58 = arith.constant 0 : index
    %67 = vector.load %arg8[%c0_55, %c1_56, %c0_57, %c0_58] : memref<1x4x1x32xf32, #tpu.memory_space<vmem>>, vector<1x1x1x32xf32>
    %68 = vector.shape_cast %67 : vector<1x1x1x32xf32> to vector<1x32xf32>
    %69 = vector.broadcast %68 : vector<1x32xf32> to vector<16x32xf32>
    %70 = arith.addf %66, %69 : vector<16x32xf32>
    %c0_59 = arith.constant 0 : index
    %c1_60 = arith.constant 1 : index
    %c0_61 = arith.constant 0 : index
    %c0_62 = arith.constant 0 : index
    %71 = vector.load %arg9[%c0_59, %c1_60, %c0_61, %c0_62] : memref<1x4x128x32xbf16, #tpu.memory_space<vmem>>, vector<1x1x128x32xbf16>
    %72 = vector.shape_cast %71 : vector<1x1x128x32xbf16> to vector<128x32xbf16>
    %cst_63 = arith.constant dense<0.000000e+00> : vector<16x32xf32>
    %73 = tpu.matmul %4, %72, %cst_63 {dimension_numbers = #tpu.dot_dimension_numbers<[1], [0], [0], [1], [0, 0, 1, 1], [], []>} : vector<16x128xbf16>, vector<128x32xbf16>, vector<16x32xf32> -> vector<16x32xf32>
    %c0_64 = arith.constant 0 : index
    %c1_65 = arith.constant 1 : index
    %c0_66 = arith.constant 0 : index
    %c0_67 = arith.constant 0 : index
    %74 = vector.load %arg10[%c0_64, %c1_65, %c0_66, %c0_67] : memref<1x4x1x32xf32, #tpu.memory_space<vmem>>, vector<1x1x1x32xf32>
    %75 = vector.shape_cast %74 : vector<1x1x1x32xf32> to vector<1x32xf32>
    %76 = vector.broadcast %75 : vector<1x32xf32> to vector<16x32xf32>
    %77 = arith.addf %73, %76 : vector<16x32xf32>
    %78 = vector.shape_cast %63 : vector<16x32xf32> to vector<2x8x32xf32>
    %79 = arith.truncf %78 : vector<2x8x32xf32> to vector<2x8x32xbf16>
    %80 = vector.shape_cast %70 : vector<16x32xf32> to vector<2x8x32xf32>
    %81 = arith.truncf %80 : vector<2x8x32xf32> to vector<2x8x32xbf16>
    %82 = vector.shape_cast %77 : vector<16x32xf32> to vector<2x8x32xf32>
    %83 = arith.truncf %82 : vector<2x8x32xf32> to vector<2x8x32xbf16>
    "tpu.trace_start"() <{level = 10 : i32, message = "bqd,bkd->bqk"}> : () -> ()
    %cst_68 = arith.constant dense<0.000000e+00> : vector<2x8x8xf32>
    %84 = tpu.matmul %79, %81, %cst_68 {dimension_numbers = #tpu.dot_dimension_numbers<[2], [2], [1], [1], [0, 0, 0, 1, 1, 1], [0], [0]>} : vector<2x8x32xbf16>, vector<2x8x32xbf16>, vector<2x8x8xf32> -> vector<2x8x8xf32>
    "tpu.trace_stop"() : () -> ()
    %cst_69 = arith.constant 0.176776692 : f32
    %85 = vector.broadcast %cst_69 : f32 to vector<2x8x8xf32>
    %86 = arith.mulf %84, %85 : vector<2x8x8xf32>
    %87 = vector.broadcast %5 : vector<2x1x8xf32> to vector<2x8x8xf32>
    %88 = arith.addf %86, %87 : vector<2x8x8xf32>
    %cst_70 = arith.constant dense<0xFF800000> : vector<2x8xf32>
    %89 = vector.multi_reduction <maximumf>, %88, %cst_70 [2] : vector<2x8x8xf32> to vector<2x8xf32>
    %90 = vector.shape_cast %89 : vector<2x8xf32> to vector<2x8x1xf32>
    %91 = vector.broadcast %90 : vector<2x8x1xf32> to vector<2x8x8xf32>
    %92 = arith.subf %88, %91 : vector<2x8x8xf32>
    %93 = math.exp %92 : vector<2x8x8xf32>
    %cst_71 = arith.constant dense<0.000000e+00> : vector<2x8xf32>
    %94 = vector.multi_reduction <add>, %93, %cst_71 [2] : vector<2x8x8xf32> to vector<2x8xf32>
    %95 = vector.shape_cast %94 : vector<2x8xf32> to vector<2x8x1xf32>
    %96 = tpu.reciprocal %95 {approx = true} : vector<2x8x1xf32> -> vector<2x8x1xf32>
    %97 = vector.broadcast %96 : vector<2x8x1xf32> to vector<2x8x8xf32>
    %98 = arith.mulf %93, %97 : vector<2x8x8xf32>
    %99 = arith.truncf %98 : vector<2x8x8xf32> to vector<2x8x8xbf16>
    "tpu.trace_start"() <{level = 10 : i32, message = "bqk,bkd->bqd"}> : () -> ()
    %cst_72 = arith.constant dense<0.000000e+00> : vector<2x8x32xf32>
    %100 = tpu.matmul %99, %83, %cst_72 {dimension_numbers = #tpu.dot_dimension_numbers<[2], [1], [1], [2], [0, 0, 0, 1, 1, 2], [0], [0]>} : vector<2x8x8xbf16>, vector<2x8x32xbf16>, vector<2x8x32xf32> -> vector<2x8x32xf32>
    "tpu.trace_stop"() : () -> ()
    %101 = vector.shape_cast %100 : vector<2x8x32xf32> to vector<16x32xf32>
    %102 = arith.truncf %101 : vector<16x32xf32> to vector<16x32xbf16>
    %c0_73 = arith.constant 0 : index
    %c1_74 = arith.constant 1 : index
    %c0_75 = arith.constant 0 : index
    %c0_76 = arith.constant 0 : index
    %103 = vector.load %arg11[%c0_73, %c1_74, %c0_75, %c0_76] : memref<1x4x32x128xbf16, #tpu.memory_space<vmem>>, vector<1x1x32x128xbf16>
    %104 = vector.shape_cast %103 : vector<1x1x32x128xbf16> to vector<32x128xbf16>
    %cst_77 = arith.constant dense<0.000000e+00> : vector<16x128xf32>
    %105 = tpu.matmul %102, %104, %cst_77 {dimension_numbers = #tpu.dot_dimension_numbers<[1], [0], [0], [1], [0, 0, 1, 1], [], []>} : vector<16x32xbf16>, vector<32x128xbf16>, vector<16x128xf32> -> vector<16x128xf32>
    %106 = arith.addf %56, %105 : vector<16x128xf32>
    %c0_78 = arith.constant 0 : index
    %c2 = arith.constant 2 : index
    %c0_79 = arith.constant 0 : index
    %c0_80 = arith.constant 0 : index
    %107 = vector.load %arg5[%c0_78, %c2, %c0_79, %c0_80] : memref<1x4x128x32xbf16, #tpu.memory_space<vmem>>, vector<1x1x128x32xbf16>
    %108 = vector.shape_cast %107 : vector<1x1x128x32xbf16> to vector<128x32xbf16>
    %cst_81 = arith.constant dense<0.000000e+00> : vector<16x32xf32>
    %109 = tpu.matmul %4, %108, %cst_81 {dimension_numbers = #tpu.dot_dimension_numbers<[1], [0], [0], [1], [0, 0, 1, 1], [], []>} : vector<16x128xbf16>, vector<128x32xbf16>, vector<16x32xf32> -> vector<16x32xf32>
    %c0_82 = arith.constant 0 : index
    %c2_83 = arith.constant 2 : index
    %c0_84 = arith.constant 0 : index
    %c0_85 = arith.constant 0 : index
    %110 = vector.load %arg6[%c0_82, %c2_83, %c0_84, %c0_85] : memref<1x4x1x32xf32, #tpu.memory_space<vmem>>, vector<1x1x1x32xf32>
    %111 = vector.shape_cast %110 : vector<1x1x1x32xf32> to vector<1x32xf32>
    %112 = vector.broadcast %111 : vector<1x32xf32> to vector<16x32xf32>
    %113 = arith.addf %109, %112 : vector<16x32xf32>
    %c0_86 = arith.constant 0 : index
    %c2_87 = arith.constant 2 : index
    %c0_88 = arith.constant 0 : index
    %c0_89 = arith.constant 0 : index
    %114 = vector.load %arg7[%c0_86, %c2_87, %c0_88, %c0_89] : memref<1x4x128x32xbf16, #tpu.memory_space<vmem>>, vector<1x1x128x32xbf16>
    %115 = vector.shape_cast %114 : vector<1x1x128x32xbf16> to vector<128x32xbf16>
    %cst_90 = arith.constant dense<0.000000e+00> : vector<16x32xf32>
    %116 = tpu.matmul %4, %115, %cst_90 {dimension_numbers = #tpu.dot_dimension_numbers<[1], [0], [0], [1], [0, 0, 1, 1], [], []>} : vector<16x128xbf16>, vector<128x32xbf16>, vector<16x32xf32> -> vector<16x32xf32>
    %c0_91 = arith.constant 0 : index
    %c2_92 = arith.constant 2 : index
    %c0_93 = arith.constant 0 : index
    %c0_94 = arith.constant 0 : index
    %117 = vector.load %arg8[%c0_91, %c2_92, %c0_93, %c0_94] : memref<1x4x1x32xf32, #tpu.memory_space<vmem>>, vector<1x1x1x32xf32>
    %118 = vector.shape_cast %117 : vector<1x1x1x32xf32> to vector<1x32xf32>
    %119 = vector.broadcast %118 : vector<1x32xf32> to vector<16x32xf32>
    %120 = arith.addf %116, %119 : vector<16x32xf32>
    %c0_95 = arith.constant 0 : index
    %c2_96 = arith.constant 2 : index
    %c0_97 = arith.constant 0 : index
    %c0_98 = arith.constant 0 : index
    %121 = vector.load %arg9[%c0_95, %c2_96, %c0_97, %c0_98] : memref<1x4x128x32xbf16, #tpu.memory_space<vmem>>, vector<1x1x128x32xbf16>
    %122 = vector.shape_cast %121 : vector<1x1x128x32xbf16> to vector<128x32xbf16>
    %cst_99 = arith.constant dense<0.000000e+00> : vector<16x32xf32>
    %123 = tpu.matmul %4, %122, %cst_99 {dimension_numbers = #tpu.dot_dimension_numbers<[1], [0], [0], [1], [0, 0, 1, 1], [], []>} : vector<16x128xbf16>, vector<128x32xbf16>, vector<16x32xf32> -> vector<16x32xf32>
    %c0_100 = arith.constant 0 : index
    %c2_101 = arith.constant 2 : index
    %c0_102 = arith.constant 0 : index
    %c0_103 = arith.constant 0 : index
    %124 = vector.load %arg10[%c0_100, %c2_101, %c0_102, %c0_103] : memref<1x4x1x32xf32, #tpu.memory_space<vmem>>, vector<1x1x1x32xf32>
    %125 = vector.shape_cast %124 : vector<1x1x1x32xf32> to vector<1x32xf32>
    %126 = vector.broadcast %125 : vector<1x32xf32> to vector<16x32xf32>
    %127 = arith.addf %123, %126 : vector<16x32xf32>
    %128 = vector.shape_cast %113 : vector<16x32xf32> to vector<2x8x32xf32>
    %129 = arith.truncf %128 : vector<2x8x32xf32> to vector<2x8x32xbf16>
    %130 = vector.shape_cast %120 : vector<16x32xf32> to vector<2x8x32xf32>
    %131 = arith.truncf %130 : vector<2x8x32xf32> to vector<2x8x32xbf16>
    %132 = vector.shape_cast %127 : vector<16x32xf32> to vector<2x8x32xf32>
    %133 = arith.truncf %132 : vector<2x8x32xf32> to vector<2x8x32xbf16>
    "tpu.trace_start"() <{level = 10 : i32, message = "bqd,bkd->bqk"}> : () -> ()
    %cst_104 = arith.constant dense<0.000000e+00> : vector<2x8x8xf32>
    %134 = tpu.matmul %129, %131, %cst_104 {dimension_numbers = #tpu.dot_dimension_numbers<[2], [2], [1], [1], [0, 0, 0, 1, 1, 1], [0], [0]>} : vector<2x8x32xbf16>, vector<2x8x32xbf16>, vector<2x8x8xf32> -> vector<2x8x8xf32>
    "tpu.trace_stop"() : () -> ()
    %cst_105 = arith.constant 0.176776692 : f32
    %135 = vector.broadcast %cst_105 : f32 to vector<2x8x8xf32>
    %136 = arith.mulf %134, %135 : vector<2x8x8xf32>
    %137 = vector.broadcast %5 : vector<2x1x8xf32> to vector<2x8x8xf32>
    %138 = arith.addf %136, %137 : vector<2x8x8xf32>
    %cst_106 = arith.constant dense<0xFF800000> : vector<2x8xf32>
    %139 = vector.multi_reduction <maximumf>, %138, %cst_106 [2] : vector<2x8x8xf32> to vector<2x8xf32>
    %140 = vector.shape_cast %139 : vector<2x8xf32> to vector<2x8x1xf32>
    %141 = vector.broadcast %140 : vector<2x8x1xf32> to vector<2x8x8xf32>
    %142 = arith.subf %138, %141 : vector<2x8x8xf32>
    %143 = math.exp %142 : vector<2x8x8xf32>
    %cst_107 = arith.constant dense<0.000000e+00> : vector<2x8xf32>
    %144 = vector.multi_reduction <add>, %143, %cst_107 [2] : vector<2x8x8xf32> to vector<2x8xf32>
    %145 = vector.shape_cast %144 : vector<2x8xf32> to vector<2x8x1xf32>
    %146 = tpu.reciprocal %145 {approx = true} : vector<2x8x1xf32> -> vector<2x8x1xf32>
    %147 = vector.broadcast %146 : vector<2x8x1xf32> to vector<2x8x8xf32>
    %148 = arith.mulf %143, %147 : vector<2x8x8xf32>
    %149 = arith.truncf %148 : vector<2x8x8xf32> to vector<2x8x8xbf16>
    "tpu.trace_start"() <{level = 10 : i32, message = "bqk,bkd->bqd"}> : () -> ()
    %cst_108 = arith.constant dense<0.000000e+00> : vector<2x8x32xf32>
    %150 = tpu.matmul %149, %133, %cst_108 {dimension_numbers = #tpu.dot_dimension_numbers<[2], [1], [1], [2], [0, 0, 0, 1, 1, 2], [0], [0]>} : vector<2x8x8xbf16>, vector<2x8x32xbf16>, vector<2x8x32xf32> -> vector<2x8x32xf32>
    "tpu.trace_stop"() : () -> ()
    %151 = vector.shape_cast %150 : vector<2x8x32xf32> to vector<16x32xf32>
    %152 = arith.truncf %151 : vector<16x32xf32> to vector<16x32xbf16>
    %c0_109 = arith.constant 0 : index
    %c2_110 = arith.constant 2 : index
    %c0_111 = arith.constant 0 : index
    %c0_112 = arith.constant 0 : index
    %153 = vector.load %arg11[%c0_109, %c2_110, %c0_111, %c0_112] : memref<1x4x32x128xbf16, #tpu.memory_space<vmem>>, vector<1x1x32x128xbf16>
    %154 = vector.shape_cast %153 : vector<1x1x32x128xbf16> to vector<32x128xbf16>
    %cst_113 = arith.constant dense<0.000000e+00> : vector<16x128xf32>
    %155 = tpu.matmul %152, %154, %cst_113 {dimension_numbers = #tpu.dot_dimension_numbers<[1], [0], [0], [1], [0, 0, 1, 1], [], []>} : vector<16x32xbf16>, vector<32x128xbf16>, vector<16x128xf32> -> vector<16x128xf32>
    %156 = arith.addf %106, %155 : vector<16x128xf32>
    %c0_114 = arith.constant 0 : index
    %c3 = arith.constant 3 : index
    %c0_115 = arith.constant 0 : index
    %c0_116 = arith.constant 0 : index
    %157 = vector.load %arg5[%c0_114, %c3, %c0_115, %c0_116] : memref<1x4x128x32xbf16, #tpu.memory_space<vmem>>, vector<1x1x128x32xbf16>
    %158 = vector.shape_cast %157 : vector<1x1x128x32xbf16> to vector<128x32xbf16>
    %cst_117 = arith.constant dense<0.000000e+00> : vector<16x32xf32>
    %159 = tpu.matmul %4, %158, %cst_117 {dimension_numbers = #tpu.dot_dimension_numbers<[1], [0], [0], [1], [0, 0, 1, 1], [], []>} : vector<16x128xbf16>, vector<128x32xbf16>, vector<16x32xf32> -> vector<16x32xf32>
    %c0_118 = arith.constant 0 : index
    %c3_119 = arith.constant 3 : index
    %c0_120 = arith.constant 0 : index
    %c0_121 = arith.constant 0 : index
    %160 = vector.load %arg6[%c0_118, %c3_119, %c0_120, %c0_121] : memref<1x4x1x32xf32, #tpu.memory_space<vmem>>, vector<1x1x1x32xf32>
    %161 = vector.shape_cast %160 : vector<1x1x1x32xf32> to vector<1x32xf32>
    %162 = vector.broadcast %161 : vector<1x32xf32> to vector<16x32xf32>
    %163 = arith.addf %159, %162 : vector<16x32xf32>
    %c0_122 = arith.constant 0 : index
    %c3_123 = arith.constant 3 : index
    %c0_124 = arith.constant 0 : index
    %c0_125 = arith.constant 0 : index
    %164 = vector.load %arg7[%c0_122, %c3_123, %c0_124, %c0_125] : memref<1x4x128x32xbf16, #tpu.memory_space<vmem>>, vector<1x1x128x32xbf16>
    %165 = vector.shape_cast %164 : vector<1x1x128x32xbf16> to vector<128x32xbf16>
    %cst_126 = arith.constant dense<0.000000e+00> : vector<16x32xf32>
    %166 = tpu.matmul %4, %165, %cst_126 {dimension_numbers = #tpu.dot_dimension_numbers<[1], [0], [0], [1], [0, 0, 1, 1], [], []>} : vector<16x128xbf16>, vector<128x32xbf16>, vector<16x32xf32> -> vector<16x32xf32>
    %c0_127 = arith.constant 0 : index
    %c3_128 = arith.constant 3 : index
    %c0_129 = arith.constant 0 : index
    %c0_130 = arith.constant 0 : index
    %167 = vector.load %arg8[%c0_127, %c3_128, %c0_129, %c0_130] : memref<1x4x1x32xf32, #tpu.memory_space<vmem>>, vector<1x1x1x32xf32>
    %168 = vector.shape_cast %167 : vector<1x1x1x32xf32> to vector<1x32xf32>
    %169 = vector.broadcast %168 : vector<1x32xf32> to vector<16x32xf32>
    %170 = arith.addf %166, %169 : vector<16x32xf32>
    %c0_131 = arith.constant 0 : index
    %c3_132 = arith.constant 3 : index
    %c0_133 = arith.constant 0 : index
    %c0_134 = arith.constant 0 : index
    %171 = vector.load %arg9[%c0_131, %c3_132, %c0_133, %c0_134] : memref<1x4x128x32xbf16, #tpu.memory_space<vmem>>, vector<1x1x128x32xbf16>
    %172 = vector.shape_cast %171 : vector<1x1x128x32xbf16> to vector<128x32xbf16>
    %cst_135 = arith.constant dense<0.000000e+00> : vector<16x32xf32>
    %173 = tpu.matmul %4, %172, %cst_135 {dimension_numbers = #tpu.dot_dimension_numbers<[1], [0], [0], [1], [0, 0, 1, 1], [], []>} : vector<16x128xbf16>, vector<128x32xbf16>, vector<16x32xf32> -> vector<16x32xf32>
    %c0_136 = arith.constant 0 : index
    %c3_137 = arith.constant 3 : index
    %c0_138 = arith.constant 0 : index
    %c0_139 = arith.constant 0 : index
    %174 = vector.load %arg10[%c0_136, %c3_137, %c0_138, %c0_139] : memref<1x4x1x32xf32, #tpu.memory_space<vmem>>, vector<1x1x1x32xf32>
    %175 = vector.shape_cast %174 : vector<1x1x1x32xf32> to vector<1x32xf32>
    %176 = vector.broadcast %175 : vector<1x32xf32> to vector<16x32xf32>
    %177 = arith.addf %173, %176 : vector<16x32xf32>
    %178 = vector.shape_cast %163 : vector<16x32xf32> to vector<2x8x32xf32>
    %179 = arith.truncf %178 : vector<2x8x32xf32> to vector<2x8x32xbf16>
    %180 = vector.shape_cast %170 : vector<16x32xf32> to vector<2x8x32xf32>
    %181 = arith.truncf %180 : vector<2x8x32xf32> to vector<2x8x32xbf16>
    %182 = vector.shape_cast %177 : vector<16x32xf32> to vector<2x8x32xf32>
    %183 = arith.truncf %182 : vector<2x8x32xf32> to vector<2x8x32xbf16>
    "tpu.trace_start"() <{level = 10 : i32, message = "bqd,bkd->bqk"}> : () -> ()
    %cst_140 = arith.constant dense<0.000000e+00> : vector<2x8x8xf32>
    %184 = tpu.matmul %179, %181, %cst_140 {dimension_numbers = #tpu.dot_dimension_numbers<[2], [2], [1], [1], [0, 0, 0, 1, 1, 1], [0], [0]>} : vector<2x8x32xbf16>, vector<2x8x32xbf16>, vector<2x8x8xf32> -> vector<2x8x8xf32>
    "tpu.trace_stop"() : () -> ()
    %cst_141 = arith.constant 0.176776692 : f32
    %185 = vector.broadcast %cst_141 : f32 to vector<2x8x8xf32>
    %186 = arith.mulf %184, %185 : vector<2x8x8xf32>
    %187 = vector.broadcast %5 : vector<2x1x8xf32> to vector<2x8x8xf32>
    %188 = arith.addf %186, %187 : vector<2x8x8xf32>
    %cst_142 = arith.constant dense<0xFF800000> : vector<2x8xf32>
    %189 = vector.multi_reduction <maximumf>, %188, %cst_142 [2] : vector<2x8x8xf32> to vector<2x8xf32>
    %190 = vector.shape_cast %189 : vector<2x8xf32> to vector<2x8x1xf32>
    %191 = vector.broadcast %190 : vector<2x8x1xf32> to vector<2x8x8xf32>
    %192 = arith.subf %188, %191 : vector<2x8x8xf32>
    %193 = math.exp %192 : vector<2x8x8xf32>
    %cst_143 = arith.constant dense<0.000000e+00> : vector<2x8xf32>
    %194 = vector.multi_reduction <add>, %193, %cst_143 [2] : vector<2x8x8xf32> to vector<2x8xf32>
    %195 = vector.shape_cast %194 : vector<2x8xf32> to vector<2x8x1xf32>
    %196 = tpu.reciprocal %195 {approx = true} : vector<2x8x1xf32> -> vector<2x8x1xf32>
    %197 = vector.broadcast %196 : vector<2x8x1xf32> to vector<2x8x8xf32>
    %198 = arith.mulf %193, %197 : vector<2x8x8xf32>
    %199 = arith.truncf %198 : vector<2x8x8xf32> to vector<2x8x8xbf16>
    "tpu.trace_start"() <{level = 10 : i32, message = "bqk,bkd->bqd"}> : () -> ()
    %cst_144 = arith.constant dense<0.000000e+00> : vector<2x8x32xf32>
    %200 = tpu.matmul %199, %183, %cst_144 {dimension_numbers = #tpu.dot_dimension_numbers<[2], [1], [1], [2], [0, 0, 0, 1, 1, 2], [0], [0]>} : vector<2x8x8xbf16>, vector<2x8x32xbf16>, vector<2x8x32xf32> -> vector<2x8x32xf32>
    "tpu.trace_stop"() : () -> ()
    %201 = vector.shape_cast %200 : vector<2x8x32xf32> to vector<16x32xf32>
    %202 = arith.truncf %201 : vector<16x32xf32> to vector<16x32xbf16>
    %c0_145 = arith.constant 0 : index
    %c3_146 = arith.constant 3 : index
    %c0_147 = arith.constant 0 : index
    %c0_148 = arith.constant 0 : index
    %203 = vector.load %arg11[%c0_145, %c3_146, %c0_147, %c0_148] : memref<1x4x32x128xbf16, #tpu.memory_space<vmem>>, vector<1x1x32x128xbf16>
    %204 = vector.shape_cast %203 : vector<1x1x32x128xbf16> to vector<32x128xbf16>
    %cst_149 = arith.constant dense<0.000000e+00> : vector<16x128xf32>
    %205 = tpu.matmul %202, %204, %cst_149 {dimension_numbers = #tpu.dot_dimension_numbers<[1], [0], [0], [1], [0, 0, 1, 1], [], []>} : vector<16x32xbf16>, vector<32x128xbf16>, vector<16x128xf32> -> vector<16x128xf32>
    %206 = arith.addf %156, %205 : vector<16x128xf32>
    %c0_150 = arith.constant 0 : index
    %c0_151 = arith.constant 0 : index
    %c0_152 = arith.constant 0 : index
    %207 = vector.load %arg12[%c0_150, %c0_151, %c0_152] : memref<1x1x128xf32, #tpu.memory_space<vmem>>, vector<1x1x128xf32>
    %208 = vector.shape_cast %207 : vector<1x1x128xf32> to vector<1x128xf32>
    %209 = vector.broadcast %208 : vector<1x128xf32> to vector<16x128xf32>
    %210 = arith.addf %206, %209 : vector<16x128xf32>
    %211 = arith.addf %3, %210 : vector<16x128xf32>
    %c0_153 = arith.constant 0 : index
    %c0_154 = arith.constant 0 : index
    %c0_155 = arith.constant 0 : index
    %212 = vector.load %arg13[%c0_153, %c0_154, %c0_155] : memref<1x1x128xf32, #tpu.memory_space<vmem>>, vector<1x1x128xf32>
    %213 = vector.shape_cast %212 : vector<1x1x128xf32> to vector<1x128xf32>
    %c0_156 = arith.constant 0 : index
    %c0_157 = arith.constant 0 : index
    %c0_158 = arith.constant 0 : index
    %214 = vector.load %arg14[%c0_156, %c0_157, %c0_158] : memref<1x1x128xf32, #tpu.memory_space<vmem>>, vector<1x1x128xf32>
    %215 = vector.shape_cast %214 : vector<1x1x128xf32> to vector<1x128xf32>
    %cst_159 = arith.constant dense<0.000000e+00> : vector<16xf32>
    %216 = vector.multi_reduction <add>, %211, %cst_159 [1] : vector<16x128xf32> to vector<16xf32>
    %217 = vector.shape_cast %216 : vector<16xf32> to vector<16x1xf32>
    %cst_160 = arith.constant 1.280000e+02 : f32
    %218 = vector.broadcast %cst_160 : f32 to vector<16x1xf32>
    %219 = arith.divf %217, %218 : vector<16x1xf32>
    %220 = vector.broadcast %219 : vector<16x1xf32> to vector<16x128xf32>
    %221 = arith.subf %211, %220 : vector<16x128xf32>
    %222 = vector.broadcast %219 : vector<16x1xf32> to vector<16x128xf32>
    %223 = arith.subf %211, %222 : vector<16x128xf32>
    %224 = arith.mulf %221, %223 : vector<16x128xf32>
    %cst_161 = arith.constant dense<0.000000e+00> : vector<16xf32>
    %225 = vector.multi_reduction <add>, %224, %cst_161 [1] : vector<16x128xf32> to vector<16xf32>
    %226 = vector.shape_cast %225 : vector<16xf32> to vector<16x1xf32>
    %cst_162 = arith.constant 1.280000e+02 : f32
    %227 = vector.broadcast %cst_162 : f32 to vector<16x1xf32>
    %228 = arith.divf %226, %227 : vector<16x1xf32>
    %229 = vector.broadcast %219 : vector<16x1xf32> to vector<16x128xf32>
    %230 = arith.subf %211, %229 : vector<16x128xf32>
    %cst_163 = arith.constant 9.99999996E-13 : f32
    %231 = vector.broadcast %cst_163 : f32 to vector<16x1xf32>
    %232 = arith.addf %228, %231 : vector<16x1xf32>
    %233 = math.rsqrt %232 : vector<16x1xf32>
    %234 = vector.broadcast %233 : vector<16x1xf32> to vector<16x128xf32>
    %235 = arith.mulf %230, %234 : vector<16x128xf32>
    %236 = vector.broadcast %213 : vector<1x128xf32> to vector<16x128xf32>
    %237 = arith.mulf %235, %236 : vector<16x128xf32>
    %238 = vector.broadcast %215 : vector<1x128xf32> to vector<16x128xf32>
    %239 = arith.addf %237, %238 : vector<16x128xf32>
    %240 = arith.truncf %239 : vector<16x128xf32> to vector<16x128xbf16>
    %c0_164 = arith.constant 0 : index
    %c0_165 = arith.constant 0 : index
    %c0_166 = arith.constant 0 : index
    %241 = vector.load %arg15[%c0_164, %c0_165, %c0_166] : memref<1x128x256xbf16, #tpu.memory_space<vmem>>, vector<1x128x256xbf16>
    %242 = vector.shape_cast %241 : vector<1x128x256xbf16> to vector<128x256xbf16>
    %cst_167 = arith.constant dense<0.000000e+00> : vector<16x256xf32>
    %243 = tpu.matmul %240, %242, %cst_167 {dimension_numbers = #tpu.dot_dimension_numbers<[1], [0], [0], [1], [0, 0, 1, 1], [], []>} : vector<16x128xbf16>, vector<128x256xbf16>, vector<16x256xf32> -> vector<16x256xf32>
    %c0_168 = arith.constant 0 : index
    %c0_169 = arith.constant 0 : index
    %c0_170 = arith.constant 0 : index
    %244 = vector.load %arg16[%c0_168, %c0_169, %c0_170] : memref<1x1x256xf32, #tpu.memory_space<vmem>>, vector<1x1x256xf32>
    %245 = vector.shape_cast %244 : vector<1x1x256xf32> to vector<1x256xf32>
    %246 = vector.broadcast %245 : vector<1x256xf32> to vector<16x256xf32>
    %247 = arith.addf %243, %246 : vector<16x256xf32>
    %cst_171 = arith.constant 5.000000e-01 : f32
    %248 = vector.broadcast %cst_171 : f32 to vector<16x256xf32>
    %249 = arith.mulf %248, %247 : vector<16x256xf32>
    %cst_172 = arith.constant 0.707106769 : f32
    %250 = vector.broadcast %cst_172 : f32 to vector<16x256xf32>
    %251 = arith.mulf %247, %250 : vector<16x256xf32>
    %252 = math.erf %251 : vector<16x256xf32>
    %cst_173 = arith.constant 1.000000e+00 : f32
    %253 = vector.broadcast %cst_173 : f32 to vector<16x256xf32>
    %254 = arith.addf %253, %252 : vector<16x256xf32>
    %255 = arith.mulf %249, %254 : vector<16x256xf32>
    %256 = arith.truncf %255 : vector<16x256xf32> to vector<16x256xbf16>
    %c0_174 = arith.constant 0 : index
    %c0_175 = arith.constant 0 : index
    %c0_176 = arith.constant 0 : index
    %257 = vector.load %arg17[%c0_174, %c0_175, %c0_176] : memref<1x256x128xbf16, #tpu.memory_space<vmem>>, vector<1x256x128xbf16>
    %258 = vector.shape_cast %257 : vector<1x256x128xbf16> to vector<256x128xbf16>
    %cst_177 = arith.constant dense<0.000000e+00> : vector<16x128xf32>
    %259 = tpu.matmul %256, %258, %cst_177 {dimension_numbers = #tpu.dot_dimension_numbers<[1], [0], [0], [1], [0, 0, 1, 1], [], []>} : vector<16x256xbf16>, vector<256x128xbf16>, vector<16x128xf32> -> vector<16x128xf32>
    %c0_178 = arith.constant 0 : index
    %c0_179 = arith.constant 0 : index
    %c0_180 = arith.constant 0 : index
    %260 = vector.load %arg18[%c0_178, %c0_179, %c0_180] : memref<1x1x128xf32, #tpu.memory_space<vmem>>, vector<1x1x128xf32>
    %261 = vector.shape_cast %260 : vector<1x1x128xf32> to vector<1x128xf32>
    %262 = vector.broadcast %261 : vector<1x128xf32> to vector<16x128xf32>
    %263 = arith.addf %259, %262 : vector<16x128xf32>
    %264 = arith.addf %239, %263 : vector<16x128xf32>
    %c0_181 = arith.constant 0 : index
    %c0_182 = arith.constant 0 : index
    %c0_183 = arith.constant 0 : index
    %265 = vector.load %arg19[%c0_181, %c0_182, %c0_183] : memref<1x1x128xf32, #tpu.memory_space<vmem>>, vector<1x1x128xf32>
    %266 = vector.shape_cast %265 : vector<1x1x128xf32> to vector<1x128xf32>
    %c0_184 = arith.constant 0 : index
    %c0_185 = arith.constant 0 : index
    %c0_186 = arith.constant 0 : index
    %267 = vector.load %arg20[%c0_184, %c0_185, %c0_186] : memref<1x1x128xf32, #tpu.memory_space<vmem>>, vector<1x1x128xf32>
    %268 = vector.shape_cast %267 : vector<1x1x128xf32> to vector<1x128xf32>
    %cst_187 = arith.constant dense<0.000000e+00> : vector<16xf32>
    %269 = vector.multi_reduction <add>, %264, %cst_187 [1] : vector<16x128xf32> to vector<16xf32>
    %270 = vector.shape_cast %269 : vector<16xf32> to vector<16x1xf32>
    %cst_188 = arith.constant 1.280000e+02 : f32
    %271 = vector.broadcast %cst_188 : f32 to vector<16x1xf32>
    %272 = arith.divf %270, %271 : vector<16x1xf32>
    %273 = vector.broadcast %272 : vector<16x1xf32> to vector<16x128xf32>
    %274 = arith.subf %264, %273 : vector<16x128xf32>
    %275 = vector.broadcast %272 : vector<16x1xf32> to vector<16x128xf32>
    %276 = arith.subf %264, %275 : vector<16x128xf32>
    %277 = arith.mulf %274, %276 : vector<16x128xf32>
    %cst_189 = arith.constant dense<0.000000e+00> : vector<16xf32>
    %278 = vector.multi_reduction <add>, %277, %cst_189 [1] : vector<16x128xf32> to vector<16xf32>
    %279 = vector.shape_cast %278 : vector<16xf32> to vector<16x1xf32>
    %cst_190 = arith.constant 1.280000e+02 : f32
    %280 = vector.broadcast %cst_190 : f32 to vector<16x1xf32>
    %281 = arith.divf %279, %280 : vector<16x1xf32>
    %282 = vector.broadcast %272 : vector<16x1xf32> to vector<16x128xf32>
    %283 = arith.subf %264, %282 : vector<16x128xf32>
    %cst_191 = arith.constant 9.99999996E-13 : f32
    %284 = vector.broadcast %cst_191 : f32 to vector<16x1xf32>
    %285 = arith.addf %281, %284 : vector<16x1xf32>
    %286 = math.rsqrt %285 : vector<16x1xf32>
    %287 = vector.broadcast %286 : vector<16x1xf32> to vector<16x128xf32>
    %288 = arith.mulf %283, %287 : vector<16x128xf32>
    %289 = vector.broadcast %266 : vector<1x128xf32> to vector<16x128xf32>
    %290 = arith.mulf %288, %289 : vector<16x128xf32>
    %291 = vector.broadcast %268 : vector<1x128xf32> to vector<16x128xf32>
    %292 = arith.addf %290, %291 : vector<16x128xf32>
    %c0_192 = arith.constant 0 : index
    %c0_193 = arith.constant 0 : index
    %293 = vector.load %arg26[%c0_192, %c0_193] : memref<16x128xf32, #tpu.memory_space<vmem>>, vector<16x128xf32>
    tpu.vector_store %arg26[%c0_192, %c0_193], %292 {strides = array<i32>} : memref<16x128xf32, #tpu.memory_space<vmem>>, vector<16x128xf32>,
    %c1_i32 = arith.constant 1 : i32
    %294 = arith.cmpi eq, %arg0, %c1_i32 : i32
    %295 = arith.extui %294 : i1 to i32
    %c0_i32_194 = arith.constant 0 : i32
    %296 = arith.cmpi ne, %295, %c0_i32_194 : i32
    scf.if %296 {
      %297 = vector.extract_strided_slice %292 {offsets = [0, 0], sizes = [1, 128], strides = [1, 1]} : vector<16x128xf32> to vector<1x128xf32>
      %298 = vector.extract_strided_slice %292 {offsets = [8, 0], sizes = [1, 128], strides = [1, 1]} : vector<16x128xf32> to vector<1x128xf32>
      %299 = tpu.concatenate %297, %298 in 0 : vector<1x128xf32>, vector<1x128xf32> -> vector<2x128xf32>
      %300 = arith.truncf %299 : vector<2x128xf32> to vector<2x128xbf16>
      %c0_195 = arith.constant 0 : index
      %c0_196 = arith.constant 0 : index
      %301 = vector.load %arg21[%c0_195, %c0_196] : memref<128x128xbf16, #tpu.memory_space<vmem>>, vector<128x128xbf16>
      %cst_197 = arith.constant dense<0.000000e+00> : vector<2x128xf32>
      %302 = tpu.matmul %300, %301, %cst_197 {dimension_numbers = #tpu.dot_dimension_numbers<[1], [0], [0], [1], [0, 0, 1, 1], [], []>} : vector<2x128xbf16>, vector<128x128xbf16>, vector<2x128xf32> -> vector<2x128xf32>
      %c0_198 = arith.constant 0 : index
      %c0_199 = arith.constant 0 : index
      %303 = vector.load %arg22[%c0_198, %c0_199] : memref<1x128xf32, #tpu.memory_space<vmem>>, vector<1x128xf32>
      %304 = vector.broadcast %303 : vector<1x128xf32> to vector<2x128xf32>
      %305 = arith.addf %302, %304 : vector<2x128xf32>
      %306 = math.tanh %305 : vector<2x128xf32>
      %c0_200 = arith.constant 0 : index
      %c0_201 = arith.constant 0 : index
      %307 = vector.load %arg23[%c0_200, %c0_201] : memref<1x128xf32, #tpu.memory_space<vmem>>, vector<1x128xf32>
      %308 = vector.broadcast %307 : vector<1x128xf32> to vector<2x128xf32>
      %309 = arith.mulf %306, %308 : vector<2x128xf32>
      %cst_202 = arith.constant dense<0.000000e+00> : vector<2xf32>
      %310 = vector.multi_reduction <add>, %309, %cst_202 [1] : vector<2x128xf32> to vector<2xf32>
      %311 = vector.shape_cast %310 : vector<2xf32> to vector<2x1xf32>
      %c0_203 = arith.constant 0 : index
      %c0_204 = arith.constant 0 : index
      %312 = vector.load %arg24[%c0_203, %c0_204] : memref<1x1xf32, #tpu.memory_space<vmem>>, vector<1x1xf32>
      %313 = vector.broadcast %312 : vector<1x1xf32> to vector<2x1xf32>
      %314 = arith.addf %311, %313 : vector<2x1xf32>
      %c0_205 = arith.constant 0 : index
      %c0_206 = arith.constant 0 : index
      %315 = vector.load %arg25[%c0_205, %c0_206] : memref<2x1xf32, #tpu.memory_space<vmem>>, vector<2x1xf32>
      tpu.vector_store %arg25[%c0_205, %c0_206], %314 {strides = array<i32>} : memref<2x1xf32, #tpu.memory_space<vmem>>, vector<2x1xf32>,
    } else {
    }
    return
  }
  func.func @transform_0(%arg0: i32) -> (i32, i32) {
    %c0_i32 = arith.constant 0 : i32
    %c0_i32_0 = arith.constant 0 : i32
    %c0_i32_1 = arith.constant 0 : i32
    return %c0_i32, %c0_i32_0 : i32, i32
  }
  func.func @transform_1(%arg0: i32) -> (i32, i32, i32) {
    %c0_i32 = arith.constant 0 : i32
    %c0_i32_0 = arith.constant 0 : i32
    %c0_i32_1 = arith.constant 0 : i32
    %c0_i32_2 = arith.constant 0 : i32
    return %c0_i32, %c0_i32_0, %c0_i32_1 : i32, i32, i32
  }
  func.func @transform_2(%arg0: i32) -> (i32, i32) {
    %c0_i32 = arith.constant 0 : i32
    %c0_i32_0 = arith.constant 0 : i32
    %c0_i32_1 = arith.constant 0 : i32
    return %c0_i32, %c0_i32_0 : i32, i32
  }
  func.func @transform_3(%arg0: i32) -> (i32, i32) {
    %c0_i32 = arith.constant 0 : i32
    %c0_i32_0 = arith.constant 0 : i32
    %c0_i32_1 = arith.constant 0 : i32
    return %c0_i32, %c0_i32_0 : i32, i32
  }
  func.func @transform_4(%arg0: i32) -> (i32, i32, i32, i32) {
    %c0_i32 = arith.constant 0 : i32
    %c0_i32_0 = arith.constant 0 : i32
    %c0_i32_1 = arith.constant 0 : i32
    %c0_i32_2 = arith.constant 0 : i32
    return %arg0, %c0_i32, %c0_i32_0, %c0_i32_1 : i32, i32, i32, i32
  }
  func.func @transform_5(%arg0: i32) -> (i32, i32, i32, i32) {
    %c0_i32 = arith.constant 0 : i32
    %c0_i32_0 = arith.constant 0 : i32
    %c0_i32_1 = arith.constant 0 : i32
    %c0_i32_2 = arith.constant 0 : i32
    return %arg0, %c0_i32, %c0_i32_0, %c0_i32_1 : i32, i32, i32, i32
  }
  func.func @transform_6(%arg0: i32) -> (i32, i32, i32, i32) {
    %c0_i32 = arith.constant 0 : i32
    %c0_i32_0 = arith.constant 0 : i32
    %c0_i32_1 = arith.constant 0 : i32
    %c0_i32_2 = arith.constant 0 : i32
    return %arg0, %c0_i32, %c0_i32_0, %c0_i32_1 : i32, i32, i32, i32
  }
  func.func @transform_7(%arg0: i32) -> (i32, i32, i32, i32) {
    %c0_i32 = arith.constant 0 : i32
    %c0_i32_0 = arith.constant 0 : i32
    %c0_i32_1 = arith.constant 0 : i32
    %c0_i32_2 = arith.constant 0 : i32
    return %arg0, %c0_i32, %c0_i32_0, %c0_i32_1 : i32, i32, i32, i32
  }
  func.func @transform_8(%arg0: i32) -> (i32, i32, i32, i32) {
    %c0_i32 = arith.constant 0 : i32
    %c0_i32_0 = arith.constant 0 : i32
    %c0_i32_1 = arith.constant 0 : i32
    %c0_i32_2 = arith.constant 0 : i32
    return %arg0, %c0_i32, %c0_i32_0, %c0_i32_1 : i32, i32, i32, i32
  }
  func.func @transform_9(%arg0: i32) -> (i32, i32, i32, i32) {
    %c0_i32 = arith.constant 0 : i32
    %c0_i32_0 = arith.constant 0 : i32
    %c0_i32_1 = arith.constant 0 : i32
    %c0_i32_2 = arith.constant 0 : i32
    return %arg0, %c0_i32, %c0_i32_0, %c0_i32_1 : i32, i32, i32, i32
  }
  func.func @transform_10(%arg0: i32) -> (i32, i32, i32, i32) {
    %c0_i32 = arith.constant 0 : i32
    %c0_i32_0 = arith.constant 0 : i32
    %c0_i32_1 = arith.constant 0 : i32
    %c0_i32_2 = arith.constant 0 : i32
    return %arg0, %c0_i32, %c0_i32_0, %c0_i32_1 : i32, i32, i32, i32
  }
  func.func @transform_11(%arg0: i32) -> (i32, i32, i32) {
    %c0_i32 = arith.constant 0 : i32
    %c0_i32_0 = arith.constant 0 : i32
    %c0_i32_1 = arith.constant 0 : i32
    return %arg0, %c0_i32, %c0_i32_0 : i32, i32, i32
  }
  func.func @transform_12(%arg0: i32) -> (i32, i32, i32) {
    %c0_i32 = arith.constant 0 : i32
    %c0_i32_0 = arith.constant 0 : i32
    %c0_i32_1 = arith.constant 0 : i32
    return %arg0, %c0_i32, %c0_i32_0 : i32, i32, i32
  }
  func.func @transform_13(%arg0: i32) -> (i32, i32, i32) {
    %c0_i32 = arith.constant 0 : i32
    %c0_i32_0 = arith.constant 0 : i32
    %c0_i32_1 = arith.constant 0 : i32
    return %arg0, %c0_i32, %c0_i32_0 : i32, i32, i32
  }
  func.func @transform_14(%arg0: i32) -> (i32, i32, i32) {
    %c0_i32 = arith.constant 0 : i32
    %c0_i32_0 = arith.constant 0 : i32
    %c0_i32_1 = arith.constant 0 : i32
    return %arg0, %c0_i32, %c0_i32_0 : i32, i32, i32
  }
  func.func @transform_15(%arg0: i32) -> (i32, i32, i32) {
    %c0_i32 = arith.constant 0 : i32
    %c0_i32_0 = arith.constant 0 : i32
    %c0_i32_1 = arith.constant 0 : i32
    return %arg0, %c0_i32, %c0_i32_0 : i32, i32, i32
  }
  func.func @transform_16(%arg0: i32) -> (i32, i32, i32) {
    %c0_i32 = arith.constant 0 : i32
    %c0_i32_0 = arith.constant 0 : i32
    %c0_i32_1 = arith.constant 0 : i32
    return %arg0, %c0_i32, %c0_i32_0 : i32, i32, i32
  }
  func.func @transform_17(%arg0: i32) -> (i32, i32, i32) {
    %c0_i32 = arith.constant 0 : i32
    %c0_i32_0 = arith.constant 0 : i32
    %c0_i32_1 = arith.constant 0 : i32
    return %arg0, %c0_i32, %c0_i32_0 : i32, i32, i32
  }
  func.func @transform_18(%arg0: i32) -> (i32, i32, i32) {
    %c0_i32 = arith.constant 0 : i32
    %c0_i32_0 = arith.constant 0 : i32
    %c0_i32_1 = arith.constant 0 : i32
    return %arg0, %c0_i32, %c0_i32_0 : i32, i32, i32
  }
  func.func @transform_19(%arg0: i32) -> (i32, i32, i32) {
    %c0_i32 = arith.constant 0 : i32
    %c0_i32_0 = arith.constant 0 : i32
    %c0_i32_1 = arith.constant 0 : i32
    return %arg0, %c0_i32, %c0_i32_0 : i32, i32, i32
  }
  func.func @transform_20(%arg0: i32) -> (i32, i32) {
    %c0_i32 = arith.constant 0 : i32
    %c0_i32_0 = arith.constant 0 : i32
    %c0_i32_1 = arith.constant 0 : i32
    return %c0_i32, %c0_i32_0 : i32, i32
  }
  func.func @transform_21(%arg0: i32) -> (i32, i32) {
    %c0_i32 = arith.constant 0 : i32
    %c0_i32_0 = arith.constant 0 : i32
    %c0_i32_1 = arith.constant 0 : i32
    return %c0_i32, %c0_i32_0 : i32, i32
  }
  func.func @transform_22(%arg0: i32) -> (i32, i32) {
    %c0_i32 = arith.constant 0 : i32
    %c0_i32_0 = arith.constant 0 : i32
    %c0_i32_1 = arith.constant 0 : i32
    return %c0_i32, %c0_i32_0 : i32, i32
  }
  func.func @transform_23(%arg0: i32) -> (i32, i32) {
    %c0_i32 = arith.constant 0 : i32
    %c0_i32_0 = arith.constant 0 : i32
    %c0_i32_1 = arith.constant 0 : i32
    return %c0_i32, %c0_i32_0 : i32, i32
  }
  func.func @transform_24(%arg0: i32) -> (i32, i32) {
    %c0_i32 = arith.constant 0 : i32
    %c0_i32_0 = arith.constant 0 : i32
    %c0_i32_1 = arith.constant 0 : i32
    return %c0_i32, %c0_i32_0 : i32, i32
  }
}

</mosaic_0001>

<llo_original>
// kernel: bert_classifier_forward.1
$region0: #{bert_classifier_forward.1}
  #allocation0 [shape = 'u32[]', space=smem, size = 0x4, offset = 0x4, fixed_abs, tag = 'smem constant byte address 0x4 - core index']
  #allocation1 [shape = 'u32[144,128]{1,0:T(1,128)}', space=vmem, size = 0x12000, scoped, tag = 'internal scratch']
  #allocation2 [shape = 'f32[16,128]{1,0:T(8,128)}', space=vmem, size = 0x2000, scoped, tag = 'scratch operand']
  #allocation3 [shape = 'f32[1,1]{1,0:T(1,128)S(1)}', space=vmem, size = 0x200, scoped, tag = 'scoped memory for bert_classifier_forward.1']
  %s0 = inlined_call_operand.vmem [shape: f32[16,128], index: 0, kind: input, shape index: {}]
  %s1 = inlined_call_operand.vmem [shape: f32[2,1,8], index: 1, kind: input, shape index: {}]
  %s2 = inlined_call_operand.vmem [shape: f32[1,128], index: 2, kind: input, shape index: {}]
  %s3 = inlined_call_operand.vmem [shape: f32[1,128], index: 3, kind: input, shape index: {}]
  %s4 = inlined_call_operand.vmem [shape: bf16[2,4,128,32], index: 4, kind: input, shape index: {}]
  %s5 = inlined_call_operand.vmem [shape: f32[2,4,1,32], index: 5, kind: input, shape index: {}]
  %s6 = inlined_call_operand.vmem [shape: bf16[2,4,128,32], index: 6, kind: input, shape index: {}]
  %s7 = inlined_call_operand.vmem [shape: f32[2,4,1,32], index: 7, kind: input, shape index: {}]
  %s8 = inlined_call_operand.vmem [shape: bf16[2,4,128,32], index: 8, kind: input, shape index: {}]
  %s9 = inlined_call_operand.vmem [shape: f32[2,4,1,32], index: 9, kind: input, shape index: {}]
  %s10 = inlined_call_operand.vmem [shape: bf16[2,4,32,128], index: 10, kind: input, shape index: {}]
  %s11 = inlined_call_operand.vmem [shape: f32[2,1,128], index: 11, kind: input, shape index: {}]
  %s12 = inlined_call_operand.vmem [shape: f32[2,1,128], index: 12, kind: input, shape index: {}]
  %s13 = inlined_call_operand.vmem [shape: f32[2,1,128], index: 13, kind: input, shape index: {}]
  %s14 = inlined_call_operand.vmem [shape: bf16[2,128,256], index: 14, kind: input, shape index: {}]
  %s15 = inlined_call_operand.vmem [shape: f32[2,1,256], index: 15, kind: input, shape index: {}]
  %s16 = inlined_call_operand.vmem [shape: bf16[2,256,128], index: 16, kind: input, shape index: {}]
  %s17 = inlined_call_operand.vmem [shape: f32[2,1,128], index: 17, kind: input, shape index: {}]
  %s18 = inlined_call_operand.vmem [shape: f32[2,1,128], index: 18, kind: input, shape index: {}]
  %s19 = inlined_call_operand.vmem [shape: f32[2,1,128], index: 19, kind: input, shape index: {}]
  %s20 = inlined_call_operand.vmem [shape: bf16[128,128], index: 20, kind: input, shape index: {}]
  %s21 = inlined_call_operand.vmem [shape: f32[1,128], index: 21, kind: input, shape index: {}]
  %s22 = inlined_call_operand.vmem [shape: f32[1,128], index: 22, kind: input, shape index: {}]
  %s23 = inlined_call_operand.<no memory space> [shape: f32[1,1], index: 23, kind: input, shape index: {}]
  %s24 = inlined_call_operand.vmem [shape: f32[2,1], index: 24, kind: output, shape index: {}]
  %s25 = sld [smem:[#allocation0]]
  $region137: #{bert_classifier_forward.1} parent=0
    _
  %s27 = ssub.s32 1, %s25
  %s28 = scalar_select 0, %s27, %s25
  %v29 = vstv %s23
  %30 = vst [vmem:[#allocation3] sm:$0x1] %v29
  loop: start=0, step=1, limit=4
  $region2: #{bert_classifier_forward.1} parent=0 // loop_pre_header
    _
  $region3: #{bert_classifier_forward.1} parent=0 // loop_header
    %s32 = sphi 0, %s36
    %p33 = scmp.ge.s32.totalorder %s32, 4
    %s40 = sphi 0, %s40
    %s42 = sphi 0, %s40
    %s43 = sphi 0, %s42
    %s57 = sphi 0, %s43
    %s61 = sphi 0, %s61
    %s63 = sphi 0, %s61
    %s64 = sphi 0, %s63
    %s78 = sphi 0, %s64
    %s82 = sphi 0, %s82
    %s84 = sphi 0, %s82
    %s85 = sphi 0, %s84
    %s99 = sphi 0, %s85
    %s103 = sphi 0, %s103
    %s105 = sphi 0, %s103
    %s106 = sphi 0, %s105
    %s120 = sphi 0, %s106
    %s126 = sphi 0, %s128
    %s129 = sphi 0, %s126
    %s130 = sphi 0, %s129
    %s146 = sphi 0, %s130
    %s152 = sphi 0, %s154
    %s155 = sphi 0, %s152
    %s156 = sphi 0, %s155
    %s172 = sphi 0, %s156
    %s178 = sphi 0, %s180
    %s181 = sphi 0, %s178
    %s182 = sphi 0, %s181
    %s198 = sphi 0, %s182
    %s204 = sphi 0, %s206
    %s207 = sphi 0, %s204
    %s208 = sphi 0, %s207
    %s224 = sphi 0, %s208
    %s230 = sphi 0, %s232
    %s233 = sphi 0, %s230
    %s234 = sphi 0, %s233
    %s250 = sphi 0, %s234
    %s256 = sphi 0, %s258
    %s259 = sphi 0, %s256
    %s260 = sphi 0, %s259
    %s276 = sphi 0, %s260
    %s282 = sphi 0, %s284
    %s285 = sphi 0, %s282
    %s286 = sphi 0, %s285
    %s302 = sphi 0, %s286
    %s308 = sphi 0, %s310
    %s311 = sphi 0, %s308
    %s312 = sphi 0, %s311
    %s328 = sphi 0, %s312
    %s334 = sphi 0, %s336
    %s337 = sphi 0, %s334
    %s338 = sphi 0, %s337
    %s354 = sphi 0, %s338
    %s360 = sphi 0, %s362
    %s363 = sphi 0, %s360
    %s364 = sphi 0, %s363
    %s380 = sphi 0, %s364
    %s386 = sphi 0, %s388
    %s389 = sphi 0, %s386
    %s390 = sphi 0, %s389
    %s406 = sphi 0, %s390
    %s412 = sphi 0, %s414
    %s415 = sphi 0, %s412
    %s416 = sphi 0, %s415
    %s432 = sphi 0, %s416
    %s438 = sphi 0, %s440
    %s441 = sphi 0, %s438
    %s442 = sphi 0, %s441
    %s458 = sphi 0, %s442
    %s464 = sphi 0, %s466
    %s467 = sphi 0, %s464
    %s468 = sphi 0, %s467
    %s484 = sphi 0, %s468
    %s490 = sphi 0, %s492
    %s493 = sphi 0, %s490
    %s494 = sphi 0, %s493
    %s510 = sphi 0, %s494
    %s516 = sphi 0, %s518
    %s519 = sphi 0, %s516
    %s520 = sphi 0, %s519
    %s536 = sphi 0, %s520
    %s540 = sphi 0, %s540
    %s542 = sphi 0, %s540
    %s543 = sphi 0, %s542
    %s557 = sphi 0, %s543
    %s561 = sphi 0, %s561
    %s563 = sphi 0, %s561
    %s564 = sphi 0, %s563
    %s578 = sphi 0, %s564
    %s582 = sphi 0, %s582
    %s584 = sphi 0, %s582
    %s585 = sphi 0, %s584
    %s599 = sphi 0, %s585
    %s603 = sphi 0, %s603
    %s605 = sphi 0, %s603
    %s606 = sphi 0, %s605
    %s620 = sphi 0, %s606
    %s624 = sphi 0, %s624
    %s626 = sphi 0, %s624
    %s627 = sphi 0, %s626
    %s641 = sphi 0, %s627
  $region4: #{bert_classifier_forward.1} parent=0 // loop_header_branch
    %35 = sbr.rel (%p33) target = $region8
  $region5: #{bert_classifier_forward.1} parent=0 // loop_body
    %s37 = ssub.s32 %s32, 1
    %s38 = ssub.s32 %s32, 2
    %s39 = sadd.s32 %s32, 1
    %s41 = sadd.s32 %s40, 1
    %p44 = scmp.eq.s32.totalorder %s32, 1
    %p45 = scmp.ne.s32.totalorder %s40, %s42
    %p46 = scmp.eq.s32.totalorder %s32, 0
    %p47 = por %p45, %p46
    %p48 = scmp.ne.s32.totalorder %s40, %s42
    %p49 = scmp.eq.s32.totalorder %s37, 1
    %p50 = por %p48, %p49
    %p51 = scmp.ne.s32.totalorder %s42, %s43
    %p52 = scmp.eq.s32.totalorder %s37, 0
    %p53 = por %p51, %p52
    %p54 = scmp.ne.s32.totalorder %s42, %s43
    %p55 = scmp.eq.s32.totalorder %s38, 1
    %p56 = por %p54, %p55
    %p58 = scmp.ne.s32.totalorder %s43, %s57
    %p59 = scmp.eq.s32.totalorder %s38, 0
    %p60 = por %p58, %p59
    %s62 = sadd.s32 %s61, 1
    %p65 = scmp.eq.s32.totalorder %s32, 1
    %p66 = scmp.ne.s32.totalorder %s61, %s63
    %p67 = scmp.eq.s32.totalorder %s32, 0
    %p68 = por %p66, %p67
    %p69 = scmp.ne.s32.totalorder %s61, %s63
    %p70 = scmp.eq.s32.totalorder %s37, 1
    %p71 = por %p69, %p70
    %p72 = scmp.ne.s32.totalorder %s63, %s64
    %p73 = scmp.eq.s32.totalorder %s37, 0
    %p74 = por %p72, %p73
    %p75 = scmp.ne.s32.totalorder %s63, %s64
    %p76 = scmp.eq.s32.totalorder %s38, 1
    %p77 = por %p75, %p76
    %p79 = scmp.ne.s32.totalorder %s64, %s78
    %p80 = scmp.eq.s32.totalorder %s38, 0
    %p81 = por %p79, %p80
    %s83 = sadd.s32 %s82, 1
    %p86 = scmp.eq.s32.totalorder %s32, 1
    %p87 = scmp.ne.s32.totalorder %s82, %s84
    %p88 = scmp.eq.s32.totalorder %s32, 0
    %p89 = por %p87, %p88
    %p90 = scmp.ne.s32.totalorder %s82, %s84
    %p91 = scmp.eq.s32.totalorder %s37, 1
    %p92 = por %p90, %p91
    %p93 = scmp.ne.s32.totalorder %s84, %s85
    %p94 = scmp.eq.s32.totalorder %s37, 0
    %p95 = por %p93, %p94
    %p96 = scmp.ne.s32.totalorder %s84, %s85
    %p97 = scmp.eq.s32.totalorder %s38, 1
    %p98 = por %p96, %p97
    %p100 = scmp.ne.s32.totalorder %s85, %s99
    %p101 = scmp.eq.s32.totalorder %s38, 0
    %p102 = por %p100, %p101
    %s104 = sadd.s32 %s103, 1
    %p107 = scmp.eq.s32.totalorder %s32, 1
    %p108 = scmp.ne.s32.totalorder %s103, %s105
    %p109 = scmp.eq.s32.totalorder %s32, 0
    %p110 = por %p108, %p109
    %p111 = scmp.ne.s32.totalorder %s103, %s105
    %p112 = scmp.eq.s32.totalorder %s37, 1
    %p113 = por %p111, %p112
    %p114 = scmp.ne.s32.totalorder %s105, %s106
    %p115 = scmp.eq.s32.totalorder %s37, 0
    %p116 = por %p114, %p115
    %p117 = scmp.ne.s32.totalorder %s105, %s106
    %p118 = scmp.eq.s32.totalorder %s38, 1
    %p119 = por %p117, %p118
    %p121 = scmp.ne.s32.totalorder %s106, %s120
    %p122 = scmp.eq.s32.totalorder %s38, 0
    %p123 = por %p121, %p122
    %s124 = ssub.s32 %s32, %s39
    %p125 = scmp.eq.s32.totalorder %s124, 0
    %s127 = sadd.s32 %s126, 1
    %s128 = scalar_select %p125, %s126, %s127
    %p131 = pneg %p125
    %p132 = scmp.eq.s32.totalorder %s32, 1
    %p133 = por %p131, %p132
    %p134 = scmp.ne.s32.totalorder %s126, %s129
    %p135 = scmp.eq.s32.totalorder %s32, 0
    %p136 = por %p134, %p135
    %p137 = scmp.ne.s32.totalorder %s126, %s129
    %p138 = scmp.eq.s32.totalorder %s37, 1
    %p139 = por %p137, %p138
    %p140 = scmp.ne.s32.totalorder %s129, %s130
    %p141 = scmp.eq.s32.totalorder %s37, 0
    %p142 = por %p140, %p141
    %p143 = scmp.ne.s32.totalorder %s129, %s130
    %p144 = scmp.eq.s32.totalorder %s38, 1
    %p145 = por %p143, %p144
    %p147 = scmp.ne.s32.totalorder %s130, %s146
    %p148 = scmp.eq.s32.totalorder %s38, 0
    %p149 = por %p147, %p148
    %s150 = ssub.s32 %s32, %s39
    %p151 = scmp.eq.s32.totalorder %s150, 0
    %s153 = sadd.s32 %s152, 1
    %s154 = scalar_select %p151, %s152, %s153
    %p157 = pneg %p151
    %p158 = scmp.eq.s32.totalorder %s32, 1
    %p159 = por %p157, %p158
    %p160 = scmp.ne.s32.totalorder %s152, %s155
    %p161 = scmp.eq.s32.totalorder %s32, 0
    %p162 = por %p160, %p161
    %p163 = scmp.ne.s32.totalorder %s152, %s155
    %p164 = scmp.eq.s32.totalorder %s37, 1
    %p165 = por %p163, %p164
    %p166 = scmp.ne.s32.totalorder %s155, %s156
    %p167 = scmp.eq.s32.totalorder %s37, 0
    %p168 = por %p166, %p167
    %p169 = scmp.ne.s32.totalorder %s155, %s156
    %p170 = scmp.eq.s32.totalorder %s38, 1
    %p171 = por %p169, %p170
    %p173 = scmp.ne.s32.totalorder %s156, %s172
    %p174 = scmp.eq.s32.totalorder %s38, 0
    %p175 = por %p173, %p174
    %s176 = ssub.s32 %s32, %s39
    %p177 = scmp.eq.s32.totalorder %s176, 0
    %s179 = sadd.s32 %s178, 1
    %s180 = scalar_select %p177, %s178, %s179
    %p183 = pneg %p177
    %p184 = scmp.eq.s32.totalorder %s32, 1
    %p185 = por %p183, %p184
    %p186 = scmp.ne.s32.totalorder %s178, %s181
    %p187 = scmp.eq.s32.totalorder %s32, 0
    %p188 = por %p186, %p187
    %p189 = scmp.ne.s32.totalorder %s178, %s181
    %p190 = scmp.eq.s32.totalorder %s37, 1
    %p191 = por %p189, %p190
    %p192 = scmp.ne.s32.totalorder %s181, %s182
    %p193 = scmp.eq.s32.totalorder %s37, 0
    %p194 = por %p192, %p193
    %p195 = scmp.ne.s32.totalorder %s181, %s182
    %p196 = scmp.eq.s32.totalorder %s38, 1
    %p197 = por %p195, %p196
    %p199 = scmp.ne.s32.totalorder %s182, %s198
    %p200 = scmp.eq.s32.totalorder %s38, 0
    %p201 = por %p199, %p200
    %s202 = ssub.s32 %s32, %s39
    %p203 = scmp.eq.s32.totalorder %s202, 0
    %s205 = sadd.s32 %s204, 1
    %s206 = scalar_select %p203, %s204, %s205
    %p209 = pneg %p203
    %p210 = scmp.eq.s32.totalorder %s32, 1
    %p211 = por %p209, %p210
    %p212 = scmp.ne.s32.totalorder %s204, %s207
    %p213 = scmp.eq.s32.totalorder %s32, 0
    %p214 = por %p212, %p213
    %p215 = scmp.ne.s32.totalorder %s204, %s207
    %p216 = scmp.eq.s32.totalorder %s37, 1
    %p217 = por %p215, %p216
    %p218 = scmp.ne.s32.totalorder %s207, %s208
    %p219 = scmp.eq.s32.totalorder %s37, 0
    %p220 = por %p218, %p219
    %p221 = scmp.ne.s32.totalorder %s207, %s208
    %p222 = scmp.eq.s32.totalorder %s38, 1
    %p223 = por %p221, %p222
    %p225 = scmp.ne.s32.totalorder %s208, %s224
    %p226 = scmp.eq.s32.totalorder %s38, 0
    %p227 = por %p225, %p226
    %s228 = ssub.s32 %s32, %s39
    %p229 = scmp.eq.s32.totalorder %s228, 0
    %s231 = sadd.s32 %s230, 1
    %s232 = scalar_select %p229, %s230, %s231
    %p235 = pneg %p229
    %p236 = scmp.eq.s32.totalorder %s32, 1
    %p237 = por %p235, %p236
    %p238 = scmp.ne.s32.totalorder %s230, %s233
    %p239 = scmp.eq.s32.totalorder %s32, 0
    %p240 = por %p238, %p239
    %p241 = scmp.ne.s32.totalorder %s230, %s233
    %p242 = scmp.eq.s32.totalorder %s37, 1
    %p243 = por %p241, %p242
    %p244 = scmp.ne.s32.totalorder %s233, %s234
    %p245 = scmp.eq.s32.totalorder %s37, 0
    %p246 = por %p244, %p245
    %p247 = scmp.ne.s32.totalorder %s233, %s234
    %p248 = scmp.eq.s32.totalorder %s38, 1
    %p249 = por %p247, %p248
    %p251 = scmp.ne.s32.totalorder %s234, %s250
    %p252 = scmp.eq.s32.totalorder %s38, 0
    %p253 = por %p251, %p252
    %s254 = ssub.s32 %s32, %s39
    %p255 = scmp.eq.s32.totalorder %s254, 0
    %s257 = sadd.s32 %s256, 1
    %s258 = scalar_select %p255, %s256, %s257
    %p261 = pneg %p255
    %p262 = scmp.eq.s32.totalorder %s32, 1
    %p263 = por %p261, %p262
    %p264 = scmp.ne.s32.totalorder %s256, %s259
    %p265 = scmp.eq.s32.totalorder %s32, 0
    %p266 = por %p264, %p265
    %p267 = scmp.ne.s32.totalorder %s256, %s259
    %p268 = scmp.eq.s32.totalorder %s37, 1
    %p269 = por %p267, %p268
    %p270 = scmp.ne.s32.totalorder %s259, %s260
    %p271 = scmp.eq.s32.totalorder %s37, 0
    %p272 = por %p270, %p271
    %p273 = scmp.ne.s32.totalorder %s259, %s260
    %p274 = scmp.eq.s32.totalorder %s38, 1
    %p275 = por %p273, %p274
    %p277 = scmp.ne.s32.totalorder %s260, %s276
    %p278 = scmp.eq.s32.totalorder %s38, 0
    %p279 = por %p277, %p278
    %s280 = ssub.s32 %s32, %s39
    %p281 = scmp.eq.s32.totalorder %s280, 0
    %s283 = sadd.s32 %s282, 1
    %s284 = scalar_select %p281, %s282, %s283
    %p287 = pneg %p281
    %p288 = scmp.eq.s32.totalorder %s32, 1
    %p289 = por %p287, %p288
    %p290 = scmp.ne.s32.totalorder %s282, %s285
    %p291 = scmp.eq.s32.totalorder %s32, 0
    %p292 = por %p290, %p291
    %p293 = scmp.ne.s32.totalorder %s282, %s285
    %p294 = scmp.eq.s32.totalorder %s37, 1
    %p295 = por %p293, %p294
    %p296 = scmp.ne.s32.totalorder %s285, %s286
    %p297 = scmp.eq.s32.totalorder %s37, 0
    %p298 = por %p296, %p297
    %p299 = scmp.ne.s32.totalorder %s285, %s286
    %p300 = scmp.eq.s32.totalorder %s38, 1
    %p301 = por %p299, %p300
    %p303 = scmp.ne.s32.totalorder %s286, %s302
    %p304 = scmp.eq.s32.totalorder %s38, 0
    %p305 = por %p303, %p304
    %s306 = ssub.s32 %s32, %s39
    %p307 = scmp.eq.s32.totalorder %s306, 0
    %s309 = sadd.s32 %s308, 1
    %s310 = scalar_select %p307, %s308, %s309
    %p313 = pneg %p307
    %p314 = scmp.eq.s32.totalorder %s32, 1
    %p315 = por %p313, %p314
    %p316 = scmp.ne.s32.totalorder %s308, %s311
    %p317 = scmp.eq.s32.totalorder %s32, 0
    %p318 = por %p316, %p317
    %p319 = scmp.ne.s32.totalorder %s308, %s311
    %p320 = scmp.eq.s32.totalorder %s37, 1
    %p321 = por %p319, %p320
    %p322 = scmp.ne.s32.totalorder %s311, %s312
    %p323 = scmp.eq.s32.totalorder %s37, 0
    %p324 = por %p322, %p323
    %p325 = scmp.ne.s32.totalorder %s311, %s312
    %p326 = scmp.eq.s32.totalorder %s38, 1
    %p327 = por %p325, %p326
    %p329 = scmp.ne.s32.totalorder %s312, %s328
    %p330 = scmp.eq.s32.totalorder %s38, 0
    %p331 = por %p329, %p330
    %s332 = ssub.s32 %s32, %s39
    %p333 = scmp.eq.s32.totalorder %s332, 0
    %s335 = sadd.s32 %s334, 1
    %s336 = scalar_select %p333, %s334, %s335
    %p339 = pneg %p333
    %p340 = scmp.eq.s32.totalorder %s32, 1
    %p341 = por %p339, %p340
    %p342 = scmp.ne.s32.totalorder %s334, %s337
    %p343 = scmp.eq.s32.totalorder %s32, 0
    %p344 = por %p342, %p343
    %p345 = scmp.ne.s32.totalorder %s334, %s337
    %p346 = scmp.eq.s32.totalorder %s37, 1
    %p347 = por %p345, %p346
    %p348 = scmp.ne.s32.totalorder %s337, %s338
    %p349 = scmp.eq.s32.totalorder %s37, 0
    %p350 = por %p348, %p349
    %p351 = scmp.ne.s32.totalorder %s337, %s338
    %p352 = scmp.eq.s32.totalorder %s38, 1
    %p353 = por %p351, %p352
    %p355 = scmp.ne.s32.totalorder %s338, %s354
    %p356 = scmp.eq.s32.totalorder %s38, 0
    %p357 = por %p355, %p356
    %s358 = ssub.s32 %s32, %s39
    %p359 = scmp.eq.s32.totalorder %s358, 0
    %s361 = sadd.s32 %s360, 1
    %s362 = scalar_select %p359, %s360, %s361
    %p365 = pneg %p359
    %p366 = scmp.eq.s32.totalorder %s32, 1
    %p367 = por %p365, %p366
    %p368 = scmp.ne.s32.totalorder %s360, %s363
    %p369 = scmp.eq.s32.totalorder %s32, 0
    %p370 = por %p368, %p369
    %p371 = scmp.ne.s32.totalorder %s360, %s363
    %p372 = scmp.eq.s32.totalorder %s37, 1
    %p373 = por %p371, %p372
    %p374 = scmp.ne.s32.totalorder %s363, %s364
    %p375 = scmp.eq.s32.totalorder %s37, 0
    %p376 = por %p374, %p375
    %p377 = scmp.ne.s32.totalorder %s363, %s364
    %p378 = scmp.eq.s32.totalorder %s38, 1
    %p379 = por %p377, %p378
    %p381 = scmp.ne.s32.totalorder %s364, %s380
    %p382 = scmp.eq.s32.totalorder %s38, 0
    %p383 = por %p381, %p382
    %s384 = ssub.s32 %s32, %s39
    %p385 = scmp.eq.s32.totalorder %s384, 0
    %s387 = sadd.s32 %s386, 1
    %s388 = scalar_select %p385, %s386, %s387
    %p391 = pneg %p385
    %p392 = scmp.eq.s32.totalorder %s32, 1
    %p393 = por %p391, %p392
    %p394 = scmp.ne.s32.totalorder %s386, %s389
    %p395 = scmp.eq.s32.totalorder %s32, 0
    %p396 = por %p394, %p395
    %p397 = scmp.ne.s32.totalorder %s386, %s389
    %p398 = scmp.eq.s32.totalorder %s37, 1
    %p399 = por %p397, %p398
    %p400 = scmp.ne.s32.totalorder %s389, %s390
    %p401 = scmp.eq.s32.totalorder %s37, 0
    %p402 = por %p400, %p401
    %p403 = scmp.ne.s32.totalorder %s389, %s390
    %p404 = scmp.eq.s32.totalorder %s38, 1
    %p405 = por %p403, %p404
    %p407 = scmp.ne.s32.totalorder %s390, %s406
    %p408 = scmp.eq.s32.totalorder %s38, 0
    %p409 = por %p407, %p408
    %s410 = ssub.s32 %s32, %s39
    %p411 = scmp.eq.s32.totalorder %s410, 0
    %s413 = sadd.s32 %s412, 1
    %s414 = scalar_select %p411, %s412, %s413
    %p417 = pneg %p411
    %p418 = scmp.eq.s32.totalorder %s32, 1
    %p419 = por %p417, %p418
    %p420 = scmp.ne.s32.totalorder %s412, %s415
    %p421 = scmp.eq.s32.totalorder %s32, 0
    %p422 = por %p420, %p421
    %p423 = scmp.ne.s32.totalorder %s412, %s415
    %p424 = scmp.eq.s32.totalorder %s37, 1
    %p425 = por %p423, %p424
    %p426 = scmp.ne.s32.totalorder %s415, %s416
    %p427 = scmp.eq.s32.totalorder %s37, 0
    %p428 = por %p426, %p427
    %p429 = scmp.ne.s32.totalorder %s415, %s416
    %p430 = scmp.eq.s32.totalorder %s38, 1
    %p431 = por %p429, %p430
    %p433 = scmp.ne.s32.totalorder %s416, %s432
    %p434 = scmp.eq.s32.totalorder %s38, 0
    %p435 = por %p433, %p434
    %s436 = ssub.s32 %s32, %s39
    %p437 = scmp.eq.s32.totalorder %s436, 0
    %s439 = sadd.s32 %s438, 1
    %s440 = scalar_select %p437, %s438, %s439
    %p443 = pneg %p437
    %p444 = scmp.eq.s32.totalorder %s32, 1
    %p445 = por %p443, %p444
    %p446 = scmp.ne.s32.totalorder %s438, %s441
    %p447 = scmp.eq.s32.totalorder %s32, 0
    %p448 = por %p446, %p447
    %p449 = scmp.ne.s32.totalorder %s438, %s441
    %p450 = scmp.eq.s32.totalorder %s37, 1
    %p451 = por %p449, %p450
    %p452 = scmp.ne.s32.totalorder %s441, %s442
    %p453 = scmp.eq.s32.totalorder %s37, 0
    %p454 = por %p452, %p453
    %p455 = scmp.ne.s32.totalorder %s441, %s442
    %p456 = scmp.eq.s32.totalorder %s38, 1
    %p457 = por %p455, %p456
    %p459 = scmp.ne.s32.totalorder %s442, %s458
    %p460 = scmp.eq.s32.totalorder %s38, 0
    %p461 = por %p459, %p460
    %s462 = ssub.s32 %s32, %s39
    %p463 = scmp.eq.s32.totalorder %s462, 0
    %s465 = sadd.s32 %s464, 1
    %s466 = scalar_select %p463, %s464, %s465
    %p469 = pneg %p463
    %p470 = scmp.eq.s32.totalorder %s32, 1
    %p471 = por %p469, %p470
    %p472 = scmp.ne.s32.totalorder %s464, %s467
    %p473 = scmp.eq.s32.totalorder %s32, 0
    %p474 = por %p472, %p473
    %p475 = scmp.ne.s32.totalorder %s464, %s467
    %p476 = scmp.eq.s32.totalorder %s37, 1
    %p477 = por %p475, %p476
    %p478 = scmp.ne.s32.totalorder %s467, %s468
    %p479 = scmp.eq.s32.totalorder %s37, 0
    %p480 = por %p478, %p479
    %p481 = scmp.ne.s32.totalorder %s467, %s468
    %p482 = scmp.eq.s32.totalorder %s38, 1
    %p483 = por %p481, %p482
    %p485 = scmp.ne.s32.totalorder %s468, %s484
    %p486 = scmp.eq.s32.totalorder %s38, 0
    %p487 = por %p485, %p486
    %s488 = ssub.s32 %s32, %s39
    %p489 = scmp.eq.s32.totalorder %s488, 0
    %s491 = sadd.s32 %s490, 1
    %s492 = scalar_select %p489, %s490, %s491
    %p495 = pneg %p489
    %p496 = scmp.eq.s32.totalorder %s32, 1
    %p497 = por %p495, %p496
    %p498 = scmp.ne.s32.totalorder %s490, %s493
    %p499 = scmp.eq.s32.totalorder %s32, 0
    %p500 = por %p498, %p499
    %p501 = scmp.ne.s32.totalorder %s490, %s493
    %p502 = scmp.eq.s32.totalorder %s37, 1
    %p503 = por %p501, %p502
    %p504 = scmp.ne.s32.totalorder %s493, %s494
    %p505 = scmp.eq.s32.totalorder %s37, 0
    %p506 = por %p504, %p505
    %p507 = scmp.ne.s32.totalorder %s493, %s494
    %p508 = scmp.eq.s32.totalorder %s38, 1
    %p509 = por %p507, %p508
    %p511 = scmp.ne.s32.totalorder %s494, %s510
    %p512 = scmp.eq.s32.totalorder %s38, 0
    %p513 = por %p511, %p512
    %s514 = ssub.s32 %s32, %s39
    %p515 = scmp.eq.s32.totalorder %s514, 0
    %s517 = sadd.s32 %s516, 1
    %s518 = scalar_select %p515, %s516, %s517
    %p521 = pneg %p515
    %p522 = scmp.eq.s32.totalorder %s32, 1
    %p523 = por %p521, %p522
    %p524 = scmp.ne.s32.totalorder %s516, %s519
    %p525 = scmp.eq.s32.totalorder %s32, 0
    %p526 = por %p524, %p525
    %p527 = scmp.ne.s32.totalorder %s516, %s519
    %p528 = scmp.eq.s32.totalorder %s37, 1
    %p529 = por %p527, %p528
    %p530 = scmp.ne.s32.totalorder %s519, %s520
    %p531 = scmp.eq.s32.totalorder %s37, 0
    %p532 = por %p530, %p531
    %p533 = scmp.ne.s32.totalorder %s519, %s520
    %p534 = scmp.eq.s32.totalorder %s38, 1
    %p535 = por %p533, %p534
    %p537 = scmp.ne.s32.totalorder %s520, %s536
    %p538 = scmp.eq.s32.totalorder %s38, 0
    %p539 = por %p537, %p538
    %s541 = sadd.s32 %s540, 1
    %p544 = scmp.eq.s32.totalorder %s32, 1
    %p545 = scmp.ne.s32.totalorder %s540, %s542
    %p546 = scmp.eq.s32.totalorder %s32, 0
    %p547 = por %p545, %p546
    %p548 = scmp.ne.s32.totalorder %s540, %s542
    %p549 = scmp.eq.s32.totalorder %s37, 1
    %p550 = por %p548, %p549
    %p551 = scmp.ne.s32.totalorder %s542, %s543
    %p552 = scmp.eq.s32.totalorder %s37, 0
    %p553 = por %p551, %p552
    %p554 = scmp.ne.s32.totalorder %s542, %s543
    %p555 = scmp.eq.s32.totalorder %s38, 1
    %p556 = por %p554, %p555
    %p558 = scmp.ne.s32.totalorder %s543, %s557
    %p559 = scmp.eq.s32.totalorder %s38, 0
    %p560 = por %p558, %p559
    %s562 = sadd.s32 %s561, 1
    %p565 = scmp.eq.s32.totalorder %s32, 1
    %p566 = scmp.ne.s32.totalorder %s561, %s563
    %p567 = scmp.eq.s32.totalorder %s32, 0
    %p568 = por %p566, %p567
    %p569 = scmp.ne.s32.totalorder %s561, %s563
    %p570 = scmp.eq.s32.totalorder %s37, 1
    %p571 = por %p569, %p570
    %p572 = scmp.ne.s32.totalorder %s563, %s564
    %p573 = scmp.eq.s32.totalorder %s37, 0
    %p574 = por %p572, %p573
    %p575 = scmp.ne.s32.totalorder %s563, %s564
    %p576 = scmp.eq.s32.totalorder %s38, 1
    %p577 = por %p575, %p576
    %p579 = scmp.ne.s32.totalorder %s564, %s578
    %p580 = scmp.eq.s32.totalorder %s38, 0
    %p581 = por %p579, %p580
    %s583 = sadd.s32 %s582, 1
    %p586 = scmp.eq.s32.totalorder %s32, 1
    %p587 = scmp.ne.s32.totalorder %s582, %s584
    %p588 = scmp.eq.s32.totalorder %s32, 0
    %p589 = por %p587, %p588
    %p590 = scmp.ne.s32.totalorder %s582, %s584
    %p591 = scmp.eq.s32.totalorder %s37, 1
    %p592 = por %p590, %p591
    %p593 = scmp.ne.s32.totalorder %s584, %s585
    %p594 = scmp.eq.s32.totalorder %s37, 0
    %p595 = por %p593, %p594
    %p596 = scmp.ne.s32.totalorder %s584, %s585
    %p597 = scmp.eq.s32.totalorder %s38, 1
    %p598 = por %p596, %p597
    %p600 = scmp.ne.s32.totalorder %s585, %s599
    %p601 = scmp.eq.s32.totalorder %s38, 0
    %p602 = por %p600, %p601
    %s604 = sadd.s32 %s603, 1
    %p607 = scmp.eq.s32.totalorder %s32, 1
    %p608 = scmp.ne.s32.totalorder %s603, %s605
    %p609 = scmp.eq.s32.totalorder %s32, 0
    %p610 = por %p608, %p609
    %p611 = scmp.ne.s32.totalorder %s603, %s605
    %p612 = scmp.eq.s32.totalorder %s37, 1
    %p613 = por %p611, %p612
    %p614 = scmp.ne.s32.totalorder %s605, %s606
    %p615 = scmp.eq.s32.totalorder %s37, 0
    %p616 = por %p614, %p615
    %p617 = scmp.ne.s32.totalorder %s605, %s606
    %p618 = scmp.eq.s32.totalorder %s38, 1
    %p619 = por %p617, %p618
    %p621 = scmp.ne.s32.totalorder %s606, %s620
    %p622 = scmp.eq.s32.totalorder %s38, 0
    %p623 = por %p621, %p622
    %s625 = sadd.s32 %s624, 1
    %p628 = scmp.eq.s32.totalorder %s32, 1
    %p629 = scmp.ne.s32.totalorder %s624, %s626
    %p630 = scmp.eq.s32.totalorder %s32, 0
    %p631 = por %p629, %p630
    %p632 = scmp.ne.s32.totalorder %s624, %s626
    %p633 = scmp.eq.s32.totalorder %s37, 1
    %p634 = por %p632, %p633
    %p635 = scmp.ne.s32.totalorder %s626, %s627
    %p636 = scmp.eq.s32.totalorder %s37, 0
    %p637 = por %p635, %p636
    %p638 = scmp.ne.s32.totalorder %s626, %s627
    %p639 = scmp.eq.s32.totalorder %s38, 1
    %p640 = por %p638, %p639
    %p642 = scmp.ne.s32.totalorder %s627, %s641
    %p643 = scmp.eq.s32.totalorder %s38, 0
    %p644 = por %p642, %p643
    %p645 = scmp.le.s32.totalorder 1, %s32
    %p646 = scmp.lt.s32.totalorder %s32, 3
    %p647 = pnand %p645, %p646
    %p648 = pneg %p647
    // Predicated region
    $region9: #{bert_classifier_forward.1} parent=5 // pred_check
      _
    $region10: #{bert_classifier_forward.1} parent=5 // pred_check_branch
      %650 = sbr.rel (%p647) target = $region12
    $region11: #{bert_classifier_forward.1} parent=5 // pred_region
      %s651 = ssub.s32 %s32, 1
      // Predicated region
      $region13: #{bert_classifier_forward.1} parent=11 // pred_check
        %p652 = pneg %p53
      $region14: #{bert_classifier_forward.1} parent=11 // pred_check_branch
        %654 = sbr.rel (%p652) target = $region16
      $region15: #{bert_classifier_forward.1} parent=11 // pred_region
        _
      $region16: #{bert_classifier_forward.1} parent=11 // pred_fallthru
        _
      // Predicated region
      $region17: #{bert_classifier_forward.1} parent=11 // pred_check
        %p655 = pneg %p74
      $region18: #{bert_classifier_forward.1} parent=11 // pred_check_branch
        %657 = sbr.rel (%p655) target = $region20
      $region19: #{bert_classifier_forward.1} parent=11 // pred_region
        _
      $region20: #{bert_classifier_forward.1} parent=11 // pred_fallthru
        _
      // Predicated region
      $region21: #{bert_classifier_forward.1} parent=11 // pred_check
        %p658 = pneg %p95
      $region22: #{bert_classifier_forward.1} parent=11 // pred_check_branch
        %660 = sbr.rel (%p658) target = $region24
      $region23: #{bert_classifier_forward.1} parent=11 // pred_region
        _
      $region24: #{bert_classifier_forward.1} parent=11 // pred_fallthru
        _
      // Predicated region
      $region25: #{bert_classifier_forward.1} parent=11 // pred_check
        %p661 = pneg %p116
      $region26: #{bert_classifier_forward.1} parent=11 // pred_check_branch
        %663 = sbr.rel (%p661) target = $region28
      $region27: #{bert_classifier_forward.1} parent=11 // pred_region
        _
      $region28: #{bert_classifier_forward.1} parent=11 // pred_fallthru
        _
      // Predicated region
      $region29: #{bert_classifier_forward.1} parent=11 // pred_check
        %p664 = pneg %p553
      $region30: #{bert_classifier_forward.1} parent=11 // pred_check_branch
        %666 = sbr.rel (%p664) target = $region32
      $region31: #{bert_classifier_forward.1} parent=11 // pred_region
        _
      $region32: #{bert_classifier_forward.1} parent=11 // pred_fallthru
        _
      // Predicated region
      $region33: #{bert_classifier_forward.1} parent=11 // pred_check
        %p667 = pneg %p574
      $region34: #{bert_classifier_forward.1} parent=11 // pred_check_branch
        %669 = sbr.rel (%p667) target = $region36
      $region35: #{bert_classifier_forward.1} parent=11 // pred_region
        _
      $region36: #{bert_classifier_forward.1} parent=11 // pred_fallthru
        _
      // Predicated region
      $region37: #{bert_classifier_forward.1} parent=11 // pred_check
        %p670 = pneg %p595
      $region38: #{bert_classifier_forward.1} parent=11 // pred_check_branch
        %672 = sbr.rel (%p670) target = $region40
      $region39: #{bert_classifier_forward.1} parent=11 // pred_region
        _
      $region40: #{bert_classifier_forward.1} parent=11 // pred_fallthru
        _
      // Predicated region
      $region41: #{bert_classifier_forward.1} parent=11 // pred_check
        %p673 = pneg %p616
      $region42: #{bert_classifier_forward.1} parent=11 // pred_check_branch
        %675 = sbr.rel (%p673) target = $region44
      $region43: #{bert_classifier_forward.1} parent=11 // pred_region
        _
      $region44: #{bert_classifier_forward.1} parent=11 // pred_fallthru
        _
    $region12: #{bert_classifier_forward.1} parent=5 // pred_fallthru
      _
    %p676 = scmp.lt.s32.totalorder %s32, 2
    // Predicated region
    $region45: #{bert_classifier_forward.1} parent=5 // pred_check
      %p677 = pneg %p676
    $region46: #{bert_classifier_forward.1} parent=5 // pred_check_branch
      %679 = sbr.rel (%p677) target = $region48
    $region47: #{bert_classifier_forward.1} parent=5 // pred_region
      // Predicated region
      $region49: #{bert_classifier_forward.1} parent=47 // pred_check
        %p680 = pneg %p136
      $region50: #{bert_classifier_forward.1} parent=47 // pred_check_branch
        %682 = sbr.rel (%p680) target = $region52
      $region51: #{bert_classifier_forward.1} parent=47 // pred_region
        %p683 = scmp.lt.s32.totalorder %s32, 1
        %s684 = scalar_select %p683, %s32, 1
        %s685 = smul.addr %s684, 64
        %s686 = smul.addr %s685, 4
        %s687 = scalar_lea.vmem %s4, %s686
      $region52: #{bert_classifier_forward.1} parent=47 // pred_fallthru
        _
      // Predicated region
      $region53: #{bert_classifier_forward.1} parent=47 // pred_check
        %p688 = pneg %p162
      $region54: #{bert_classifier_forward.1} parent=47 // pred_check_branch
        %690 = sbr.rel (%p688) target = $region56
      $region55: #{bert_classifier_forward.1} parent=47 // pred_region
        %p691 = scmp.lt.s32.totalorder %s32, 1
        %s692 = scalar_select %p691, %s32, 1
        %s693 = smul.addr %s692, 4
        %s694 = scalar_lea.vmem %s5, %s693
      $region56: #{bert_classifier_forward.1} parent=47 // pred_fallthru
        _
      // Predicated region
      $region57: #{bert_classifier_forward.1} parent=47 // pred_check
        %p695 = pneg %p188
      $region58: #{bert_classifier_forward.1} parent=47 // pred_check_branch
        %697 = sbr.rel (%p695) target = $region60
      $region59: #{bert_classifier_forward.1} parent=47 // pred_region
        %p698 = scmp.lt.s32.totalorder %s32, 1
        %s699 = scalar_select %p698, %s32, 1
        %s700 = smul.addr %s699, 64
        %s701 = smul.addr %s700, 4
        %s702 = scalar_lea.vmem %s6, %s701
      $region60: #{bert_classifier_forward.1} parent=47 // pred_fallthru
        _
      // Predicated region
      $region61: #{bert_classifier_forward.1} parent=47 // pred_check
        %p703 = pneg %p214
      $region62: #{bert_classifier_forward.1} parent=47 // pred_check_branch
        %705 = sbr.rel (%p703) target = $region64
      $region63: #{bert_classifier_forward.1} parent=47 // pred_region
        %p706 = scmp.lt.s32.totalorder %s32, 1
        %s707 = scalar_select %p706, %s32, 1
        %s708 = smul.addr %s707, 4
        %s709 = scalar_lea.vmem %s7, %s708
      $region64: #{bert_classifier_forward.1} parent=47 // pred_fallthru
        _
      // Predicated region
      $region65: #{bert_classifier_forward.1} parent=47 // pred_check
        %p710 = pneg %p240
      $region66: #{bert_classifier_forward.1} parent=47 // pred_check_branch
        %712 = sbr.rel (%p710) target = $region68
      $region67: #{bert_classifier_forward.1} parent=47 // pred_region
        %p713 = scmp.lt.s32.totalorder %s32, 1
        %s714 = scalar_select %p713, %s32, 1
        %s715 = smul.addr %s714, 64
        %s716 = smul.addr %s715, 4
        %s717 = scalar_lea.vmem %s8, %s716
      $region68: #{bert_classifier_forward.1} parent=47 // pred_fallthru
        _
      // Predicated region
      $region69: #{bert_classifier_forward.1} parent=47 // pred_check
        %p718 = pneg %p266
      $region70: #{bert_classifier_forward.1} parent=47 // pred_check_branch
        %720 = sbr.rel (%p718) target = $region72
      $region71: #{bert_classifier_forward.1} parent=47 // pred_region
        %p721 = scmp.lt.s32.totalorder %s32, 1
        %s722 = scalar_select %p721, %s32, 1
        %s723 = smul.addr %s722, 4
        %s724 = scalar_lea.vmem %s9, %s723
      $region72: #{bert_classifier_forward.1} parent=47 // pred_fallthru
        _
      // Predicated region
      $region73: #{bert_classifier_forward.1} parent=47 // pred_check
        %p725 = pneg %p292
      $region74: #{bert_classifier_forward.1} parent=47 // pred_check_branch
        %727 = sbr.rel (%p725) target = $region76
      $region75: #{bert_classifier_forward.1} parent=47 // pred_region
        %p728 = scmp.lt.s32.totalorder %s32, 1
        %s729 = scalar_select %p728, %s32, 1
        %s730 = smul.addr %s729, 16
        %s731 = smul.addr %s730, 4
        %s732 = scalar_lea.vmem %s10, %s731
      $region76: #{bert_classifier_forward.1} parent=47 // pred_fallthru
        _
      // Predicated region
      $region77: #{bert_classifier_forward.1} parent=47 // pred_check
        %p733 = pneg %p318
      $region78: #{bert_classifier_forward.1} parent=47 // pred_check_branch
        %735 = sbr.rel (%p733) target = $region80
      $region79: #{bert_classifier_forward.1} parent=47 // pred_region
        %p736 = scmp.lt.s32.totalorder %s32, 1
        %s737 = scalar_select %p736, %s32, 1
        %s738 = scalar_lea.vmem %s11, %s737
      $region80: #{bert_classifier_forward.1} parent=47 // pred_fallthru
        _
      // Predicated region
      $region81: #{bert_classifier_forward.1} parent=47 // pred_check
        %p739 = pneg %p344
      $region82: #{bert_classifier_forward.1} parent=47 // pred_check_branch
        %741 = sbr.rel (%p739) target = $region84
      $region83: #{bert_classifier_forward.1} parent=47 // pred_region
        %p742 = scmp.lt.s32.totalorder %s32, 1
        %s743 = scalar_select %p742, %s32, 1
        %s744 = scalar_lea.vmem %s12, %s743
      $region84: #{bert_classifier_forward.1} parent=47 // pred_fallthru
        _
      // Predicated region
      $region85: #{bert_classifier_forward.1} parent=47 // pred_check
        %p745 = pneg %p370
      $region86: #{bert_classifier_forward.1} parent=47 // pred_check_branch
        %747 = sbr.rel (%p745) target = $region88
      $region87: #{bert_classifier_forward.1} parent=47 // pred_region
        %p748 = scmp.lt.s32.totalorder %s32, 1
        %s749 = scalar_select %p748, %s32, 1
        %s750 = scalar_lea.vmem %s13, %s749
      $region88: #{bert_classifier_forward.1} parent=47 // pred_fallthru
        _
      // Predicated region
      $region89: #{bert_classifier_forward.1} parent=47 // pred_check
        %p751 = pneg %p396
      $region90: #{bert_classifier_forward.1} parent=47 // pred_check_branch
        %753 = sbr.rel (%p751) target = $region92
      $region91: #{bert_classifier_forward.1} parent=47 // pred_region
        %p754 = scmp.lt.s32.totalorder %s32, 1
        %s755 = scalar_select %p754, %s32, 1
        %s756 = smul.addr %s755, 32
        %s757 = smul.addr %s756, 4
        %s758 = scalar_lea.vmem %s14, %s757
      $region92: #{bert_classifier_forward.1} parent=47 // pred_fallthru
        _
      // Predicated region
      $region93: #{bert_classifier_forward.1} parent=47 // pred_check
        %p759 = pneg %p422
      $region94: #{bert_classifier_forward.1} parent=47 // pred_check_branch
        %761 = sbr.rel (%p759) target = $region96
      $region95: #{bert_classifier_forward.1} parent=47 // pred_region
        %p762 = scmp.lt.s32.totalorder %s32, 1
        %s763 = scalar_select %p762, %s32, 1
        %s764 = smul.addr %s763, 2
        %s765 = scalar_lea.vmem %s15, %s764
      $region96: #{bert_classifier_forward.1} parent=47 // pred_fallthru
        _
      // Predicated region
      $region97: #{bert_classifier_forward.1} parent=47 // pred_check
        %p766 = pneg %p448
      $region98: #{bert_classifier_forward.1} parent=47 // pred_check_branch
        %768 = sbr.rel (%p766) target = $region100
      $region99: #{bert_classifier_forward.1} parent=47 // pred_region
        %p769 = scmp.lt.s32.totalorder %s32, 1
        %s770 = scalar_select %p769, %s32, 1
        %s771 = smul.addr %s770, 32
        %s772 = smul.addr %s771, 4
        %s773 = scalar_lea.vmem %s16, %s772
      $region100: #{bert_classifier_forward.1} parent=47 // pred_fallthru
        _
      // Predicated region
      $region101: #{bert_classifier_forward.1} parent=47 // pred_check
        %p774 = pneg %p474
      $region102: #{bert_classifier_forward.1} parent=47 // pred_check_branch
        %776 = sbr.rel (%p774) target = $region104
      $region103: #{bert_classifier_forward.1} parent=47 // pred_region
        %p777 = scmp.lt.s32.totalorder %s32, 1
        %s778 = scalar_select %p777, %s32, 1
        %s779 = scalar_lea.vmem %s17, %s778
      $region104: #{bert_classifier_forward.1} parent=47 // pred_fallthru
        _
      // Predicated region
      $region105: #{bert_classifier_forward.1} parent=47 // pred_check
        %p780 = pneg %p500
      $region106: #{bert_classifier_forward.1} parent=47 // pred_check_branch
        %782 = sbr.rel (%p780) target = $region108
      $region107: #{bert_classifier_forward.1} parent=47 // pred_region
        %p783 = scmp.lt.s32.totalorder %s32, 1
        %s784 = scalar_select %p783, %s32, 1
        %s785 = scalar_lea.vmem %s18, %s784
      $region108: #{bert_classifier_forward.1} parent=47 // pred_fallthru
        _
      // Predicated region
      $region109: #{bert_classifier_forward.1} parent=47 // pred_check
        %p786 = pneg %p526
      $region110: #{bert_classifier_forward.1} parent=47 // pred_check_branch
        %788 = sbr.rel (%p786) target = $region112
      $region111: #{bert_classifier_forward.1} parent=47 // pred_region
        %p789 = scmp.lt.s32.totalorder %s32, 1
        %s790 = scalar_select %p789, %s32, 1
        %s791 = scalar_lea.vmem %s19, %s790
      $region112: #{bert_classifier_forward.1} parent=47 // pred_fallthru
        _
    $region48: #{bert_classifier_forward.1} parent=5 // pred_fallthru
      _
    %p792 = scmp.le.s32.totalorder 1, %s32
    %p793 = scmp.lt.s32.totalorder %s32, 3
    %p794 = pnand %p792, %p793
    %p795 = pneg %p794
    // Predicated region
    $region113: #{bert_classifier_forward.1} parent=5 // pred_check
      _
    $region114: #{bert_classifier_forward.1} parent=5 // pred_check_branch
      %797 = sbr.rel (%p794) target = $region116
    $region115: #{bert_classifier_forward.1} parent=5 // pred_region
      %s798 = ssub.s32 %s32, 1
      %p799 = pneg %p53
      %p800 = pneg %p50
      %p801 = pneg %p74
      %p802 = pneg %p71
      %p803 = pneg %p95
      %p804 = pneg %p92
      %p805 = pneg %p116
      %p806 = pneg %p113
      %p807 = scmp.lt.s32.totalorder %s37, 1
      %s808 = scalar_select %p807, %s37, 1
      %s809 = smul.addr %s808, 64
      %s810 = smul.addr %s809, 4
      %s811 = scalar_lea.vmem %s4, %s810
      %p812 = pneg %p142
      %p813 = pneg %p139
      %p814 = scmp.lt.s32.totalorder %s37, 1
      %s815 = scalar_select %p814, %s37, 1
      %s816 = smul.addr %s815, 4
      %s817 = scalar_lea.vmem %s5, %s816
      %p818 = pneg %p168
      %p819 = pneg %p165
      %p820 = scmp.lt.s32.totalorder %s37, 1
      %s821 = scalar_select %p820, %s37, 1
      %s822 = smul.addr %s821, 64
      %s823 = smul.addr %s822, 4
      %s824 = scalar_lea.vmem %s6, %s823
      %p825 = pneg %p194
      %p826 = pneg %p191
      %p827 = scmp.lt.s32.totalorder %s37, 1
      %s828 = scalar_select %p827, %s37, 1
      %s829 = smul.addr %s828, 4
      %s830 = scalar_lea.vmem %s7, %s829
      %p831 = pneg %p220
      %p832 = pneg %p217
      %p833 = scmp.lt.s32.totalorder %s37, 1
      %s834 = scalar_select %p833, %s37, 1
      %s835 = smul.addr %s834, 64
      %s836 = smul.addr %s835, 4
      %s837 = scalar_lea.vmem %s8, %s836
      %p838 = pneg %p246
      %p839 = pneg %p243
      %p840 = scmp.lt.s32.totalorder %s37, 1
      %s841 = scalar_select %p840, %s37, 1
      %s842 = smul.addr %s841, 4
      %s843 = scalar_lea.vmem %s9, %s842
      %p844 = pneg %p272
      %p845 = pneg %p269
      %p846 = scmp.lt.s32.totalorder %s37, 1
      %s847 = scalar_select %p846, %s37, 1
      %s848 = smul.addr %s847, 16
      %s849 = smul.addr %s848, 4
      %s850 = scalar_lea.vmem %s10, %s849
      %p851 = pneg %p298
      %p852 = pneg %p295
      %p853 = scmp.lt.s32.totalorder %s37, 1
      %s854 = scalar_select %p853, %s37, 1
      %s855 = scalar_lea.vmem %s11, %s854
      %p856 = pneg %p324
      %p857 = pneg %p321
      %p858 = scmp.lt.s32.totalorder %s37, 1
      %s859 = scalar_select %p858, %s37, 1
      %s860 = scalar_lea.vmem %s12, %s859
      %p861 = pneg %p350
      %p862 = pneg %p347
      %p863 = scmp.lt.s32.totalorder %s37, 1
      %s864 = scalar_select %p863, %s37, 1
      %s865 = scalar_lea.vmem %s13, %s864
      %p866 = pneg %p376
      %p867 = pneg %p373
      %p868 = scmp.lt.s32.totalorder %s37, 1
      %s869 = scalar_select %p868, %s37, 1
      %s870 = smul.addr %s869, 32
      %s871 = smul.addr %s870, 4
      %s872 = scalar_lea.vmem %s14, %s871
      %p873 = pneg %p402
      %p874 = pneg %p399
      %p875 = scmp.lt.s32.totalorder %s37, 1
      %s876 = scalar_select %p875, %s37, 1
      %s877 = smul.addr %s876, 2
      %s878 = scalar_lea.vmem %s15, %s877
      %p879 = pneg %p428
      %p880 = pneg %p425
      %p881 = scmp.lt.s32.totalorder %s37, 1
      %s882 = scalar_select %p881, %s37, 1
      %s883 = smul.addr %s882, 32
      %s884 = smul.addr %s883, 4
      %s885 = scalar_lea.vmem %s16, %s884
      %p886 = pneg %p454
      %p887 = pneg %p451
      %p888 = scmp.lt.s32.totalorder %s37, 1
      %s889 = scalar_select %p888, %s37, 1
      %s890 = scalar_lea.vmem %s17, %s889
      %p891 = pneg %p480
      %p892 = pneg %p477
      %p893 = scmp.lt.s32.totalorder %s37, 1
      %s894 = scalar_select %p893, %s37, 1
      %s895 = scalar_lea.vmem %s18, %s894
      %p896 = pneg %p506
      %p897 = pneg %p503
      %p898 = scmp.lt.s32.totalorder %s37, 1
      %s899 = scalar_select %p898, %s37, 1
      %s900 = scalar_lea.vmem %s19, %s899
      %p901 = pneg %p532
      %p902 = pneg %p529
      %p903 = pneg %p553
      %p904 = pneg %p550
      %p905 = pneg %p574
      %p906 = pneg %p571
      %p907 = pneg %p595
      %p908 = pneg %p592
      %p909 = pneg %p616
      %p910 = pneg %p613
      %p911 = pneg %p637
      %p912 = pneg %p634
      %p913 = scmp.lt.s32.totalorder %s37, 1
      %s914 = scalar_select %p913, %s37, 1
      %s915 = smul.addr %s914, 64
      %s916 = smul.addr %s915, 4
      %s917 = scalar_lea.vmem %s4, %s916
      %p918 = scmp.lt.s32.totalorder %s37, 1
      %s919 = scalar_select %p918, %s37, 1
      %s920 = smul.addr %s919, 4
      %s921 = scalar_lea.vmem %s5, %s920
      %p922 = scmp.lt.s32.totalorder %s37, 1
      %s923 = scalar_select %p922, %s37, 1
      %s924 = smul.addr %s923, 64
      %s925 = smul.addr %s924, 4
      %s926 = scalar_lea.vmem %s6, %s925
      %p927 = scmp.lt.s32.totalorder %s37, 1
      %s928 = scalar_select %p927, %s37, 1
      %s929 = smul.addr %s928, 4
      %s930 = scalar_lea.vmem %s7, %s929
      %p931 = scmp.lt.s32.totalorder %s37, 1
      %s932 = scalar_select %p931, %s37, 1
      %s933 = smul.addr %s932, 64
      %s934 = smul.addr %s933, 4
      %s935 = scalar_lea.vmem %s8, %s934
      %p936 = scmp.lt.s32.totalorder %s37, 1
      %s937 = scalar_select %p936, %s37, 1
      %s938 = smul.addr %s937, 4
      %s939 = scalar_lea.vmem %s9, %s938
      %p940 = scmp.lt.s32.totalorder %s37, 1
      %s941 = scalar_select %p940, %s37, 1
      %s942 = smul.addr %s941, 16
      %s943 = smul.addr %s942, 4
      %s944 = scalar_lea.vmem %s10, %s943
      %p945 = scmp.lt.s32.totalorder %s37, 1
      %s946 = scalar_select %p945, %s37, 1
      %s947 = scalar_lea.vmem %s11, %s946
      %p948 = scmp.lt.s32.totalorder %s37, 1
      %s949 = scalar_select %p948, %s37, 1
      %s950 = scalar_lea.vmem %s12, %s949
      %p951 = scmp.lt.s32.totalorder %s37, 1
      %s952 = scalar_select %p951, %s37, 1
      %s953 = scalar_lea.vmem %s13, %s952
      %p954 = scmp.lt.s32.totalorder %s37, 1
      %s955 = scalar_select %p954, %s37, 1
      %s956 = smul.addr %s955, 32
      %s957 = smul.addr %s956, 4
      %s958 = scalar_lea.vmem %s14, %s957
      %p959 = scmp.lt.s32.totalorder %s37, 1
      %s960 = scalar_select %p959, %s37, 1
      %s961 = smul.addr %s960, 2
      %s962 = scalar_lea.vmem %s15, %s961
      %p963 = scmp.lt.s32.totalorder %s37, 1
      %s964 = scalar_select %p963, %s37, 1
      %s965 = smul.addr %s964, 32
      %s966 = smul.addr %s965, 4
      %s967 = scalar_lea.vmem %s16, %s966
      %p968 = scmp.lt.s32.totalorder %s37, 1
      %s969 = scalar_select %p968, %s37, 1
      %s970 = scalar_lea.vmem %s17, %s969
      %p971 = scmp.lt.s32.totalorder %s37, 1
      %s972 = scalar_select %p971, %s37, 1
      %s973 = scalar_lea.vmem %s18, %s972
      %p974 = scmp.lt.s32.totalorder %s37, 1
      %s975 = scalar_select %p974, %s37, 1
      %s976 = scalar_lea.vmem %s19, %s975
      %p978 = scmp.eq.s32.totalorder %s37, 0
      // Predicated region
      $region117: #{bert_classifier_forward.1} parent=115 // pred_check
        %p979 = pneg %p978
      $region118: #{bert_classifier_forward.1} parent=115 // pred_check_branch
        %981 = sbr.rel (%p979) target = $region120
      $region119: #{bert_classifier_forward.1} parent=115 // pred_region
        %v982 = vld [vmem:[%s0] sm:$0xff]
        %v983 = vld [vmem:[%s0 + $0x8] sm:$0xff]
        %v984 = vld [vmem:[%s2] sm:$0x1]
        %v985 = vld [vmem:[%s3] sm:$0x1]
        %986 = vadd.xlane.f32.xlu0 %v982
        %v987 = vpop.xlane.xlu0 %986
        %988 = vadd.xlane.f32.xlu0 %v983
        %v989 = vpop.xlane.xlu0 %988
        %v990 = vrcp.pop 128.0
        %v991 = vmul.f32 %v987, %v990
        %v992 = vmul.f32 %v989, %v990
        %v993 = vsub.f32 %v982, %v991
        %v994 = vsub.f32 %v983, %v992
        %v995 = vmul.f32 %v993, %v993
        %v996 = vmul.f32 %v994, %v994
        %997 = vadd.xlane.f32.xlu0 %v995
        %v998 = vpop.xlane.xlu0 %997
        %999 = vadd.xlane.f32.xlu0 %v996
        %v1000 = vpop.xlane.xlu0 %999
        %v1001 = vmul.f32 %v998, %v990
        %v1002 = vmul.f32 %v1000, %v990
        %v1003 = vadd.f32 %v1001, 1e-12
        %v1004 = vadd.f32 %v1002, 1e-12
        %v1005 = vrsqrt.pop %v1003
        %v1006 = vrsqrt.pop %v1004
        %v1007 = vmul.f32 %v993, %v1005
        %v1008 = vmul.f32 %v994, %v1006
        %v1010 = vlaneseq
        %v1011 = vshrl.u32 %v1010, 7
        %v1012 = vsub.s32 0, %v1011
        %v1013 = vrot.slane %v984, %v1012
        %v1015 = vmul.f32 %v1007, %v1013
        %v1016 = vmul.f32 %v1008, %v1013
        %v1018 = vlaneseq
        %v1019 = vshrl.u32 %v1018, 7
        %v1020 = vsub.s32 0, %v1019
        %v1021 = vrot.slane %v985, %v1020
        %v1023 = vadd.f32 %v1015, %v1021
        %v1024 = vadd.f32 %v1016, %v1021
        %1025 = vst [vmem:[#allocation2] sm:$0xff] %v1023
        %1026 = vst [vmem:[#allocation2 + $0x8] sm:$0xff] %v1024
      $region120: #{bert_classifier_forward.1} parent=115 // pred_fallthru
        _
      %v1027 = vld [vmem:[#allocation2] sm:$0xff]
      %v1028 = vld [vmem:[#allocation2 + $0x8] sm:$0xff]
      %v1029 = vpack.c.bf16 %v1028, %v1027
      %v1030 = vld [vmem:[%s1] sm:$0x1]
      %v1031 = vld [vmem:[%s1 + $0x1] sm:$0x1]
      %v1032 = vld [vmem:[%s917] sm:$0xf]
      %v1033 = vld [vmem:[%s917 + $0x4] sm:$0xf]
      %v1034 = vld [vmem:[%s917 + $0x8] sm:$0xf]
      %v1035 = vld [vmem:[%s917 + $0xc] sm:$0xf]
      %v1036 = vld [vmem:[%s917 + $0x10] sm:$0xf]
      %v1037 = vld [vmem:[%s917 + $0x14] sm:$0xf]
      %v1038 = vld [vmem:[%s917 + $0x18] sm:$0xf]
      %v1039 = vld [vmem:[%s917 + $0x1c] sm:$0xf]
      %v1040 = vld [vmem:[%s917 + $0x20] sm:$0xf]
      %v1041 = vld [vmem:[%s917 + $0x24] sm:$0xf]
      %v1042 = vld [vmem:[%s917 + $0x28] sm:$0xf]
      %v1043 = vld [vmem:[%s917 + $0x2c] sm:$0xf]
      %v1044 = vld [vmem:[%s917 + $0x30] sm:$0xf]
      %v1045 = vld [vmem:[%s917 + $0x34] sm:$0xf]
      %v1046 = vld [vmem:[%s917 + $0x38] sm:$0xf]
      %v1047 = vld [vmem:[%s917 + $0x3c] sm:$0xf]
      %v1048 = vld [vmem:[%s921] sm:$0x1]
      %v1050 = vlaneseq
      %v1051 = vshrl.u32 %v1050, 7
      %v1052 = vsub.s32 0, %v1051
      %v1053 = vrot.slane %v1048, %v1052
      %v1071 = vunpack.c.l.b16 %v1032
      %v1072 = vunpack.c.l.b16 %v1033
      %v1073 = vunpack.c.l.b16 %v1034
      %v1074 = vunpack.c.l.b16 %v1035
      %v1075 = vunpack.c.l.b16 %v1036
      %v1076 = vunpack.c.l.b16 %v1037
      %v1077 = vunpack.c.l.b16 %v1038
      %v1078 = vunpack.c.l.b16 %v1039
      %v1079 = vunpack.c.l.b16 %v1040
      %v1080 = vunpack.c.l.b16 %v1041
      %v1081 = vunpack.c.l.b16 %v1042
      %v1082 = vunpack.c.l.b16 %v1043
      %v1083 = vunpack.c.l.b16 %v1044
      %v1084 = vunpack.c.l.b16 %v1045
      %v1085 = vunpack.c.l.b16 %v1046
      %v1086 = vunpack.c.l.b16 %v1047
      %v1087 = vpack.c.b16 %v1072, %v1071
      %v1088 = vpack.c.b16 %v1074, %v1073
      %v1089 = vpack.c.b16 %v1076, %v1075
      %v1090 = vpack.c.b16 %v1078, %v1077
      %v1091 = vpack.c.b16 %v1080, %v1079
      %v1092 = vpack.c.b16 %v1082, %v1081
      %v1093 = vpack.c.b16 %v1084, %v1083
      %v1094 = vpack.c.b16 %v1086, %v1085
      %1103 = vmatprep.subr.bf16.mxu0 0
      %1104 = vmatpush1.bf16.msra.mxu0 %v1087
      %1105 = vmatprep.subr.bf16.mxu0 0
      %1106 = vmatpush1.bf16.msra.mxu0 %v1088
      %1107 = vmatprep.subr.bf16.mxu0 0
      %1108 = vmatpush1.bf16.msra.mxu0 %v1089
      %1109 = vmatprep.subr.bf16.mxu0 0
      %1110 = vmatpush1.bf16.msra.mxu0 %v1090
      %1111 = vmatprep.subr.bf16.mxu0 0
      %1112 = vmatpush1.bf16.msra.mxu0 %v1091
      %1113 = vmatprep.subr.bf16.mxu0 0
      %1114 = vmatpush1.bf16.msra.mxu0 %v1092
      %1115 = vmatprep.subr.bf16.mxu0 0
      %1116 = vmatpush1.bf16.msra.mxu0 %v1093
      %1117 = vmatprep.subr.bf16.mxu0 0
      %1118 = vmatpush1.bf16.msra.mxu0 %v1094
      %1119 = vmatprep.subr.bf16.mxu0 0
      %1120 = vmatpush1.bf16.msra.mxu0 0
      %1121 = vmatprep.subr.bf16.mxu0 0
      %1122 = vmatpush1.bf16.msra.mxu0 0
      %1123 = vmatprep.subr.bf16.mxu0 0
      %1124 = vmatpush1.bf16.msra.mxu0 0
      %1125 = vmatprep.subr.bf16.mxu0 0
      %1126 = vmatpush1.bf16.msra.mxu0 0
      %1127 = vmatprep.subr.bf16.mxu0 0
      %1128 = vmatpush1.bf16.msra.mxu0 0
      %1129 = vmatprep.subr.bf16.mxu0 0
      %1130 = vmatpush1.bf16.msra.mxu0 0
      %1131 = vmatprep.subr.bf16.mxu0 0
      %1132 = vmatpush1.bf16.msra.mxu0 0
      %1133 = vmatprep.subr.bf16.mxu0 0
      %1134 = vmatpush1.bf16.msra.mxu0 0
      %1135 = vmatprep.mubr.bf16.mxu0 0
      %1136 = vmatmul.mubr.bf16.gmra.mrb[0].mxu0 %v1029
      %v1137 = vpop.f32.mrb[0].mxu0
      %v1138 = vadd.f32 %v1053, %v1137
      %v1139 = vpop.f32.mrb[0].mxu0
      %v1140 = vpop.f32.mrb[0].mxu0
      %v1141 = vadd.f32 %v1053, %v1140
      %v1142 = vpop.f32.mrb[0].mxu0
      %1143 = vdwg.mxu0
      %v1144 = vld [vmem:[%s926] sm:$0xf]
      %v1145 = vld [vmem:[%s926 + $0x4] sm:$0xf]
      %v1146 = vld [vmem:[%s926 + $0x8] sm:$0xf]
      %v1147 = vld [vmem:[%s926 + $0xc] sm:$0xf]
      %v1148 = vld [vmem:[%s926 + $0x10] sm:$0xf]
      %v1149 = vld [vmem:[%s926 + $0x14] sm:$0xf]
      %v1150 = vld [vmem:[%s926 + $0x18] sm:$0xf]
      %v1151 = vld [vmem:[%s926 + $0x1c] sm:$0xf]
      %v1152 = vld [vmem:[%s926 + $0x20] sm:$0xf]
      %v1153 = vld [vmem:[%s926 + $0x24] sm:$0xf]
      %v1154 = vld [vmem:[%s926 + $0x28] sm:$0xf]
      %v1155 = vld [vmem:[%s926 + $0x2c] sm:$0xf]
      %v1156 = vld [vmem:[%s926 + $0x30] sm:$0xf]
      %v1157 = vld [vmem:[%s926 + $0x34] sm:$0xf]
      %v1158 = vld [vmem:[%s926 + $0x38] sm:$0xf]
      %v1159 = vld [vmem:[%s926 + $0x3c] sm:$0xf]
      %v1160 = vld [vmem:[%s930] sm:$0x1]
      %v1162 = vlaneseq
      %v1163 = vshrl.u32 %v1162, 7
      %v1164 = vsub.s32 0, %v1163
      %v1165 = vrot.slane %v1160, %v1164
      %v1183 = vunpack.c.l.b16 %v1144
      %v1184 = vunpack.c.l.b16 %v1145
      %v1185 = vunpack.c.l.b16 %v1146
      %v1186 = vunpack.c.l.b16 %v1147
      %v1187 = vunpack.c.l.b16 %v1148
      %v1188 = vunpack.c.l.b16 %v1149
      %v1189 = vunpack.c.l.b16 %v1150
      %v1190 = vunpack.c.l.b16 %v1151
      %v1191 = vunpack.c.l.b16 %v1152
      %v1192 = vunpack.c.l.b16 %v1153
      %v1193 = vunpack.c.l.b16 %v1154
      %v1194 = vunpack.c.l.b16 %v1155
      %v1195 = vunpack.c.l.b16 %v1156
      %v1196 = vunpack.c.l.b16 %v1157
      %v1197 = vunpack.c.l.b16 %v1158
      %v1198 = vunpack.c.l.b16 %v1159
      %v1199 = vpack.c.b16 %v1184, %v1183
      %v1200 = vpack.c.b16 %v1186, %v1185
      %v1201 = vpack.c.b16 %v1188, %v1187
      %v1202 = vpack.c.b16 %v1190, %v1189
      %v1203 = vpack.c.b16 %v1192, %v1191
      %v1204 = vpack.c.b16 %v1194, %v1193
      %v1205 = vpack.c.b16 %v1196, %v1195
      %v1206 = vpack.c.b16 %v1198, %v1197
      %1215 = vmatprep.subr.bf16.mxu0 0
      %1216 = vmatpush1.bf16.msra.mxu0 %v1199
      %1217 = vmatprep.subr.bf16.mxu0 0
      %1218 = vmatpush1.bf16.msra.mxu0 %v1200
      %1219 = vmatprep.subr.bf16.mxu0 0
      %1220 = vmatpush1.bf16.msra.mxu0 %v1201
      %1221 = vmatprep.subr.bf16.mxu0 0
      %1222 = vmatpush1.bf16.msra.mxu0 %v1202
      %1223 = vmatprep.subr.bf16.mxu0 0
      %1224 = vmatpush1.bf16.msra.mxu0 %v1203
      %1225 = vmatprep.subr.bf16.mxu0 0
      %1226 = vmatpush1.bf16.msra.mxu0 %v1204
      %1227 = vmatprep.subr.bf16.mxu0 0
      %1228 = vmatpush1.bf16.msra.mxu0 %v1205
      %1229 = vmatprep.subr.bf16.mxu0 0
      %1230 = vmatpush1.bf16.msra.mxu0 %v1206
      %1231 = vmatprep.subr.bf16.mxu0 0
      %1232 = vmatpush1.bf16.msra.mxu0 0
      %1233 = vmatprep.subr.bf16.mxu0 0
      %1234 = vmatpush1.bf16.msra.mxu0 0
      %1235 = vmatprep.subr.bf16.mxu0 0
      %1236 = vmatpush1.bf16.msra.mxu0 0
      %1237 = vmatprep.subr.bf16.mxu0 0
      %1238 = vmatpush1.bf16.msra.mxu0 0
      %1239 = vmatprep.subr.bf16.mxu0 0
      %1240 = vmatpush1.bf16.msra.mxu0 0
      %1241 = vmatprep.subr.bf16.mxu0 0
      %1242 = vmatpush1.bf16.msra.mxu0 0
      %1243 = vmatprep.subr.bf16.mxu0 0
      %1244 = vmatpush1.bf16.msra.mxu0 0
      %1245 = vmatprep.subr.bf16.mxu0 0
      %1246 = vmatpush1.bf16.msra.mxu0 0
      %1247 = vmatprep.mubr.bf16.mxu0 0
      %1248 = vmatmul.mubr.bf16.gmra.mrb[0].mxu0 %v1029
      %v1249 = vpop.f32.mrb[0].mxu0
      %v1250 = vadd.f32 %v1165, %v1249
      %v1251 = vpop.f32.mrb[0].mxu0
      %v1252 = vpop.f32.mrb[0].mxu0
      %v1253 = vadd.f32 %v1165, %v1252
      %v1254 = vpop.f32.mrb[0].mxu0
      %1255 = vdwg.mxu0
      %v1256 = vld [vmem:[%s935] sm:$0xf]
      %v1257 = vld [vmem:[%s935 + $0x4] sm:$0xf]
      %v1258 = vld [vmem:[%s935 + $0x8] sm:$0xf]
      %v1259 = vld [vmem:[%s935 + $0xc] sm:$0xf]
      %v1260 = vld [vmem:[%s935 + $0x10] sm:$0xf]
      %v1261 = vld [vmem:[%s935 + $0x14] sm:$0xf]
      %v1262 = vld [vmem:[%s935 + $0x18] sm:$0xf]
      %v1263 = vld [vmem:[%s935 + $0x1c] sm:$0xf]
      %v1264 = vld [vmem:[%s935 + $0x20] sm:$0xf]
      %v1265 = vld [vmem:[%s935 + $0x24] sm:$0xf]
      %v1266 = vld [vmem:[%s935 + $0x28] sm:$0xf]
      %v1267 = vld [vmem:[%s935 + $0x2c] sm:$0xf]
      %v1268 = vld [vmem:[%s935 + $0x30] sm:$0xf]
      %v1269 = vld [vmem:[%s935 + $0x34] sm:$0xf]
      %v1270 = vld [vmem:[%s935 + $0x38] sm:$0xf]
      %v1271 = vld [vmem:[%s935 + $0x3c] sm:$0xf]
      %v1272 = vld [vmem:[%s939] sm:$0x1]
      %v1274 = vlaneseq
      %v1275 = vshrl.u32 %v1274, 7
      %v1276 = vsub.s32 0, %v1275
      %v1277 = vrot.slane %v1272, %v1276
      %v1295 = vunpack.c.l.b16 %v1256
      %v1296 = vunpack.c.l.b16 %v1257
      %v1297 = vunpack.c.l.b16 %v1258
      %v1298 = vunpack.c.l.b16 %v1259
      %v1299 = vunpack.c.l.b16 %v1260
      %v1300 = vunpack.c.l.b16 %v1261
      %v1301 = vunpack.c.l.b16 %v1262
      %v1302 = vunpack.c.l.b16 %v1263
      %v1303 = vunpack.c.l.b16 %v1264
      %v1304 = vunpack.c.l.b16 %v1265
      %v1305 = vunpack.c.l.b16 %v1266
      %v1306 = vunpack.c.l.b16 %v1267
      %v1307 = vunpack.c.l.b16 %v1268
      %v1308 = vunpack.c.l.b16 %v1269
      %v1309 = vunpack.c.l.b16 %v1270
      %v1310 = vunpack.c.l.b16 %v1271
      %v1311 = vpack.c.b16 %v1296, %v1295
      %v1312 = vpack.c.b16 %v1298, %v1297
      %v1313 = vpack.c.b16 %v1300, %v1299
      %v1314 = vpack.c.b16 %v1302, %v1301
      %v1315 = vpack.c.b16 %v1304, %v1303
      %v1316 = vpack.c.b16 %v1306, %v1305
      %v1317 = vpack.c.b16 %v1308, %v1307
      %v1318 = vpack.c.b16 %v1310, %v1309
      %1327 = vmatprep.subr.bf16.mxu0 0
      %1328 = vmatpush1.bf16.msra.mxu0 %v1311
      %1329 = vmatprep.subr.bf16.mxu0 0
      %1330 = vmatpush1.bf16.msra.mxu0 %v1312
      %1331 = vmatprep.subr.bf16.mxu0 0
      %1332 = vmatpush1.bf16.msra.mxu0 %v1313
      %1333 = vmatprep.subr.bf16.mxu0 0
      %1334 = vmatpush1.bf16.msra.mxu0 %v1314
      %1335 = vmatprep.subr.bf16.mxu0 0
      %1336 = vmatpush1.bf16.msra.mxu0 %v1315
      %1337 = vmatprep.subr.bf16.mxu0 0
      %1338 = vmatpush1.bf16.msra.mxu0 %v1316
      %1339 = vmatprep.subr.bf16.mxu0 0
      %1340 = vmatpush1.bf16.msra.mxu0 %v1317
      %1341 = vmatprep.subr.bf16.mxu0 0
      %1342 = vmatpush1.bf16.msra.mxu0 %v1318
      %1343 = vmatprep.subr.bf16.mxu0 0
      %1344 = vmatpush1.bf16.msra.mxu0 0
      %1345 = vmatprep.subr.bf16.mxu0 0
      %1346 = vmatpush1.bf16.msra.mxu0 0
      %1347 = vmatprep.subr.bf16.mxu0 0
      %1348 = vmatpush1.bf16.msra.mxu0 0
      %1349 = vmatprep.subr.bf16.mxu0 0
      %1350 = vmatpush1.bf16.msra.mxu0 0
      %1351 = vmatprep.subr.bf16.mxu0 0
      %1352 = vmatpush1.bf16.msra.mxu0 0
      %1353 = vmatprep.subr.bf16.mxu0 0
      %1354 = vmatpush1.bf16.msra.mxu0 0
      %1355 = vmatprep.subr.bf16.mxu0 0
      %1356 = vmatpush1.bf16.msra.mxu0 0
      %1357 = vmatprep.subr.bf16.mxu0 0
      %1358 = vmatpush1.bf16.msra.mxu0 0
      %1359 = vmatprep.mubr.bf16.mxu0 0
      %1360 = vmatmul.mubr.bf16.gmra.mrb[0].mxu0 %v1029
      %v1361 = vpop.f32.mrb[0].mxu0
      %v1362 = vadd.f32 %v1277, %v1361
      %v1363 = vpop.f32.mrb[0].mxu0
      %v1364 = vpop.f32.mrb[0].mxu0
      %v1365 = vadd.f32 %v1277, %v1364
      %v1366 = vpop.f32.mrb[0].mxu0
      %1367 = vdwg.mxu0
      %v1368 = vpack.c.bf16 %v1138, %v1138
      %v1369 = vpack.c.bf16 %v1141, %v1141
      %v1370 = vpack.c.bf16 %v1250, %v1250
      %v1371 = vpack.c.bf16 %v1253, %v1253
      %v1372 = vpack.c.bf16 %v1362, %v1362
      %v1373 = vpack.c.bf16 %v1365, %v1365
      %vm1374 = vcmask 261120
      %v1376 = vsel %vm1374, %v1368, 0
      %v1379 = vsel %vm1374, %v1370, 0
      %1381 = vmatprep.subr.bf16.mxu0 0
      %1382 = vmatpush1.bf16.xpose.msra.mxu0 %v1379
      %1383 = vmatprep.subr.bf16.mxu0 0
      %1384 = vmatpush1.bf16.xpose.msra.mxu0 0
      %1385 = vmatprep.subr.bf16.mxu0 0
      %1386 = vmatpush1.bf16.xpose.msra.mxu0 0
      %1387 = vmatprep.subr.bf16.mxu0 0
      %1388 = vmatpush1.bf16.xpose.msra.mxu0 0
      %1389 = vmatprep.subr.bf16.mxu0 0
      %1390 = vmatpush1.bf16.xpose.msra.mxu0 0
      %1391 = vmatprep.subr.bf16.mxu0 0
      %1392 = vmatpush1.bf16.xpose.msra.mxu0 0
      %1393 = vmatprep.subr.bf16.mxu0 0
      %1394 = vmatpush1.bf16.xpose.msra.mxu0 0
      %1395 = vmatprep.subr.bf16.mxu0 0
      %1396 = vmatpush1.bf16.xpose.msra.mxu0 0
      %1397 = vmatprep.subr.bf16.mxu0 0
      %1398 = vmatpush1.bf16.xpose.msra.mxu0 0
      %1399 = vmatprep.subr.bf16.mxu0 0
      %1400 = vmatpush1.bf16.xpose.msra.mxu0 0
      %1401 = vmatprep.subr.bf16.mxu0 0
      %1402 = vmatpush1.bf16.xpose.msra.mxu0 0
      %1403 = vmatprep.subr.bf16.mxu0 0
      %1404 = vmatpush1.bf16.xpose.msra.mxu0 0
      %1405 = vmatprep.subr.bf16.mxu0 0
      %1406 = vmatpush1.bf16.xpose.msra.mxu0 0
      %1407 = vmatprep.subr.bf16.mxu0 0
      %1408 = vmatpush1.bf16.xpose.msra.mxu0 0
      %1409 = vmatprep.subr.bf16.mxu0 0
      %1410 = vmatpush1.bf16.xpose.msra.mxu0 0
      %1411 = vmatprep.subr.bf16.mxu0 0
      %1412 = vmatpush1.bf16.xpose.msra.mxu0 0
      %1413 = vmatprep.mubr.bf16.mxu0 0
      %1414 = vmatmul.mubr.bf16.gmra.mrb[0].mxu0 %v1376
      %v1415 = vpop.f32.mrb[0].mxu0
      %v1416 = vadd.f32 0.0, %v1415
      %v1417 = vpop.f32.mrb[0].mxu0
      %v1418 = vpop.f32.mrb[0].mxu0
      %v1419 = vpop.f32.mrb[0].mxu0
      %1420 = vdwg.mxu0
      %v1422 = vsel %vm1374, %v1369, 0
      %v1425 = vsel %vm1374, %v1371, 0
      %1427 = vmatprep.subr.bf16.mxu0 0
      %1428 = vmatpush1.bf16.xpose.msra.mxu0 %v1425
      %1429 = vmatprep.subr.bf16.mxu0 0
      %1430 = vmatpush1.bf16.xpose.msra.mxu0 0
      %1431 = vmatprep.subr.bf16.mxu0 0
      %1432 = vmatpush1.bf16.xpose.msra.mxu0 0
      %1433 = vmatprep.subr.bf16.mxu0 0
      %1434 = vmatpush1.bf16.xpose.msra.mxu0 0
      %1435 = vmatprep.subr.bf16.mxu0 0
      %1436 = vmatpush1.bf16.xpose.msra.mxu0 0
      %1437 = vmatprep.subr.bf16.mxu0 0
      %1438 = vmatpush1.bf16.xpose.msra.mxu0 0
      %1439 = vmatprep.subr.bf16.mxu0 0
      %1440 = vmatpush1.bf16.xpose.msra.mxu0 0
      %1441 = vmatprep.subr.bf16.mxu0 0
      %1442 = vmatpush1.bf16.xpose.msra.mxu0 0
      %1443 = vmatprep.subr.bf16.mxu0 0
      %1444 = vmatpush1.bf16.xpose.msra.mxu0 0
      %1445 = vmatprep.subr.bf16.mxu0 0
      %1446 = vmatpush1.bf16.xpose.msra.mxu0 0
      %1447 = vmatprep.subr.bf16.mxu0 0
      %1448 = vmatpush1.bf16.xpose.msra.mxu0 0
      %1449 = vmatprep.subr.bf16.mxu0 0
      %1450 = vmatpush1.bf16.xpose.msra.mxu0 0
      %1451 = vmatprep.subr.bf16.mxu0 0
      %1452 = vmatpush1.bf16.xpose.msra.mxu0 0
      %1453 = vmatprep.subr.bf16.mxu0 0
      %1454 = vmatpush1.bf16.xpose.msra.mxu0 0
      %1455 = vmatprep.subr.bf16.mxu0 0
      %1456 = vmatpush1.bf16.xpose.msra.mxu0 0
      %1457 = vmatprep.subr.bf16.mxu0 0
      %1458 = vmatpush1.bf16.xpose.msra.mxu0 0
      %1459 = vmatprep.mubr.bf16.mxu0 0
      %1460 = vmatmul.mubr.bf16.gmra.mrb[0].mxu0 %v1422
      %v1461 = vpop.f32.mrb[0].mxu0
      %v1462 = vadd.f32 0.0, %v1461
      %v1463 = vpop.f32.mrb[0].mxu0
      %v1464 = vpop.f32.mrb[0].mxu0
      %v1465 = vpop.f32.mrb[0].mxu0
      %1466 = vdwg.mxu0
      %v1467 = vmul.f32 %v1416, 0.17677669
      %v1468 = vmul.f32 %v1462, 0.17677669
      %v1471 = vlaneseq
      %v1472 = vshrl.u32 %v1471, 7
      %v1473 = vsub.s32 0, %v1472
      %v1474 = vrot.slane %v1030, %v1473
      %v1475 = vlaneseq
      %v1476 = vshrl.u32 %v1475, 7
      %v1477 = vsub.s32 0, %v1476
      %v1478 = vrot.slane %v1031, %v1477
      %v1481 = vadd.f32 %v1467, %v1474
      %v1482 = vadd.f32 %v1468, %v1478
      %vm1483 = vcmask 64512
      %v1484 = vsel %vm1483, %v1481, -inf
      %1485 = vmax.xlane.f32.xlu0 %v1484
      %v1486 = vpop.xlane.xlu0 %1485
      %v1487 = vsel %vm1483, %v1482, -inf
      %1488 = vmax.xlane.f32.xlu0 %v1487
      %v1489 = vpop.xlane.xlu0 %1488
      %v1490 = vsub.f32 %v1481, %v1486
      %v1491 = vsub.f32 %v1482, %v1489
      %v1492 = vmul.f32 %v1490, 1.442695
      %v1493 = vpow.pop %v1492
      %v1494 = vmul.f32 %v1491, 1.442695
      %v1495 = vpow.pop %v1494
      %v1496 = vsel %vm1483, %v1493, 0.0
      %1497 = vadd.xlane.f32.xlu0 %v1496
      %v1498 = vpop.xlane.xlu0 %1497
      %v1499 = vsel %vm1483, %v1495, 0.0
      %1500 = vadd.xlane.f32.xlu0 %v1499
      %v1501 = vpop.xlane.xlu0 %1500
      %v1502 = vrcp.pop %v1498
      %v1503 = vrcp.pop %v1501
      %v1504 = vmul.f32 %v1493, %v1502
      %v1505 = vmul.f32 %v1495, %v1503
      %v1506 = vpack.c.bf16 %v1504, %v1504
      %v1507 = vpack.c.bf16 %v1505, %v1505
      %v1509 = vsel %vm1483, %v1506, 0
      %vm1511 = vcmask 1043456
      %v1513 = vsel %vm1511, %v1372, 0
      %1515 = vmatprep.subr.bf16.mxu0 0
      %1516 = vmatpush1.bf16.msra.mxu0 %v1513
      %1517 = vmatprep.subr.bf16.mxu0 0
      %1518 = vmatpush1.bf16.msra.mxu0 0
      %1519 = vmatprep.subr.bf16.mxu0 0
      %1520 = vmatpush1.bf16.msra.mxu0 0
      %1521 = vmatprep.subr.bf16.mxu0 0
      %1522 = vmatpush1.bf16.msra.mxu0 0
      %1523 = vmatprep.subr.bf16.mxu0 0
      %1524 = vmatpush1.bf16.msra.mxu0 0
      %1525 = vmatprep.subr.bf16.mxu0 0
      %1526 = vmatpush1.bf16.msra.mxu0 0
      %1527 = vmatprep.subr.bf16.mxu0 0
      %1528 = vmatpush1.bf16.msra.mxu0 0
      %1529 = vmatprep.subr.bf16.mxu0 0
      %1530 = vmatpush1.bf16.msra.mxu0 0
      %1531 = vmatprep.subr.bf16.mxu0 0
      %1532 = vmatpush1.bf16.msra.mxu0 0
      %1533 = vmatprep.subr.bf16.mxu0 0
      %1534 = vmatpush1.bf16.msra.mxu0 0
      %1535 = vmatprep.subr.bf16.mxu0 0
      %1536 = vmatpush1.bf16.msra.mxu0 0
      %1537 = vmatprep.subr.bf16.mxu0 0
      %1538 = vmatpush1.bf16.msra.mxu0 0
      %1539 = vmatprep.subr.bf16.mxu0 0
      %1540 = vmatpush1.bf16.msra.mxu0 0
      %1541 = vmatprep.subr.bf16.mxu0 0
      %1542 = vmatpush1.bf16.msra.mxu0 0
      %1543 = vmatprep.subr.bf16.mxu0 0
      %1544 = vmatpush1.bf16.msra.mxu0 0
      %1545 = vmatprep.subr.bf16.mxu0 0
      %1546 = vmatpush1.bf16.msra.mxu0 0
      %1547 = vmatprep.mubr.bf16.mxu0 0
      %1548 = vmatmul.mubr.bf16.gmra.mrb[0].mxu0 %v1509
      %v1549 = vpop.f32.mrb[0].mxu0
      %v1550 = vadd.f32 0.0, %v1549
      %v1551 = vpop.f32.mrb[0].mxu0
      %v1552 = vpop.f32.mrb[0].mxu0
      %v1553 = vpop.f32.mrb[0].mxu0
      %1554 = vdwg.mxu0
      %v1556 = vsel %vm1483, %v1507, 0
      %v1559 = vsel %vm1511, %v1373, 0
      %1561 = vmatprep.subr.bf16.mxu0 0
      %1562 = vmatpush1.bf16.msra.mxu0 %v1559
      %1563 = vmatprep.subr.bf16.mxu0 0
      %1564 = vmatpush1.bf16.msra.mxu0 0
      %1565 = vmatprep.subr.bf16.mxu0 0
      %1566 = vmatpush1.bf16.msra.mxu0 0
      %1567 = vmatprep.subr.bf16.mxu0 0
      %1568 = vmatpush1.bf16.msra.mxu0 0
      %1569 = vmatprep.subr.bf16.mxu0 0
      %1570 = vmatpush1.bf16.msra.mxu0 0
      %1571 = vmatprep.subr.bf16.mxu0 0
      %1572 = vmatpush1.bf16.msra.mxu0 0
      %1573 = vmatprep.subr.bf16.mxu0 0
      %1574 = vmatpush1.bf16.msra.mxu0 0
      %1575 = vmatprep.subr.bf16.mxu0 0
      %1576 = vmatpush1.bf16.msra.mxu0 0
      %1577 = vmatprep.subr.bf16.mxu0 0
      %1578 = vmatpush1.bf16.msra.mxu0 0
      %1579 = vmatprep.subr.bf16.mxu0 0
      %1580 = vmatpush1.bf16.msra.mxu0 0
      %1581 = vmatprep.subr.bf16.mxu0 0
      %1582 = vmatpush1.bf16.msra.mxu0 0
      %1583 = vmatprep.subr.bf16.mxu0 0
      %1584 = vmatpush1.bf16.msra.mxu0 0
      %1585 = vmatprep.subr.bf16.mxu0 0
      %1586 = vmatpush1.bf16.msra.mxu0 0
      %1587 = vmatprep.subr.bf16.mxu0 0
      %1588 = vmatpush1.bf16.msra.mxu0 0
      %1589 = vmatprep.subr.bf16.mxu0 0
      %1590 = vmatpush1.bf16.msra.mxu0 0
      %1591 = vmatprep.subr.bf16.mxu0 0
      %1592 = vmatpush1.bf16.msra.mxu0 0
      %1593 = vmatprep.mubr.bf16.mxu0 0
      %1594 = vmatmul.mubr.bf16.gmra.mrb[0].mxu0 %v1556
      %v1595 = vpop.f32.mrb[0].mxu0
      %v1596 = vadd.f32 0.0, %v1595
      %v1597 = vpop.f32.mrb[0].mxu0
      %v1598 = vpop.f32.mrb[0].mxu0
      %v1599 = vpop.f32.mrb[0].mxu0
      %1600 = vdwg.mxu0
      %v1601 = vpack.c.bf16 %v1596, %v1550
      %v1602 = vld [vmem:[%s944] sm:$0xf]
      %v1603 = vld [vmem:[%s944 + $0x4] sm:$0xf]
      %v1604 = vld [vmem:[%s944 + $0x8] sm:$0xf]
      %v1605 = vld [vmem:[%s944 + $0xc] sm:$0xf]
      %s1606 = scalar_lea.vmem %s917, 64
      %v1607 = vld [vmem:[%s1606] sm:$0xf]
      %v1608 = vld [vmem:[%s1606 + $0x4] sm:$0xf]
      %v1609 = vld [vmem:[%s1606 + $0x8] sm:$0xf]
      %v1610 = vld [vmem:[%s1606 + $0xc] sm:$0xf]
      %v1611 = vld [vmem:[%s1606 + $0x10] sm:$0xf]
      %v1612 = vld [vmem:[%s1606 + $0x14] sm:$0xf]
      %v1613 = vld [vmem:[%s1606 + $0x18] sm:$0xf]
      %v1614 = vld [vmem:[%s1606 + $0x1c] sm:$0xf]
      %v1615 = vld [vmem:[%s1606 + $0x20] sm:$0xf]
      %v1616 = vld [vmem:[%s1606 + $0x24] sm:$0xf]
      %v1617 = vld [vmem:[%s1606 + $0x28] sm:$0xf]
      %v1618 = vld [vmem:[%s1606 + $0x2c] sm:$0xf]
      %v1619 = vld [vmem:[%s1606 + $0x30] sm:$0xf]
      %v1620 = vld [vmem:[%s1606 + $0x34] sm:$0xf]
      %v1621 = vld [vmem:[%s1606 + $0x38] sm:$0xf]
      %v1622 = vld [vmem:[%s1606 + $0x3c] sm:$0xf]
      %s1623 = scalar_lea.vmem %s921, 1
      %v1624 = vld [vmem:[%s1623] sm:$0x1]
      %v1626 = vlaneseq
      %v1627 = vshrl.u32 %v1626, 7
      %v1628 = vsub.s32 0, %v1627
      %v1629 = vrot.slane %v1624, %v1628
      %v1647 = vunpack.c.l.b16 %v1607
      %v1648 = vunpack.c.l.b16 %v1608
      %v1649 = vunpack.c.l.b16 %v1609
      %v1650 = vunpack.c.l.b16 %v1610
      %v1651 = vunpack.c.l.b16 %v1611
      %v1652 = vunpack.c.l.b16 %v1612
      %v1653 = vunpack.c.l.b16 %v1613
      %v1654 = vunpack.c.l.b16 %v1614
      %v1655 = vunpack.c.l.b16 %v1615
      %v1656 = vunpack.c.l.b16 %v1616
      %v1657 = vunpack.c.l.b16 %v1617
      %v1658 = vunpack.c.l.b16 %v1618
      %v1659 = vunpack.c.l.b16 %v1619
      %v1660 = vunpack.c.l.b16 %v1620
      %v1661 = vunpack.c.l.b16 %v1621
      %v1662 = vunpack.c.l.b16 %v1622
      %v1663 = vpack.c.b16 %v1648, %v1647
      %v1664 = vpack.c.b16 %v1650, %v1649
      %v1665 = vpack.c.b16 %v1652, %v1651
      %v1666 = vpack.c.b16 %v1654, %v1653
      %v1667 = vpack.c.b16 %v1656, %v1655
      %v1668 = vpack.c.b16 %v1658, %v1657
      %v1669 = vpack.c.b16 %v1660, %v1659
      %v1670 = vpack.c.b16 %v1662, %v1661
      %1679 = vmatprep.subr.bf16.mxu0 0
      %1680 = vmatpush1.bf16.msra.mxu0 %v1663
      %1681 = vmatprep.subr.bf16.mxu0 0
      %1682 = vmatpush1.bf16.msra.mxu0 %v1664
      %1683 = vmatprep.subr.bf16.mxu0 0
      %1684 = vmatpush1.bf16.msra.mxu0 %v1665
      %1685 = vmatprep.subr.bf16.mxu0 0
      %1686 = vmatpush1.bf16.msra.mxu0 %v1666
      %1687 = vmatprep.subr.bf16.mxu0 0
      %1688 = vmatpush1.bf16.msra.mxu0 %v1667
      %1689 = vmatprep.subr.bf16.mxu0 0
      %1690 = vmatpush1.bf16.msra.mxu0 %v1668
      %1691 = vmatprep.subr.bf16.mxu0 0
      %1692 = vmatpush1.bf16.msra.mxu0 %v1669
      %1693 = vmatprep.subr.bf16.mxu0 0
      %1694 = vmatpush1.bf16.msra.mxu0 %v1670
      %1695 = vmatprep.subr.bf16.mxu0 0
      %1696 = vmatpush1.bf16.msra.mxu0 0
      %1697 = vmatprep.subr.bf16.mxu0 0
      %1698 = vmatpush1.bf16.msra.mxu0 0
      %1699 = vmatprep.subr.bf16.mxu0 0
      %1700 = vmatpush1.bf16.msra.mxu0 0
      %1701 = vmatprep.subr.bf16.mxu0 0
      %1702 = vmatpush1.bf16.msra.mxu0 0
      %1703 = vmatprep.subr.bf16.mxu0 0
      %1704 = vmatpush1.bf16.msra.mxu0 0
      %1705 = vmatprep.subr.bf16.mxu0 0
      %1706 = vmatpush1.bf16.msra.mxu0 0
      %1707 = vmatprep.subr.bf16.mxu0 0
      %1708 = vmatpush1.bf16.msra.mxu0 0
      %1709 = vmatprep.subr.bf16.mxu0 0
      %1710 = vmatpush1.bf16.msra.mxu0 0
      %1711 = vmatprep.mubr.bf16.mxu0 0
      %1712 = vmatmul.mubr.bf16.gmra.mrb[0].mxu0 %v1029
      %v1713 = vpop.f32.mrb[0].mxu0
      %v1714 = vadd.f32 %v1629, %v1713
      %v1715 = vpop.f32.mrb[0].mxu0
      %v1716 = vpop.f32.mrb[0].mxu0
      %v1717 = vadd.f32 %v1629, %v1716
      %v1718 = vpop.f32.mrb[0].mxu0
      %1719 = vdwg.mxu0
      %s1720 = scalar_lea.vmem %s926, 64
      %v1721 = vld [vmem:[%s1720] sm:$0xf]
      %v1722 = vld [vmem:[%s1720 + $0x4] sm:$0xf]
      %v1723 = vld [vmem:[%s1720 + $0x8] sm:$0xf]
      %v1724 = vld [vmem:[%s1720 + $0xc] sm:$0xf]
      %v1725 = vld [vmem:[%s1720 + $0x10] sm:$0xf]
      %v1726 = vld [vmem:[%s1720 + $0x14] sm:$0xf]
      %v1727 = vld [vmem:[%s1720 + $0x18] sm:$0xf]
      %v1728 = vld [vmem:[%s1720 + $0x1c] sm:$0xf]
      %v1729 = vld [vmem:[%s1720 + $0x20] sm:$0xf]
      %v1730 = vld [vmem:[%s1720 + $0x24] sm:$0xf]
      %v1731 = vld [vmem:[%s1720 + $0x28] sm:$0xf]
      %v1732 = vld [vmem:[%s1720 + $0x2c] sm:$0xf]
      %v1733 = vld [vmem:[%s1720 + $0x30] sm:$0xf]
      %v1734 = vld [vmem:[%s1720 + $0x34] sm:$0xf]
      %v1735 = vld [vmem:[%s1720 + $0x38] sm:$0xf]
      %v1736 = vld [vmem:[%s1720 + $0x3c] sm:$0xf]
      %s1737 = scalar_lea.vmem %s930, 1
      %v1738 = vld [vmem:[%s1737] sm:$0x1]
      %v1740 = vlaneseq
      %v1741 = vshrl.u32 %v1740, 7
      %v1742 = vsub.s32 0, %v1741
      %v1743 = vrot.slane %v1738, %v1742
      %v1761 = vunpack.c.l.b16 %v1721
      %v1762 = vunpack.c.l.b16 %v1722
      %v1763 = vunpack.c.l.b16 %v1723
      %v1764 = vunpack.c.l.b16 %v1724
      %v1765 = vunpack.c.l.b16 %v1725
      %v1766 = vunpack.c.l.b16 %v1726
      %v1767 = vunpack.c.l.b16 %v1727
      %v1768 = vunpack.c.l.b16 %v1728
      %v1769 = vunpack.c.l.b16 %v1729
      %v1770 = vunpack.c.l.b16 %v1730
      %v1771 = vunpack.c.l.b16 %v1731
      %v1772 = vunpack.c.l.b16 %v1732
      %v1773 = vunpack.c.l.b16 %v1733
      %v1774 = vunpack.c.l.b16 %v1734
      %v1775 = vunpack.c.l.b16 %v1735
      %v1776 = vunpack.c.l.b16 %v1736
      %v1777 = vpack.c.b16 %v1762, %v1761
      %v1778 = vpack.c.b16 %v1764, %v1763
      %v1779 = vpack.c.b16 %v1766, %v1765
      %v1780 = vpack.c.b16 %v1768, %v1767
      %v1781 = vpack.c.b16 %v1770, %v1769
      %v1782 = vpack.c.b16 %v1772, %v1771
      %v1783 = vpack.c.b16 %v1774, %v1773
      %v1784 = vpack.c.b16 %v1776, %v1775
      %1793 = vmatprep.subr.bf16.mxu0 0
      %1794 = vmatpush1.bf16.msra.mxu0 %v1777
      %1795 = vmatprep.subr.bf16.mxu0 0
      %1796 = vmatpush1.bf16.msra.mxu0 %v1778
      %1797 = vmatprep.subr.bf16.mxu0 0
      %1798 = vmatpush1.bf16.msra.mxu0 %v1779
      %1799 = vmatprep.subr.bf16.mxu0 0
      %1800 = vmatpush1.bf16.msra.mxu0 %v1780
      %1801 = vmatprep.subr.bf16.mxu0 0
      %1802 = vmatpush1.bf16.msra.mxu0 %v1781
      %1803 = vmatprep.subr.bf16.mxu0 0
      %1804 = vmatpush1.bf16.msra.mxu0 %v1782
      %1805 = vmatprep.subr.bf16.mxu0 0
      %1806 = vmatpush1.bf16.msra.mxu0 %v1783
      %1807 = vmatprep.subr.bf16.mxu0 0
      %1808 = vmatpush1.bf16.msra.mxu0 %v1784
      %1809 = vmatprep.subr.bf16.mxu0 0
      %1810 = vmatpush1.bf16.msra.mxu0 0
      %1811 = vmatprep.subr.bf16.mxu0 0
      %1812 = vmatpush1.bf16.msra.mxu0 0
      %1813 = vmatprep.subr.bf16.mxu0 0
      %1814 = vmatpush1.bf16.msra.mxu0 0
      %1815 = vmatprep.subr.bf16.mxu0 0
      %1816 = vmatpush1.bf16.msra.mxu0 0
      %1817 = vmatprep.subr.bf16.mxu0 0
      %1818 = vmatpush1.bf16.msra.mxu0 0
      %1819 = vmatprep.subr.bf16.mxu0 0
      %1820 = vmatpush1.bf16.msra.mxu0 0
      %1821 = vmatprep.subr.bf16.mxu0 0
      %1822 = vmatpush1.bf16.msra.mxu0 0
      %1823 = vmatprep.subr.bf16.mxu0 0
      %1824 = vmatpush1.bf16.msra.mxu0 0
      %1825 = vmatprep.mubr.bf16.mxu0 0
      %1826 = vmatmul.mubr.bf16.gmra.mrb[0].mxu0 %v1029
      %v1827 = vpop.f32.mrb[0].mxu0
      %v1828 = vadd.f32 %v1743, %v1827
      %v1829 = vpop.f32.mrb[0].mxu0
      %v1830 = vpop.f32.mrb[0].mxu0
      %v1831 = vadd.f32 %v1743, %v1830
      %v1832 = vpop.f32.mrb[0].mxu0
      %1833 = vdwg.mxu0
      %s1834 = scalar_lea.vmem %s935, 64
      %v1835 = vld [vmem:[%s1834] sm:$0xf]
      %v1836 = vld [vmem:[%s1834 + $0x4] sm:$0xf]
      %v1837 = vld [vmem:[%s1834 + $0x8] sm:$0xf]
      %v1838 = vld [vmem:[%s1834 + $0xc] sm:$0xf]
      %v1839 = vld [vmem:[%s1834 + $0x10] sm:$0xf]
      %v1840 = vld [vmem:[%s1834 + $0x14] sm:$0xf]
      %v1841 = vld [vmem:[%s1834 + $0x18] sm:$0xf]
      %v1842 = vld [vmem:[%s1834 + $0x1c] sm:$0xf]
      %v1843 = vld [vmem:[%s1834 + $0x20] sm:$0xf]
      %v1844 = vld [vmem:[%s1834 + $0x24] sm:$0xf]
      %v1845 = vld [vmem:[%s1834 + $0x28] sm:$0xf]
      %v1846 = vld [vmem:[%s1834 + $0x2c] sm:$0xf]
      %v1847 = vld [vmem:[%s1834 + $0x30] sm:$0xf]
      %v1848 = vld [vmem:[%s1834 + $0x34] sm:$0xf]
      %v1849 = vld [vmem:[%s1834 + $0x38] sm:$0xf]
      %v1850 = vld [vmem:[%s1834 + $0x3c] sm:$0xf]
      %s1851 = scalar_lea.vmem %s939, 1
      %v1852 = vld [vmem:[%s1851] sm:$0x1]
      %v1854 = vlaneseq
      %v1855 = vshrl.u32 %v1854, 7
      %v1856 = vsub.s32 0, %v1855
      %v1857 = vrot.slane %v1852, %v1856
      %v1875 = vunpack.c.l.b16 %v1835
      %v1876 = vunpack.c.l.b16 %v1836
      %v1877 = vunpack.c.l.b16 %v1837
      %v1878 = vunpack.c.l.b16 %v1838
      %v1879 = vunpack.c.l.b16 %v1839
      %v1880 = vunpack.c.l.b16 %v1840
      %v1881 = vunpack.c.l.b16 %v1841
      %v1882 = vunpack.c.l.b16 %v1842
      %v1883 = vunpack.c.l.b16 %v1843
      %v1884 = vunpack.c.l.b16 %v1844
      %v1885 = vunpack.c.l.b16 %v1845
      %v1886 = vunpack.c.l.b16 %v1846
      %v1887 = vunpack.c.l.b16 %v1847
      %v1888 = vunpack.c.l.b16 %v1848
      %v1889 = vunpack.c.l.b16 %v1849
      %v1890 = vunpack.c.l.b16 %v1850
      %v1891 = vpack.c.b16 %v1876, %v1875
      %v1892 = vpack.c.b16 %v1878, %v1877
      %v1893 = vpack.c.b16 %v1880, %v1879
      %v1894 = vpack.c.b16 %v1882, %v1881
      %v1895 = vpack.c.b16 %v1884, %v1883
      %v1896 = vpack.c.b16 %v1886, %v1885
      %v1897 = vpack.c.b16 %v1888, %v1887
      %v1898 = vpack.c.b16 %v1890, %v1889
      %1907 = vmatprep.subr.bf16.mxu0 0
      %1908 = vmatpush1.bf16.msra.mxu0 %v1891
      %1909 = vmatprep.subr.bf16.mxu0 0
      %1910 = vmatpush1.bf16.msra.mxu0 %v1892
      %1911 = vmatprep.subr.bf16.mxu0 0
      %1912 = vmatpush1.bf16.msra.mxu0 %v1893
      %1913 = vmatprep.subr.bf16.mxu0 0
      %1914 = vmatpush1.bf16.msra.mxu0 %v1894
      %1915 = vmatprep.subr.bf16.mxu0 0
      %1916 = vmatpush1.bf16.msra.mxu0 %v1895
      %1917 = vmatprep.subr.bf16.mxu0 0
      %1918 = vmatpush1.bf16.msra.mxu0 %v1896
      %1919 = vmatprep.subr.bf16.mxu0 0
      %1920 = vmatpush1.bf16.msra.mxu0 %v1897
      %1921 = vmatprep.subr.bf16.mxu0 0
      %1922 = vmatpush1.bf16.msra.mxu0 %v1898
      %1923 = vmatprep.subr.bf16.mxu0 0
      %1924 = vmatpush1.bf16.msra.mxu0 0
      %1925 = vmatprep.subr.bf16.mxu0 0
      %1926 = vmatpush1.bf16.msra.mxu0 0
      %1927 = vmatprep.subr.bf16.mxu0 0
      %1928 = vmatpush1.bf16.msra.mxu0 0
      %1929 = vmatprep.subr.bf16.mxu0 0
      %1930 = vmatpush1.bf16.msra.mxu0 0
      %1931 = vmatprep.subr.bf16.mxu0 0
      %1932 = vmatpush1.bf16.msra.mxu0 0
      %1933 = vmatprep.subr.bf16.mxu0 0
      %1934 = vmatpush1.bf16.msra.mxu0 0
      %1935 = vmatprep.subr.bf16.mxu0 0
      %1936 = vmatpush1.bf16.msra.mxu0 0
      %1937 = vmatprep.subr.bf16.mxu0 0
      %1938 = vmatpush1.bf16.msra.mxu0 0
      %1939 = vmatprep.mubr.bf16.mxu0 0
      %1940 = vmatmul.mubr.bf16.gmra.mrb[0].mxu0 %v1029
      %v1941 = vpop.f32.mrb[0].mxu0
      %v1942 = vadd.f32 %v1857, %v1941
      %v1943 = vpop.f32.mrb[0].mxu0
      %v1944 = vpop.f32.mrb[0].mxu0
      %v1945 = vadd.f32 %v1857, %v1944
      %v1946 = vpop.f32.mrb[0].mxu0
      %1947 = vdwg.mxu0
      %v1948 = vpack.c.bf16 %v1714, %v1714
      %v1949 = vpack.c.bf16 %v1717, %v1717
      %v1950 = vpack.c.bf16 %v1828, %v1828
      %v1951 = vpack.c.bf16 %v1831, %v1831
      %v1952 = vpack.c.bf16 %v1942, %v1942
      %v1953 = vpack.c.bf16 %v1945, %v1945
      %v1955 = vsel %vm1374, %v1948, 0
      %v1958 = vsel %vm1374, %v1950, 0
      %1960 = vmatprep.subr.bf16.mxu0 0
      %1961 = vmatpush1.bf16.xpose.msra.mxu0 %v1958
      %1962 = vmatprep.subr.bf16.mxu0 0
      %1963 = vmatpush1.bf16.xpose.msra.mxu0 0
      %1964 = vmatprep.subr.bf16.mxu0 0
      %1965 = vmatpush1.bf16.xpose.msra.mxu0 0
      %1966 = vmatprep.subr.bf16.mxu0 0
      %1967 = vmatpush1.bf16.xpose.msra.mxu0 0
      %1968 = vmatprep.subr.bf16.mxu0 0
      %1969 = vmatpush1.bf16.xpose.msra.mxu0 0
      %1970 = vmatprep.subr.bf16.mxu0 0
      %1971 = vmatpush1.bf16.xpose.msra.mxu0 0
      %1972 = vmatprep.subr.bf16.mxu0 0
      %1973 = vmatpush1.bf16.xpose.msra.mxu0 0
      %1974 = vmatprep.subr.bf16.mxu0 0
      %1975 = vmatpush1.bf16.xpose.msra.mxu0 0
      %1976 = vmatprep.subr.bf16.mxu0 0
      %1977 = vmatpush1.bf16.xpose.msra.mxu0 0
      %1978 = vmatprep.subr.bf16.mxu0 0
      %1979 = vmatpush1.bf16.xpose.msra.mxu0 0
      %1980 = vmatprep.subr.bf16.mxu0 0
      %1981 = vmatpush1.bf16.xpose.msra.mxu0 0
      %1982 = vmatprep.subr.bf16.mxu0 0
      %1983 = vmatpush1.bf16.xpose.msra.mxu0 0
      %1984 = vmatprep.subr.bf16.mxu0 0
      %1985 = vmatpush1.bf16.xpose.msra.mxu0 0
      %1986 = vmatprep.subr.bf16.mxu0 0
      %1987 = vmatpush1.bf16.xpose.msra.mxu0 0
      %1988 = vmatprep.subr.bf16.mxu0 0
      %1989 = vmatpush1.bf16.xpose.msra.mxu0 0
      %1990 = vmatprep.subr.bf16.mxu0 0
      %1991 = vmatpush1.bf16.xpose.msra.mxu0 0
      %1992 = vmatprep.mubr.bf16.mxu0 0
      %1993 = vmatmul.mubr.bf16.gmra.mrb[0].mxu0 %v1955
      %v1994 = vpop.f32.mrb[0].mxu0
      %v1995 = vadd.f32 0.0, %v1994
      %v1996 = vpop.f32.mrb[0].mxu0
      %v1997 = vpop.f32.mrb[0].mxu0
      %v1998 = vpop.f32.mrb[0].mxu0
      %1999 = vdwg.mxu0
      %v2001 = vsel %vm1374, %v1949, 0
      %v2004 = vsel %vm1374, %v1951, 0
      %2006 = vmatprep.subr.bf16.mxu0 0
      %2007 = vmatpush1.bf16.xpose.msra.mxu0 %v2004
      %2008 = vmatprep.subr.bf16.mxu0 0
      %2009 = vmatpush1.bf16.xpose.msra.mxu0 0
      %2010 = vmatprep.subr.bf16.mxu0 0
      %2011 = vmatpush1.bf16.xpose.msra.mxu0 0
      %2012 = vmatprep.subr.bf16.mxu0 0
      %2013 = vmatpush1.bf16.xpose.msra.mxu0 0
      %2014 = vmatprep.subr.bf16.mxu0 0
      %2015 = vmatpush1.bf16.xpose.msra.mxu0 0
      %2016 = vmatprep.subr.bf16.mxu0 0
      %2017 = vmatpush1.bf16.xpose.msra.mxu0 0
      %2018 = vmatprep.subr.bf16.mxu0 0
      %2019 = vmatpush1.bf16.xpose.msra.mxu0 0
      %2020 = vmatprep.subr.bf16.mxu0 0
      %2021 = vmatpush1.bf16.xpose.msra.mxu0 0
      %2022 = vmatprep.subr.bf16.mxu0 0
      %2023 = vmatpush1.bf16.xpose.msra.mxu0 0
      %2024 = vmatprep.subr.bf16.mxu0 0
      %2025 = vmatpush1.bf16.xpose.msra.mxu0 0
      %2026 = vmatprep.subr.bf16.mxu0 0
      %2027 = vmatpush1.bf16.xpose.msra.mxu0 0
      %2028 = vmatprep.subr.bf16.mxu0 0
      %2029 = vmatpush1.bf16.xpose.msra.mxu0 0
      %2030 = vmatprep.subr.bf16.mxu0 0
      %2031 = vmatpush1.bf16.xpose.msra.mxu0 0
      %2032 = vmatprep.subr.bf16.mxu0 0
      %2033 = vmatpush1.bf16.xpose.msra.mxu0 0
      %2034 = vmatprep.subr.bf16.mxu0 0
      %2035 = vmatpush1.bf16.xpose.msra.mxu0 0
      %2036 = vmatprep.subr.bf16.mxu0 0
      %2037 = vmatpush1.bf16.xpose.msra.mxu0 0
      %2038 = vmatprep.mubr.bf16.mxu0 0
      %2039 = vmatmul.mubr.bf16.gmra.mrb[0].mxu0 %v2001
      %v2040 = vpop.f32.mrb[0].mxu0
      %v2041 = vadd.f32 0.0, %v2040
      %v2042 = vpop.f32.mrb[0].mxu0
      %v2043 = vpop.f32.mrb[0].mxu0
      %v2044 = vpop.f32.mrb[0].mxu0
      %2045 = vdwg.mxu0
      %v2046 = vmul.f32 %v1995, 0.17677669
      %v2047 = vmul.f32 %v2041, 0.17677669
      %v2048 = vadd.f32 %v2046, %v1474
      %v2049 = vadd.f32 %v2047, %v1478
      %v2050 = vsel %vm1483, %v2048, -inf
      %2051 = vmax.xlane.f32.xlu0 %v2050
      %v2052 = vpop.xlane.xlu0 %2051
      %v2053 = vsel %vm1483, %v2049, -inf
      %2054 = vmax.xlane.f32.xlu0 %v2053
      %v2055 = vpop.xlane.xlu0 %2054
      %v2056 = vsub.f32 %v2048, %v2052
      %v2057 = vsub.f32 %v2049, %v2055
      %v2058 = vmul.f32 %v2056, 1.442695
      %v2059 = vpow.pop %v2058
      %v2060 = vmul.f32 %v2057, 1.442695
      %v2061 = vpow.pop %v2060
      %v2062 = vsel %vm1483, %v2059, 0.0
      %2063 = vadd.xlane.f32.xlu0 %v2062
      %v2064 = vpop.xlane.xlu0 %2063
      %v2065 = vsel %vm1483, %v2061, 0.0
      %2066 = vadd.xlane.f32.xlu0 %v2065
      %v2067 = vpop.xlane.xlu0 %2066
      %v2068 = vrcp.pop %v2064
      %v2069 = vrcp.pop %v2067
      %v2070 = vmul.f32 %v2059, %v2068
      %v2071 = vmul.f32 %v2061, %v2069
      %v2072 = vpack.c.bf16 %v2070, %v2070
      %v2073 = vpack.c.bf16 %v2071, %v2071
      %v2075 = vsel %vm1483, %v2072, 0
      %v2078 = vsel %vm1511, %v1952, 0
      %2080 = vmatprep.subr.bf16.mxu0 0
      %2081 = vmatpush1.bf16.msra.mxu0 %v2078
      %2082 = vmatprep.subr.bf16.mxu0 0
      %2083 = vmatpush1.bf16.msra.mxu0 0
      %2084 = vmatprep.subr.bf16.mxu0 0
      %2085 = vmatpush1.bf16.msra.mxu0 0
      %2086 = vmatprep.subr.bf16.mxu0 0
      %2087 = vmatpush1.bf16.msra.mxu0 0
      %2088 = vmatprep.subr.bf16.mxu0 0
      %2089 = vmatpush1.bf16.msra.mxu0 0
      %2090 = vmatprep.subr.bf16.mxu0 0
      %2091 = vmatpush1.bf16.msra.mxu0 0
      %2092 = vmatprep.subr.bf16.mxu0 0
      %2093 = vmatpush1.bf16.msra.mxu0 0
      %2094 = vmatprep.subr.bf16.mxu0 0
      %2095 = vmatpush1.bf16.msra.mxu0 0
      %2096 = vmatprep.subr.bf16.mxu0 0
      %2097 = vmatpush1.bf16.msra.mxu0 0
      %2098 = vmatprep.subr.bf16.mxu0 0
      %2099 = vmatpush1.bf16.msra.mxu0 0
      %2100 = vmatprep.subr.bf16.mxu0 0
      %2101 = vmatpush1.bf16.msra.mxu0 0
      %2102 = vmatprep.subr.bf16.mxu0 0
      %2103 = vmatpush1.bf16.msra.mxu0 0
      %2104 = vmatprep.subr.bf16.mxu0 0
      %2105 = vmatpush1.bf16.msra.mxu0 0
      %2106 = vmatprep.subr.bf16.mxu0 0
      %2107 = vmatpush1.bf16.msra.mxu0 0
      %2108 = vmatprep.subr.bf16.mxu0 0
      %2109 = vmatpush1.bf16.msra.mxu0 0
      %2110 = vmatprep.subr.bf16.mxu0 0
      %2111 = vmatpush1.bf16.msra.mxu0 0
      %2112 = vmatprep.mubr.bf16.mxu0 0
      %2113 = vmatmul.mubr.bf16.gmra.mrb[0].mxu0 %v2075
      %v2114 = vpop.f32.mrb[0].mxu0
      %v2115 = vadd.f32 0.0, %v2114
      %v2116 = vpop.f32.mrb[0].mxu0
      %v2117 = vpop.f32.mrb[0].mxu0
      %v2118 = vpop.f32.mrb[0].mxu0
      %2119 = vdwg.mxu0
      %v2121 = vsel %vm1483, %v2073, 0
      %v2124 = vsel %vm1511, %v1953, 0
      %2126 = vmatprep.subr.bf16.mxu0 0
      %2127 = vmatpush1.bf16.msra.mxu0 %v2124
      %2128 = vmatprep.subr.bf16.mxu0 0
      %2129 = vmatpush1.bf16.msra.mxu0 0
      %2130 = vmatprep.subr.bf16.mxu0 0
      %2131 = vmatpush1.bf16.msra.mxu0 0
      %2132 = vmatprep.subr.bf16.mxu0 0
      %2133 = vmatpush1.bf16.msra.mxu0 0
      %2134 = vmatprep.subr.bf16.mxu0 0
      %2135 = vmatpush1.bf16.msra.mxu0 0
      %2136 = vmatprep.subr.bf16.mxu0 0
      %2137 = vmatpush1.bf16.msra.mxu0 0
      %2138 = vmatprep.subr.bf16.mxu0 0
      %2139 = vmatpush1.bf16.msra.mxu0 0
      %2140 = vmatprep.subr.bf16.mxu0 0
      %2141 = vmatpush1.bf16.msra.mxu0 0
      %2142 = vmatprep.subr.bf16.mxu0 0
      %2143 = vmatpush1.bf16.msra.mxu0 0
      %2144 = vmatprep.subr.bf16.mxu0 0
      %2145 = vmatpush1.bf16.msra.mxu0 0
      %2146 = vmatprep.subr.bf16.mxu0 0
      %2147 = vmatpush1.bf16.msra.mxu0 0
      %2148 = vmatprep.subr.bf16.mxu0 0
      %2149 = vmatpush1.bf16.msra.mxu0 0
      %2150 = vmatprep.subr.bf16.mxu0 0
      %2151 = vmatpush1.bf16.msra.mxu0 0
      %2152 = vmatprep.subr.bf16.mxu0 0
      %2153 = vmatpush1.bf16.msra.mxu0 0
      %2154 = vmatprep.subr.bf16.mxu0 0
      %2155 = vmatpush1.bf16.msra.mxu0 0
      %2156 = vmatprep.subr.bf16.mxu0 0
      %2157 = vmatpush1.bf16.msra.mxu0 0
      %2158 = vmatprep.mubr.bf16.mxu0 0
      %2159 = vmatmul.mubr.bf16.gmra.mrb[0].mxu0 %v2121
      %v2160 = vpop.f32.mrb[0].mxu0
      %v2161 = vadd.f32 0.0, %v2160
      %v2162 = vpop.f32.mrb[0].mxu0
      %v2163 = vpop.f32.mrb[0].mxu0
      %v2164 = vpop.f32.mrb[0].mxu0
      %2165 = vdwg.mxu0
      %v2166 = vpack.c.bf16 %v2161, %v2115
      %s2167 = scalar_lea.vmem %s944, 16
      %v2168 = vld [vmem:[%s2167] sm:$0xf]
      %v2169 = vld [vmem:[%s2167 + $0x4] sm:$0xf]
      %v2170 = vld [vmem:[%s2167 + $0x8] sm:$0xf]
      %v2171 = vld [vmem:[%s2167 + $0xc] sm:$0xf]
      %v2176 = vunpack.c.l.b16 %v2168
      %v2177 = vunpack.c.l.b16 %v2169
      %v2178 = vunpack.c.l.b16 %v2170
      %v2179 = vunpack.c.l.b16 %v2171
      %v2180 = vpack.c.b16 %v2177, %v2176
      %v2181 = vpack.c.b16 %v2179, %v2178
      %v2185 = vsel %vm1374, %v2166, 0
      %2187 = vmatprep.subr.bf16.mxu0 0
      %2188 = vmatpush1.bf16.msra.mxu0 %v2180
      %2189 = vmatprep.subr.bf16.mxu0 0
      %2190 = vmatpush1.bf16.msra.mxu0 %v2181
      %2191 = vmatprep.subr.bf16.mxu0 0
      %2192 = vmatpush1.bf16.msra.mxu0 0
      %2193 = vmatprep.subr.bf16.mxu0 0
      %2194 = vmatpush1.bf16.msra.mxu0 0
      %2195 = vmatprep.subr.bf16.mxu0 0
      %2196 = vmatpush1.bf16.msra.mxu0 0
      %2197 = vmatprep.subr.bf16.mxu0 0
      %2198 = vmatpush1.bf16.msra.mxu0 0
      %2199 = vmatprep.subr.bf16.mxu0 0
      %2200 = vmatpush1.bf16.msra.mxu0 0
      %2201 = vmatprep.subr.bf16.mxu0 0
      %2202 = vmatpush1.bf16.msra.mxu0 0
      %2203 = vmatprep.subr.bf16.mxu0 0
      %2204 = vmatpush1.bf16.msra.mxu0 0
      %2205 = vmatprep.subr.bf16.mxu0 0
      %2206 = vmatpush1.bf16.msra.mxu0 0
      %2207 = vmatprep.subr.bf16.mxu0 0
      %2208 = vmatpush1.bf16.msra.mxu0 0
      %2209 = vmatprep.subr.bf16.mxu0 0
      %2210 = vmatpush1.bf16.msra.mxu0 0
      %2211 = vmatprep.subr.bf16.mxu0 0
      %2212 = vmatpush1.bf16.msra.mxu0 0
      %2213 = vmatprep.subr.bf16.mxu0 0
      %2214 = vmatpush1.bf16.msra.mxu0 0
      %2215 = vmatprep.subr.bf16.mxu0 0
      %2216 = vmatpush1.bf16.msra.mxu0 0
      %2217 = vmatprep.subr.bf16.mxu0 0
      %2218 = vmatpush1.bf16.msra.mxu0 0
      %2219 = vmatprep.mubr.bf16.mxu0 0
      %2220 = vmatmul.mubr.bf16.gmra.mrb[0].mxu0 %v2185
      %v2221 = vpop.f32.mrb[0].mxu0
      %v2222 = vadd.f32 0.0, %v2221
      %v2223 = vpop.f32.mrb[0].mxu0
      %v2224 = vpop.f32.mrb[0].mxu0
      %v2225 = vadd.f32 0.0, %v2224
      %v2226 = vpop.f32.mrb[0].mxu0
      %2227 = vdwg.mxu0
      %v2232 = vunpack.c.l.b16 %v1602
      %v2233 = vunpack.c.l.b16 %v1603
      %v2234 = vunpack.c.l.b16 %v1604
      %v2235 = vunpack.c.l.b16 %v1605
      %v2236 = vpack.c.b16 %v2233, %v2232
      %v2237 = vpack.c.b16 %v2235, %v2234
      %v2241 = vsel %vm1374, %v1601, 0
      %2243 = vmatprep.subr.bf16.mxu0 0
      %2244 = vmatpush1.bf16.msra.mxu0 %v2236
      %2245 = vmatprep.subr.bf16.mxu0 0
      %2246 = vmatpush1.bf16.msra.mxu0 %v2237
      %2247 = vmatprep.subr.bf16.mxu0 0
      %2248 = vmatpush1.bf16.msra.mxu0 0
      %2249 = vmatprep.subr.bf16.mxu0 0
      %2250 = vmatpush1.bf16.msra.mxu0 0
      %2251 = vmatprep.subr.bf16.mxu0 0
      %2252 = vmatpush1.bf16.msra.mxu0 0
      %2253 = vmatprep.subr.bf16.mxu0 0
      %2254 = vmatpush1.bf16.msra.mxu0 0
      %2255 = vmatprep.subr.bf16.mxu0 0
      %2256 = vmatpush1.bf16.msra.mxu0 0
      %2257 = vmatprep.subr.bf16.mxu0 0
      %2258 = vmatpush1.bf16.msra.mxu0 0
      %2259 = vmatprep.subr.bf16.mxu0 0
      %2260 = vmatpush1.bf16.msra.mxu0 0
      %2261 = vmatprep.subr.bf16.mxu0 0
      %2262 = vmatpush1.bf16.msra.mxu0 0
      %2263 = vmatprep.subr.bf16.mxu0 0
      %2264 = vmatpush1.bf16.msra.mxu0 0
      %2265 = vmatprep.subr.bf16.mxu0 0
      %2266 = vmatpush1.bf16.msra.mxu0 0
      %2267 = vmatprep.subr.bf16.mxu0 0
      %2268 = vmatpush1.bf16.msra.mxu0 0
      %2269 = vmatprep.subr.bf16.mxu0 0
      %2270 = vmatpush1.bf16.msra.mxu0 0
      %2271 = vmatprep.subr.bf16.mxu0 0
      %2272 = vmatpush1.bf16.msra.mxu0 0
      %2273 = vmatprep.subr.bf16.mxu0 0
      %2274 = vmatpush1.bf16.msra.mxu0 0
      %2275 = vmatprep.mubr.bf16.mxu0 0
      %2276 = vmatmul.mubr.bf16.gmra.mrb[0].mxu0 %v2241
      %v2277 = vpop.f32.mrb[0].mxu0
      %v2278 = vadd.f32 %v2222, %v2277
      %v2279 = vpop.f32.mrb[0].mxu0
      %v2280 = vpop.f32.mrb[0].mxu0
      %v2281 = vadd.f32 %v2225, %v2280
      %v2282 = vpop.f32.mrb[0].mxu0
      %2283 = vdwg.mxu0
      %s2284 = scalar_lea.vmem %s917, 128
      %v2285 = vld [vmem:[%s2284] sm:$0xf]
      %v2286 = vld [vmem:[%s2284 + $0x4] sm:$0xf]
      %v2287 = vld [vmem:[%s2284 + $0x8] sm:$0xf]
      %v2288 = vld [vmem:[%s2284 + $0xc] sm:$0xf]
      %v2289 = vld [vmem:[%s2284 + $0x10] sm:$0xf]
      %v2290 = vld [vmem:[%s2284 + $0x14] sm:$0xf]
      %v2291 = vld [vmem:[%s2284 + $0x18] sm:$0xf]
      %v2292 = vld [vmem:[%s2284 + $0x1c] sm:$0xf]
      %v2293 = vld [vmem:[%s2284 + $0x20] sm:$0xf]
      %v2294 = vld [vmem:[%s2284 + $0x24] sm:$0xf]
      %v2295 = vld [vmem:[%s2284 + $0x28] sm:$0xf]
      %v2296 = vld [vmem:[%s2284 + $0x2c] sm:$0xf]
      %v2297 = vld [vmem:[%s2284 + $0x30] sm:$0xf]
      %v2298 = vld [vmem:[%s2284 + $0x34] sm:$0xf]
      %v2299 = vld [vmem:[%s2284 + $0x38] sm:$0xf]
      %v2300 = vld [vmem:[%s2284 + $0x3c] sm:$0xf]
      %s2301 = scalar_lea.vmem %s921, 2
      %v2302 = vld [vmem:[%s2301] sm:$0x1]
      %v2304 = vlaneseq
      %v2305 = vshrl.u32 %v2304, 7
      %v2306 = vsub.s32 0, %v2305
      %v2307 = vrot.slane %v2302, %v2306
      %v2325 = vunpack.c.l.b16 %v2285
      %v2326 = vunpack.c.l.b16 %v2286
      %v2327 = vunpack.c.l.b16 %v2287
      %v2328 = vunpack.c.l.b16 %v2288
      %v2329 = vunpack.c.l.b16 %v2289
      %v2330 = vunpack.c.l.b16 %v2290
      %v2331 = vunpack.c.l.b16 %v2291
      %v2332 = vunpack.c.l.b16 %v2292
      %v2333 = vunpack.c.l.b16 %v2293
      %v2334 = vunpack.c.l.b16 %v2294
      %v2335 = vunpack.c.l.b16 %v2295
      %v2336 = vunpack.c.l.b16 %v2296
      %v2337 = vunpack.c.l.b16 %v2297
      %v2338 = vunpack.c.l.b16 %v2298
      %v2339 = vunpack.c.l.b16 %v2299
      %v2340 = vunpack.c.l.b16 %v2300
      %v2341 = vpack.c.b16 %v2326, %v2325
      %v2342 = vpack.c.b16 %v2328, %v2327
      %v2343 = vpack.c.b16 %v2330, %v2329
      %v2344 = vpack.c.b16 %v2332, %v2331
      %v2345 = vpack.c.b16 %v2334, %v2333
      %v2346 = vpack.c.b16 %v2336, %v2335
      %v2347 = vpack.c.b16 %v2338, %v2337
      %v2348 = vpack.c.b16 %v2340, %v2339
      %2357 = vmatprep.subr.bf16.mxu0 0
      %2358 = vmatpush1.bf16.msra.mxu0 %v2341
      %2359 = vmatprep.subr.bf16.mxu0 0
      %2360 = vmatpush1.bf16.msra.mxu0 %v2342
      %2361 = vmatprep.subr.bf16.mxu0 0
      %2362 = vmatpush1.bf16.msra.mxu0 %v2343
      %2363 = vmatprep.subr.bf16.mxu0 0
      %2364 = vmatpush1.bf16.msra.mxu0 %v2344
      %2365 = vmatprep.subr.bf16.mxu0 0
      %2366 = vmatpush1.bf16.msra.mxu0 %v2345
      %2367 = vmatprep.subr.bf16.mxu0 0
      %2368 = vmatpush1.bf16.msra.mxu0 %v2346
      %2369 = vmatprep.subr.bf16.mxu0 0
      %2370 = vmatpush1.bf16.msra.mxu0 %v2347
      %2371 = vmatprep.subr.bf16.mxu0 0
      %2372 = vmatpush1.bf16.msra.mxu0 %v2348
      %2373 = vmatprep.subr.bf16.mxu0 0
      %2374 = vmatpush1.bf16.msra.mxu0 0
      %2375 = vmatprep.subr.bf16.mxu0 0
      %2376 = vmatpush1.bf16.msra.mxu0 0
      %2377 = vmatprep.subr.bf16.mxu0 0
      %2378 = vmatpush1.bf16.msra.mxu0 0
      %2379 = vmatprep.subr.bf16.mxu0 0
      %2380 = vmatpush1.bf16.msra.mxu0 0
      %2381 = vmatprep.subr.bf16.mxu0 0
      %2382 = vmatpush1.bf16.msra.mxu0 0
      %2383 = vmatprep.subr.bf16.mxu0 0
      %2384 = vmatpush1.bf16.msra.mxu0 0
      %2385 = vmatprep.subr.bf16.mxu0 0
      %2386 = vmatpush1.bf16.msra.mxu0 0
      %2387 = vmatprep.subr.bf16.mxu0 0
      %2388 = vmatpush1.bf16.msra.mxu0 0
      %2389 = vmatprep.mubr.bf16.mxu0 0
      %2390 = vmatmul.mubr.bf16.gmra.mrb[0].mxu0 %v1029
      %v2391 = vpop.f32.mrb[0].mxu0
      %v2392 = vadd.f32 %v2307, %v2391
      %v2393 = vpop.f32.mrb[0].mxu0
      %v2394 = vpop.f32.mrb[0].mxu0
      %v2395 = vadd.f32 %v2307, %v2394
      %v2396 = vpop.f32.mrb[0].mxu0
      %2397 = vdwg.mxu0
      %s2398 = scalar_lea.vmem %s926, 128
      %v2399 = vld [vmem:[%s2398] sm:$0xf]
      %v2400 = vld [vmem:[%s2398 + $0x4] sm:$0xf]
      %v2401 = vld [vmem:[%s2398 + $0x8] sm:$0xf]
      %v2402 = vld [vmem:[%s2398 + $0xc] sm:$0xf]
      %v2403 = vld [vmem:[%s2398 + $0x10] sm:$0xf]
      %v2404 = vld [vmem:[%s2398 + $0x14] sm:$0xf]
      %v2405 = vld [vmem:[%s2398 + $0x18] sm:$0xf]
      %v2406 = vld [vmem:[%s2398 + $0x1c] sm:$0xf]
      %v2407 = vld [vmem:[%s2398 + $0x20] sm:$0xf]
      %v2408 = vld [vmem:[%s2398 + $0x24] sm:$0xf]
      %v2409 = vld [vmem:[%s2398 + $0x28] sm:$0xf]
      %v2410 = vld [vmem:[%s2398 + $0x2c] sm:$0xf]
      %v2411 = vld [vmem:[%s2398 + $0x30] sm:$0xf]
      %v2412 = vld [vmem:[%s2398 + $0x34] sm:$0xf]
      %v2413 = vld [vmem:[%s2398 + $0x38] sm:$0xf]
      %v2414 = vld [vmem:[%s2398 + $0x3c] sm:$0xf]
      %s2415 = scalar_lea.vmem %s930, 2
      %v2416 = vld [vmem:[%s2415] sm:$0x1]
      %v2418 = vlaneseq
      %v2419 = vshrl.u32 %v2418, 7
      %v2420 = vsub.s32 0, %v2419
      %v2421 = vrot.slane %v2416, %v2420
      %v2439 = vunpack.c.l.b16 %v2399
      %v2440 = vunpack.c.l.b16 %v2400
      %v2441 = vunpack.c.l.b16 %v2401
      %v2442 = vunpack.c.l.b16 %v2402
      %v2443 = vunpack.c.l.b16 %v2403
      %v2444 = vunpack.c.l.b16 %v2404
      %v2445 = vunpack.c.l.b16 %v2405
      %v2446 = vunpack.c.l.b16 %v2406
      %v2447 = vunpack.c.l.b16 %v2407
      %v2448 = vunpack.c.l.b16 %v2408
      %v2449 = vunpack.c.l.b16 %v2409
      %v2450 = vunpack.c.l.b16 %v2410
      %v2451 = vunpack.c.l.b16 %v2411
      %v2452 = vunpack.c.l.b16 %v2412
      %v2453 = vunpack.c.l.b16 %v2413
      %v2454 = vunpack.c.l.b16 %v2414
      %v2455 = vpack.c.b16 %v2440, %v2439
      %v2456 = vpack.c.b16 %v2442, %v2441
      %v2457 = vpack.c.b16 %v2444, %v2443
      %v2458 = vpack.c.b16 %v2446, %v2445
      %v2459 = vpack.c.b16 %v2448, %v2447
      %v2460 = vpack.c.b16 %v2450, %v2449
      %v2461 = vpack.c.b16 %v2452, %v2451
      %v2462 = vpack.c.b16 %v2454, %v2453
      %2471 = vmatprep.subr.bf16.mxu0 0
      %2472 = vmatpush1.bf16.msra.mxu0 %v2455
      %2473 = vmatprep.subr.bf16.mxu0 0
      %2474 = vmatpush1.bf16.msra.mxu0 %v2456
      %2475 = vmatprep.subr.bf16.mxu0 0
      %2476 = vmatpush1.bf16.msra.mxu0 %v2457
      %2477 = vmatprep.subr.bf16.mxu0 0
      %2478 = vmatpush1.bf16.msra.mxu0 %v2458
      %2479 = vmatprep.subr.bf16.mxu0 0
      %2480 = vmatpush1.bf16.msra.mxu0 %v2459
      %2481 = vmatprep.subr.bf16.mxu0 0
      %2482 = vmatpush1.bf16.msra.mxu0 %v2460
      %2483 = vmatprep.subr.bf16.mxu0 0
      %2484 = vmatpush1.bf16.msra.mxu0 %v2461
      %2485 = vmatprep.subr.bf16.mxu0 0
      %2486 = vmatpush1.bf16.msra.mxu0 %v2462
      %2487 = vmatprep.subr.bf16.mxu0 0
      %2488 = vmatpush1.bf16.msra.mxu0 0
      %2489 = vmatprep.subr.bf16.mxu0 0
      %2490 = vmatpush1.bf16.msra.mxu0 0
      %2491 = vmatprep.subr.bf16.mxu0 0
      %2492 = vmatpush1.bf16.msra.mxu0 0
      %2493 = vmatprep.subr.bf16.mxu0 0
      %2494 = vmatpush1.bf16.msra.mxu0 0
      %2495 = vmatprep.subr.bf16.mxu0 0
      %2496 = vmatpush1.bf16.msra.mxu0 0
      %2497 = vmatprep.subr.bf16.mxu0 0
      %2498 = vmatpush1.bf16.msra.mxu0 0
      %2499 = vmatprep.subr.bf16.mxu0 0
      %2500 = vmatpush1.bf16.msra.mxu0 0
      %2501 = vmatprep.subr.bf16.mxu0 0
      %2502 = vmatpush1.bf16.msra.mxu0 0
      %2503 = vmatprep.mubr.bf16.mxu0 0
      %2504 = vmatmul.mubr.bf16.gmra.mrb[0].mxu0 %v1029
      %v2505 = vpop.f32.mrb[0].mxu0
      %v2506 = vadd.f32 %v2421, %v2505
      %v2507 = vpop.f32.mrb[0].mxu0
      %v2508 = vpop.f32.mrb[0].mxu0
      %v2509 = vadd.f32 %v2421, %v2508
      %v2510 = vpop.f32.mrb[0].mxu0
      %2511 = vdwg.mxu0
      %s2512 = scalar_lea.vmem %s935, 128
      %v2513 = vld [vmem:[%s2512] sm:$0xf]
      %v2514 = vld [vmem:[%s2512 + $0x4] sm:$0xf]
      %v2515 = vld [vmem:[%s2512 + $0x8] sm:$0xf]
      %v2516 = vld [vmem:[%s2512 + $0xc] sm:$0xf]
      %v2517 = vld [vmem:[%s2512 + $0x10] sm:$0xf]
      %v2518 = vld [vmem:[%s2512 + $0x14] sm:$0xf]
      %v2519 = vld [vmem:[%s2512 + $0x18] sm:$0xf]
      %v2520 = vld [vmem:[%s2512 + $0x1c] sm:$0xf]
      %v2521 = vld [vmem:[%s2512 + $0x20] sm:$0xf]
      %v2522 = vld [vmem:[%s2512 + $0x24] sm:$0xf]
      %v2523 = vld [vmem:[%s2512 + $0x28] sm:$0xf]
      %v2524 = vld [vmem:[%s2512 + $0x2c] sm:$0xf]
      %v2525 = vld [vmem:[%s2512 + $0x30] sm:$0xf]
      %v2526 = vld [vmem:[%s2512 + $0x34] sm:$0xf]
      %v2527 = vld [vmem:[%s2512 + $0x38] sm:$0xf]
      %v2528 = vld [vmem:[%s2512 + $0x3c] sm:$0xf]
      %s2529 = scalar_lea.vmem %s939, 2
      %v2530 = vld [vmem:[%s2529] sm:$0x1]
      %v2532 = vlaneseq
      %v2533 = vshrl.u32 %v2532, 7
      %v2534 = vsub.s32 0, %v2533
      %v2535 = vrot.slane %v2530, %v2534
      %v2553 = vunpack.c.l.b16 %v2513
      %v2554 = vunpack.c.l.b16 %v2514
      %v2555 = vunpack.c.l.b16 %v2515
      %v2556 = vunpack.c.l.b16 %v2516
      %v2557 = vunpack.c.l.b16 %v2517
      %v2558 = vunpack.c.l.b16 %v2518
      %v2559 = vunpack.c.l.b16 %v2519
      %v2560 = vunpack.c.l.b16 %v2520
      %v2561 = vunpack.c.l.b16 %v2521
      %v2562 = vunpack.c.l.b16 %v2522
      %v2563 = vunpack.c.l.b16 %v2523
      %v2564 = vunpack.c.l.b16 %v2524
      %v2565 = vunpack.c.l.b16 %v2525
      %v2566 = vunpack.c.l.b16 %v2526
      %v2567 = vunpack.c.l.b16 %v2527
      %v2568 = vunpack.c.l.b16 %v2528
      %v2569 = vpack.c.b16 %v2554, %v2553
      %v2570 = vpack.c.b16 %v2556, %v2555
      %v2571 = vpack.c.b16 %v2558, %v2557
      %v2572 = vpack.c.b16 %v2560, %v2559
      %v2573 = vpack.c.b16 %v2562, %v2561
      %v2574 = vpack.c.b16 %v2564, %v2563
      %v2575 = vpack.c.b16 %v2566, %v2565
      %v2576 = vpack.c.b16 %v2568, %v2567
      %2585 = vmatprep.subr.bf16.mxu0 0
      %2586 = vmatpush1.bf16.msra.mxu0 %v2569
      %2587 = vmatprep.subr.bf16.mxu0 0
      %2588 = vmatpush1.bf16.msra.mxu0 %v2570
      %2589 = vmatprep.subr.bf16.mxu0 0
      %2590 = vmatpush1.bf16.msra.mxu0 %v2571
      %2591 = vmatprep.subr.bf16.mxu0 0
      %2592 = vmatpush1.bf16.msra.mxu0 %v2572
      %2593 = vmatprep.subr.bf16.mxu0 0
      %2594 = vmatpush1.bf16.msra.mxu0 %v2573
      %2595 = vmatprep.subr.bf16.mxu0 0
      %2596 = vmatpush1.bf16.msra.mxu0 %v2574
      %2597 = vmatprep.subr.bf16.mxu0 0
      %2598 = vmatpush1.bf16.msra.mxu0 %v2575
      %2599 = vmatprep.subr.bf16.mxu0 0
      %2600 = vmatpush1.bf16.msra.mxu0 %v2576
      %2601 = vmatprep.subr.bf16.mxu0 0
      %2602 = vmatpush1.bf16.msra.mxu0 0
      %2603 = vmatprep.subr.bf16.mxu0 0
      %2604 = vmatpush1.bf16.msra.mxu0 0
      %2605 = vmatprep.subr.bf16.mxu0 0
      %2606 = vmatpush1.bf16.msra.mxu0 0
      %2607 = vmatprep.subr.bf16.mxu0 0
      %2608 = vmatpush1.bf16.msra.mxu0 0
      %2609 = vmatprep.subr.bf16.mxu0 0
      %2610 = vmatpush1.bf16.msra.mxu0 0
      %2611 = vmatprep.subr.bf16.mxu0 0
      %2612 = vmatpush1.bf16.msra.mxu0 0
      %2613 = vmatprep.subr.bf16.mxu0 0
      %2614 = vmatpush1.bf16.msra.mxu0 0
      %2615 = vmatprep.subr.bf16.mxu0 0
      %2616 = vmatpush1.bf16.msra.mxu0 0
      %2617 = vmatprep.mubr.bf16.mxu0 0
      %2618 = vmatmul.mubr.bf16.gmra.mrb[0].mxu0 %v1029
      %v2619 = vpop.f32.mrb[0].mxu0
      %v2620 = vadd.f32 %v2535, %v2619
      %v2621 = vpop.f32.mrb[0].mxu0
      %v2622 = vpop.f32.mrb[0].mxu0
      %v2623 = vadd.f32 %v2535, %v2622
      %v2624 = vpop.f32.mrb[0].mxu0
      %2625 = vdwg.mxu0
      %v2626 = vpack.c.bf16 %v2392, %v2392
      %v2627 = vpack.c.bf16 %v2395, %v2395
      %v2628 = vpack.c.bf16 %v2506, %v2506
      %v2629 = vpack.c.bf16 %v2509, %v2509
      %v2630 = vpack.c.bf16 %v2620, %v2620
      %v2631 = vpack.c.bf16 %v2623, %v2623
      %v2633 = vsel %vm1374, %v2626, 0
      %v2636 = vsel %vm1374, %v2628, 0
      %2638 = vmatprep.subr.bf16.mxu0 0
      %2639 = vmatpush1.bf16.xpose.msra.mxu0 %v2636
      %2640 = vmatprep.subr.bf16.mxu0 0
      %2641 = vmatpush1.bf16.xpose.msra.mxu0 0
      %2642 = vmatprep.subr.bf16.mxu0 0
      %2643 = vmatpush1.bf16.xpose.msra.mxu0 0
      %2644 = vmatprep.subr.bf16.mxu0 0
      %2645 = vmatpush1.bf16.xpose.msra.mxu0 0
      %2646 = vmatprep.subr.bf16.mxu0 0
      %2647 = vmatpush1.bf16.xpose.msra.mxu0 0
      %2648 = vmatprep.subr.bf16.mxu0 0
      %2649 = vmatpush1.bf16.xpose.msra.mxu0 0
      %2650 = vmatprep.subr.bf16.mxu0 0
      %2651 = vmatpush1.bf16.xpose.msra.mxu0 0
      %2652 = vmatprep.subr.bf16.mxu0 0
      %2653 = vmatpush1.bf16.xpose.msra.mxu0 0
      %2654 = vmatprep.subr.bf16.mxu0 0
      %2655 = vmatpush1.bf16.xpose.msra.mxu0 0
      %2656 = vmatprep.subr.bf16.mxu0 0
      %2657 = vmatpush1.bf16.xpose.msra.mxu0 0
      %2658 = vmatprep.subr.bf16.mxu0 0
      %2659 = vmatpush1.bf16.xpose.msra.mxu0 0
      %2660 = vmatprep.subr.bf16.mxu0 0
      %2661 = vmatpush1.bf16.xpose.msra.mxu0 0
      %2662 = vmatprep.subr.bf16.mxu0 0
      %2663 = vmatpush1.bf16.xpose.msra.mxu0 0
      %2664 = vmatprep.subr.bf16.mxu0 0
      %2665 = vmatpush1.bf16.xpose.msra.mxu0 0
      %2666 = vmatprep.subr.bf16.mxu0 0
      %2667 = vmatpush1.bf16.xpose.msra.mxu0 0
      %2668 = vmatprep.subr.bf16.mxu0 0
      %2669 = vmatpush1.bf16.xpose.msra.mxu0 0
      %2670 = vmatprep.mubr.bf16.mxu0 0
      %2671 = vmatmul.mubr.bf16.gmra.mrb[0].mxu0 %v2633
      %v2672 = vpop.f32.mrb[0].mxu0
      %v2673 = vadd.f32 0.0, %v2672
      %v2674 = vpop.f32.mrb[0].mxu0
      %v2675 = vpop.f32.mrb[0].mxu0
      %v2676 = vpop.f32.mrb[0].mxu0
      %2677 = vdwg.mxu0
      %v2679 = vsel %vm1374, %v2627, 0
      %v2682 = vsel %vm1374, %v2629, 0
      %2684 = vmatprep.subr.bf16.mxu0 0
      %2685 = vmatpush1.bf16.xpose.msra.mxu0 %v2682
      %2686 = vmatprep.subr.bf16.mxu0 0
      %2687 = vmatpush1.bf16.xpose.msra.mxu0 0
      %2688 = vmatprep.subr.bf16.mxu0 0
      %2689 = vmatpush1.bf16.xpose.msra.mxu0 0
      %2690 = vmatprep.subr.bf16.mxu0 0
      %2691 = vmatpush1.bf16.xpose.msra.mxu0 0
      %2692 = vmatprep.subr.bf16.mxu0 0
      %2693 = vmatpush1.bf16.xpose.msra.mxu0 0
      %2694 = vmatprep.subr.bf16.mxu0 0
      %2695 = vmatpush1.bf16.xpose.msra.mxu0 0
      %2696 = vmatprep.subr.bf16.mxu0 0
      %2697 = vmatpush1.bf16.xpose.msra.mxu0 0
      %2698 = vmatprep.subr.bf16.mxu0 0
      %2699 = vmatpush1.bf16.xpose.msra.mxu0 0
      %2700 = vmatprep.subr.bf16.mxu0 0
      %2701 = vmatpush1.bf16.xpose.msra.mxu0 0
      %2702 = vmatprep.subr.bf16.mxu0 0
      %2703 = vmatpush1.bf16.xpose.msra.mxu0 0
      %2704 = vmatprep.subr.bf16.mxu0 0
      %2705 = vmatpush1.bf16.xpose.msra.mxu0 0
      %2706 = vmatprep.subr.bf16.mxu0 0
      %2707 = vmatpush1.bf16.xpose.msra.mxu0 0
      %2708 = vmatprep.subr.bf16.mxu0 0
      %2709 = vmatpush1.bf16.xpose.msra.mxu0 0
      %2710 = vmatprep.subr.bf16.mxu0 0
      %2711 = vmatpush1.bf16.xpose.msra.mxu0 0
      %2712 = vmatprep.subr.bf16.mxu0 0
      %2713 = vmatpush1.bf16.xpose.msra.mxu0 0
      %2714 = vmatprep.subr.bf16.mxu0 0
      %2715 = vmatpush1.bf16.xpose.msra.mxu0 0
      %2716 = vmatprep.mubr.bf16.mxu0 0
      %2717 = vmatmul.mubr.bf16.gmra.mrb[0].mxu0 %v2679
      %v2718 = vpop.f32.mrb[0].mxu0
      %v2719 = vadd.f32 0.0, %v2718
      %v2720 = vpop.f32.mrb[0].mxu0
      %v2721 = vpop.f32.mrb[0].mxu0
      %v2722 = vpop.f32.mrb[0].mxu0
      %2723 = vdwg.mxu0
      %v2724 = vmul.f32 %v2673, 0.17677669
      %v2725 = vmul.f32 %v2719, 0.17677669
      %v2726 = vadd.f32 %v2724, %v1474
      %v2727 = vadd.f32 %v2725, %v1478
      %v2728 = vsel %vm1483, %v2726, -inf
      %2729 = vmax.xlane.f32.xlu0 %v2728
      %v2730 = vpop.xlane.xlu0 %2729
      %v2731 = vsel %vm1483, %v2727, -inf
      %2732 = vmax.xlane.f32.xlu0 %v2731
      %v2733 = vpop.xlane.xlu0 %2732
      %v2734 = vsub.f32 %v2726, %v2730
      %v2735 = vsub.f32 %v2727, %v2733
      %v2736 = vmul.f32 %v2734, 1.442695
      %v2737 = vpow.pop %v2736
      %v2738 = vmul.f32 %v2735, 1.442695
      %v2739 = vpow.pop %v2738
      %v2740 = vsel %vm1483, %v2737, 0.0
      %2741 = vadd.xlane.f32.xlu0 %v2740
      %v2742 = vpop.xlane.xlu0 %2741
      %v2743 = vsel %vm1483, %v2739, 0.0
      %2744 = vadd.xlane.f32.xlu0 %v2743
      %v2745 = vpop.xlane.xlu0 %2744
      %v2746 = vrcp.pop %v2742
      %v2747 = vrcp.pop %v2745
      %v2748 = vmul.f32 %v2737, %v2746
      %v2749 = vmul.f32 %v2739, %v2747
      %v2750 = vpack.c.bf16 %v2748, %v2748
      %v2751 = vpack.c.bf16 %v2749, %v2749
      %v2753 = vsel %vm1483, %v2750, 0
      %v2756 = vsel %vm1511, %v2630, 0
      %2758 = vmatprep.subr.bf16.mxu0 0
      %2759 = vmatpush1.bf16.msra.mxu0 %v2756
      %2760 = vmatprep.subr.bf16.mxu0 0
      %2761 = vmatpush1.bf16.msra.mxu0 0
      %2762 = vmatprep.subr.bf16.mxu0 0
      %2763 = vmatpush1.bf16.msra.mxu0 0
      %2764 = vmatprep.subr.bf16.mxu0 0
      %2765 = vmatpush1.bf16.msra.mxu0 0
      %2766 = vmatprep.subr.bf16.mxu0 0
      %2767 = vmatpush1.bf16.msra.mxu0 0
      %2768 = vmatprep.subr.bf16.mxu0 0
      %2769 = vmatpush1.bf16.msra.mxu0 0
      %2770 = vmatprep.subr.bf16.mxu0 0
      %2771 = vmatpush1.bf16.msra.mxu0 0
      %2772 = vmatprep.subr.bf16.mxu0 0
      %2773 = vmatpush1.bf16.msra.mxu0 0
      %2774 = vmatprep.subr.bf16.mxu0 0
      %2775 = vmatpush1.bf16.msra.mxu0 0
      %2776 = vmatprep.subr.bf16.mxu0 0
      %2777 = vmatpush1.bf16.msra.mxu0 0
      %2778 = vmatprep.subr.bf16.mxu0 0
      %2779 = vmatpush1.bf16.msra.mxu0 0
      %2780 = vmatprep.subr.bf16.mxu0 0
      %2781 = vmatpush1.bf16.msra.mxu0 0
      %2782 = vmatprep.subr.bf16.mxu0 0
      %2783 = vmatpush1.bf16.msra.mxu0 0
      %2784 = vmatprep.subr.bf16.mxu0 0
      %2785 = vmatpush1.bf16.msra.mxu0 0
      %2786 = vmatprep.subr.bf16.mxu0 0
      %2787 = vmatpush1.bf16.msra.mxu0 0
      %2788 = vmatprep.subr.bf16.mxu0 0
      %2789 = vmatpush1.bf16.msra.mxu0 0
      %2790 = vmatprep.mubr.bf16.mxu0 0
      %2791 = vmatmul.mubr.bf16.gmra.mrb[0].mxu0 %v2753
      %v2792 = vpop.f32.mrb[0].mxu0
      %v2793 = vadd.f32 0.0, %v2792
      %v2794 = vpop.f32.mrb[0].mxu0
      %v2795 = vpop.f32.mrb[0].mxu0
      %v2796 = vpop.f32.mrb[0].mxu0
      %2797 = vdwg.mxu0
      %v2799 = vsel %vm1483, %v2751, 0
      %v2802 = vsel %vm1511, %v2631, 0
      %2804 = vmatprep.subr.bf16.mxu0 0
      %2805 = vmatpush1.bf16.msra.mxu0 %v2802
      %2806 = vmatprep.subr.bf16.mxu0 0
      %2807 = vmatpush1.bf16.msra.mxu0 0
      %2808 = vmatprep.subr.bf16.mxu0 0
      %2809 = vmatpush1.bf16.msra.mxu0 0
      %2810 = vmatprep.subr.bf16.mxu0 0
      %2811 = vmatpush1.bf16.msra.mxu0 0
      %2812 = vmatprep.subr.bf16.mxu0 0
      %2813 = vmatpush1.bf16.msra.mxu0 0
      %2814 = vmatprep.subr.bf16.mxu0 0
      %2815 = vmatpush1.bf16.msra.mxu0 0
      %2816 = vmatprep.subr.bf16.mxu0 0
      %2817 = vmatpush1.bf16.msra.mxu0 0
      %2818 = vmatprep.subr.bf16.mxu0 0
      %2819 = vmatpush1.bf16.msra.mxu0 0
      %2820 = vmatprep.subr.bf16.mxu0 0
      %2821 = vmatpush1.bf16.msra.mxu0 0
      %2822 = vmatprep.subr.bf16.mxu0 0
      %2823 = vmatpush1.bf16.msra.mxu0 0
      %2824 = vmatprep.subr.bf16.mxu0 0
      %2825 = vmatpush1.bf16.msra.mxu0 0
      %2826 = vmatprep.subr.bf16.mxu0 0
      %2827 = vmatpush1.bf16.msra.mxu0 0
      %2828 = vmatprep.subr.bf16.mxu0 0
      %2829 = vmatpush1.bf16.msra.mxu0 0
      %2830 = vmatprep.subr.bf16.mxu0 0
      %2831 = vmatpush1.bf16.msra.mxu0 0
      %2832 = vmatprep.subr.bf16.mxu0 0
      %2833 = vmatpush1.bf16.msra.mxu0 0
      %2834 = vmatprep.subr.bf16.mxu0 0
      %2835 = vmatpush1.bf16.msra.mxu0 0
      %2836 = vmatprep.mubr.bf16.mxu0 0
      %2837 = vmatmul.mubr.bf16.gmra.mrb[0].mxu0 %v2799
      %v2838 = vpop.f32.mrb[0].mxu0
      %v2839 = vadd.f32 0.0, %v2838
      %v2840 = vpop.f32.mrb[0].mxu0
      %v2841 = vpop.f32.mrb[0].mxu0
      %v2842 = vpop.f32.mrb[0].mxu0
      %2843 = vdwg.mxu0
      %v2844 = vpack.c.bf16 %v2839, %v2793
      %s2845 = scalar_lea.vmem %s944, 32
      %v2846 = vld [vmem:[%s2845] sm:$0xf]
      %v2847 = vld [vmem:[%s2845 + $0x4] sm:$0xf]
      %v2848 = vld [vmem:[%s2845 + $0x8] sm:$0xf]
      %v2849 = vld [vmem:[%s2845 + $0xc] sm:$0xf]
      %v2854 = vunpack.c.l.b16 %v2846
      %v2855 = vunpack.c.l.b16 %v2847
      %v2856 = vunpack.c.l.b16 %v2848
      %v2857 = vunpack.c.l.b16 %v2849
      %v2858 = vpack.c.b16 %v2855, %v2854
      %v2859 = vpack.c.b16 %v2857, %v2856
      %v2863 = vsel %vm1374, %v2844, 0
      %2865 = vmatprep.subr.bf16.mxu0 0
      %2866 = vmatpush1.bf16.msra.mxu0 %v2858
      %2867 = vmatprep.subr.bf16.mxu0 0
      %2868 = vmatpush1.bf16.msra.mxu0 %v2859
      %2869 = vmatprep.subr.bf16.mxu0 0
      %2870 = vmatpush1.bf16.msra.mxu0 0
      %2871 = vmatprep.subr.bf16.mxu0 0
      %2872 = vmatpush1.bf16.msra.mxu0 0
      %2873 = vmatprep.subr.bf16.mxu0 0
      %2874 = vmatpush1.bf16.msra.mxu0 0
      %2875 = vmatprep.subr.bf16.mxu0 0
      %2876 = vmatpush1.bf16.msra.mxu0 0
      %2877 = vmatprep.subr.bf16.mxu0 0
      %2878 = vmatpush1.bf16.msra.mxu0 0
      %2879 = vmatprep.subr.bf16.mxu0 0
      %2880 = vmatpush1.bf16.msra.mxu0 0
      %2881 = vmatprep.subr.bf16.mxu0 0
      %2882 = vmatpush1.bf16.msra.mxu0 0
      %2883 = vmatprep.subr.bf16.mxu0 0
      %2884 = vmatpush1.bf16.msra.mxu0 0
      %2885 = vmatprep.subr.bf16.mxu0 0
      %2886 = vmatpush1.bf16.msra.mxu0 0
      %2887 = vmatprep.subr.bf16.mxu0 0
      %2888 = vmatpush1.bf16.msra.mxu0 0
      %2889 = vmatprep.subr.bf16.mxu0 0
      %2890 = vmatpush1.bf16.msra.mxu0 0
      %2891 = vmatprep.subr.bf16.mxu0 0
      %2892 = vmatpush1.bf16.msra.mxu0 0
      %2893 = vmatprep.subr.bf16.mxu0 0
      %2894 = vmatpush1.bf16.msra.mxu0 0
      %2895 = vmatprep.subr.bf16.mxu0 0
      %2896 = vmatpush1.bf16.msra.mxu0 0
      %2897 = vmatprep.mubr.bf16.mxu0 0
      %2898 = vmatmul.mubr.bf16.gmra.mrb[0].mxu0 %v2863
      %v2899 = vpop.f32.mrb[0].mxu0
      %v2900 = vadd.f32 0.0, %v2899
      %v2901 = vpop.f32.mrb[0].mxu0
      %v2902 = vpop.f32.mrb[0].mxu0
      %v2903 = vadd.f32 0.0, %v2902
      %v2904 = vpop.f32.mrb[0].mxu0
      %2905 = vdwg.mxu0
      %v2906 = vadd.f32 %v2278, %v2900
      %v2907 = vadd.f32 %v2281, %v2903
      %s2908 = scalar_lea.vmem %s917, 192
      %v2909 = vld [vmem:[%s2908] sm:$0xf]
      %v2910 = vld [vmem:[%s2908 + $0x4] sm:$0xf]
      %v2911 = vld [vmem:[%s2908 + $0x8] sm:$0xf]
      %v2912 = vld [vmem:[%s2908 + $0xc] sm:$0xf]
      %v2913 = vld [vmem:[%s2908 + $0x10] sm:$0xf]
      %v2914 = vld [vmem:[%s2908 + $0x14] sm:$0xf]
      %v2915 = vld [vmem:[%s2908 + $0x18] sm:$0xf]
      %v2916 = vld [vmem:[%s2908 + $0x1c] sm:$0xf]
      %v2917 = vld [vmem:[%s2908 + $0x20] sm:$0xf]
      %v2918 = vld [vmem:[%s2908 + $0x24] sm:$0xf]
      %v2919 = vld [vmem:[%s2908 + $0x28] sm:$0xf]
      %v2920 = vld [vmem:[%s2908 + $0x2c] sm:$0xf]
      %v2921 = vld [vmem:[%s2908 + $0x30] sm:$0xf]
      %v2922 = vld [vmem:[%s2908 + $0x34] sm:$0xf]
      %v2923 = vld [vmem:[%s2908 + $0x38] sm:$0xf]
      %v2924 = vld [vmem:[%s2908 + $0x3c] sm:$0xf]
      %s2925 = scalar_lea.vmem %s921, 3
      %v2926 = vld [vmem:[%s2925] sm:$0x1]
      %v2928 = vlaneseq
      %v2929 = vshrl.u32 %v2928, 7
      %v2930 = vsub.s32 0, %v2929
      %v2931 = vrot.slane %v2926, %v2930
      %v2949 = vunpack.c.l.b16 %v2909
      %v2950 = vunpack.c.l.b16 %v2910
      %v2951 = vunpack.c.l.b16 %v2911
      %v2952 = vunpack.c.l.b16 %v2912
      %v2953 = vunpack.c.l.b16 %v2913
      %v2954 = vunpack.c.l.b16 %v2914
      %v2955 = vunpack.c.l.b16 %v2915
      %v2956 = vunpack.c.l.b16 %v2916
      %v2957 = vunpack.c.l.b16 %v2917
      %v2958 = vunpack.c.l.b16 %v2918
      %v2959 = vunpack.c.l.b16 %v2919
      %v2960 = vunpack.c.l.b16 %v2920
      %v2961 = vunpack.c.l.b16 %v2921
      %v2962 = vunpack.c.l.b16 %v2922
      %v2963 = vunpack.c.l.b16 %v2923
      %v2964 = vunpack.c.l.b16 %v2924
      %v2965 = vpack.c.b16 %v2950, %v2949
      %v2966 = vpack.c.b16 %v2952, %v2951
      %v2967 = vpack.c.b16 %v2954, %v2953
      %v2968 = vpack.c.b16 %v2956, %v2955
      %v2969 = vpack.c.b16 %v2958, %v2957
      %v2970 = vpack.c.b16 %v2960, %v2959
      %v2971 = vpack.c.b16 %v2962, %v2961
      %v2972 = vpack.c.b16 %v2964, %v2963
      %2981 = vmatprep.subr.bf16.mxu0 0
      %2982 = vmatpush1.bf16.msra.mxu0 %v2965
      %2983 = vmatprep.subr.bf16.mxu0 0
      %2984 = vmatpush1.bf16.msra.mxu0 %v2966
      %2985 = vmatprep.subr.bf16.mxu0 0
      %2986 = vmatpush1.bf16.msra.mxu0 %v2967
      %2987 = vmatprep.subr.bf16.mxu0 0
      %2988 = vmatpush1.bf16.msra.mxu0 %v2968
      %2989 = vmatprep.subr.bf16.mxu0 0
      %2990 = vmatpush1.bf16.msra.mxu0 %v2969
      %2991 = vmatprep.subr.bf16.mxu0 0
      %2992 = vmatpush1.bf16.msra.mxu0 %v2970
      %2993 = vmatprep.subr.bf16.mxu0 0
      %2994 = vmatpush1.bf16.msra.mxu0 %v2971
      %2995 = vmatprep.subr.bf16.mxu0 0
      %2996 = vmatpush1.bf16.msra.mxu0 %v2972
      %2997 = vmatprep.subr.bf16.mxu0 0
      %2998 = vmatpush1.bf16.msra.mxu0 0
      %2999 = vmatprep.subr.bf16.mxu0 0
      %3000 = vmatpush1.bf16.msra.mxu0 0
      %3001 = vmatprep.subr.bf16.mxu0 0
      %3002 = vmatpush1.bf16.msra.mxu0 0
      %3003 = vmatprep.subr.bf16.mxu0 0
      %3004 = vmatpush1.bf16.msra.mxu0 0
      %3005 = vmatprep.subr.bf16.mxu0 0
      %3006 = vmatpush1.bf16.msra.mxu0 0
      %3007 = vmatprep.subr.bf16.mxu0 0
      %3008 = vmatpush1.bf16.msra.mxu0 0
      %3009 = vmatprep.subr.bf16.mxu0 0
      %3010 = vmatpush1.bf16.msra.mxu0 0
      %3011 = vmatprep.subr.bf16.mxu0 0
      %3012 = vmatpush1.bf16.msra.mxu0 0
      %3013 = vmatprep.mubr.bf16.mxu0 0
      %3014 = vmatmul.mubr.bf16.gmra.mrb[0].mxu0 %v1029
      %v3015 = vpop.f32.mrb[0].mxu0
      %v3016 = vadd.f32 %v2931, %v3015
      %v3017 = vpop.f32.mrb[0].mxu0
      %v3018 = vpop.f32.mrb[0].mxu0
      %v3019 = vadd.f32 %v2931, %v3018
      %v3020 = vpop.f32.mrb[0].mxu0
      %3021 = vdwg.mxu0
      %s3022 = scalar_lea.vmem %s926, 192
      %v3023 = vld [vmem:[%s3022] sm:$0xf]
      %v3024 = vld [vmem:[%s3022 + $0x4] sm:$0xf]
      %v3025 = vld [vmem:[%s3022 + $0x8] sm:$0xf]
      %v3026 = vld [vmem:[%s3022 + $0xc] sm:$0xf]
      %v3027 = vld [vmem:[%s3022 + $0x10] sm:$0xf]
      %v3028 = vld [vmem:[%s3022 + $0x14] sm:$0xf]
      %v3029 = vld [vmem:[%s3022 + $0x18] sm:$0xf]
      %v3030 = vld [vmem:[%s3022 + $0x1c] sm:$0xf]
      %v3031 = vld [vmem:[%s3022 + $0x20] sm:$0xf]
      %v3032 = vld [vmem:[%s3022 + $0x24] sm:$0xf]
      %v3033 = vld [vmem:[%s3022 + $0x28] sm:$0xf]
      %v3034 = vld [vmem:[%s3022 + $0x2c] sm:$0xf]
      %v3035 = vld [vmem:[%s3022 + $0x30] sm:$0xf]
      %v3036 = vld [vmem:[%s3022 + $0x34] sm:$0xf]
      %v3037 = vld [vmem:[%s3022 + $0x38] sm:$0xf]
      %v3038 = vld [vmem:[%s3022 + $0x3c] sm:$0xf]
      %s3039 = scalar_lea.vmem %s930, 3
      %v3040 = vld [vmem:[%s3039] sm:$0x1]
      %v3042 = vlaneseq
      %v3043 = vshrl.u32 %v3042, 7
      %v3044 = vsub.s32 0, %v3043
      %v3045 = vrot.slane %v3040, %v3044
      %v3063 = vunpack.c.l.b16 %v3023
      %v3064 = vunpack.c.l.b16 %v3024
      %v3065 = vunpack.c.l.b16 %v3025
      %v3066 = vunpack.c.l.b16 %v3026
      %v3067 = vunpack.c.l.b16 %v3027
      %v3068 = vunpack.c.l.b16 %v3028
      %v3069 = vunpack.c.l.b16 %v3029
      %v3070 = vunpack.c.l.b16 %v3030
      %v3071 = vunpack.c.l.b16 %v3031
      %v3072 = vunpack.c.l.b16 %v3032
      %v3073 = vunpack.c.l.b16 %v3033
      %v3074 = vunpack.c.l.b16 %v3034
      %v3075 = vunpack.c.l.b16 %v3035
      %v3076 = vunpack.c.l.b16 %v3036
      %v3077 = vunpack.c.l.b16 %v3037
      %v3078 = vunpack.c.l.b16 %v3038
      %v3079 = vpack.c.b16 %v3064, %v3063
      %v3080 = vpack.c.b16 %v3066, %v3065
      %v3081 = vpack.c.b16 %v3068, %v3067
      %v3082 = vpack.c.b16 %v3070, %v3069
      %v3083 = vpack.c.b16 %v3072, %v3071
      %v3084 = vpack.c.b16 %v3074, %v3073
      %v3085 = vpack.c.b16 %v3076, %v3075
      %v3086 = vpack.c.b16 %v3078, %v3077
      %3095 = vmatprep.subr.bf16.mxu0 0
      %3096 = vmatpush1.bf16.msra.mxu0 %v3079
      %3097 = vmatprep.subr.bf16.mxu0 0
      %3098 = vmatpush1.bf16.msra.mxu0 %v3080
      %3099 = vmatprep.subr.bf16.mxu0 0
      %3100 = vmatpush1.bf16.msra.mxu0 %v3081
      %3101 = vmatprep.subr.bf16.mxu0 0
      %3102 = vmatpush1.bf16.msra.mxu0 %v3082
      %3103 = vmatprep.subr.bf16.mxu0 0
      %3104 = vmatpush1.bf16.msra.mxu0 %v3083
      %3105 = vmatprep.subr.bf16.mxu0 0
      %3106 = vmatpush1.bf16.msra.mxu0 %v3084
      %3107 = vmatprep.subr.bf16.mxu0 0
      %3108 = vmatpush1.bf16.msra.mxu0 %v3085
      %3109 = vmatprep.subr.bf16.mxu0 0
      %3110 = vmatpush1.bf16.msra.mxu0 %v3086
      %3111 = vmatprep.subr.bf16.mxu0 0
      %3112 = vmatpush1.bf16.msra.mxu0 0
      %3113 = vmatprep.subr.bf16.mxu0 0
      %3114 = vmatpush1.bf16.msra.mxu0 0
      %3115 = vmatprep.subr.bf16.mxu0 0
      %3116 = vmatpush1.bf16.msra.mxu0 0
      %3117 = vmatprep.subr.bf16.mxu0 0
      %3118 = vmatpush1.bf16.msra.mxu0 0
      %3119 = vmatprep.subr.bf16.mxu0 0
      %3120 = vmatpush1.bf16.msra.mxu0 0
      %3121 = vmatprep.subr.bf16.mxu0 0
      %3122 = vmatpush1.bf16.msra.mxu0 0
      %3123 = vmatprep.subr.bf16.mxu0 0
      %3124 = vmatpush1.bf16.msra.mxu0 0
      %3125 = vmatprep.subr.bf16.mxu0 0
      %3126 = vmatpush1.bf16.msra.mxu0 0
      %3127 = vmatprep.mubr.bf16.mxu0 0
      %3128 = vmatmul.mubr.bf16.gmra.mrb[0].mxu0 %v1029
      %v3129 = vpop.f32.mrb[0].mxu0
      %v3130 = vadd.f32 %v3045, %v3129
      %v3131 = vpop.f32.mrb[0].mxu0
      %v3132 = vpop.f32.mrb[0].mxu0
      %v3133 = vadd.f32 %v3045, %v3132
      %v3134 = vpop.f32.mrb[0].mxu0
      %3135 = vdwg.mxu0
      %s3136 = scalar_lea.vmem %s935, 192
      %v3137 = vld [vmem:[%s3136] sm:$0xf]
      %v3138 = vld [vmem:[%s3136 + $0x4] sm:$0xf]
      %v3139 = vld [vmem:[%s3136 + $0x8] sm:$0xf]
      %v3140 = vld [vmem:[%s3136 + $0xc] sm:$0xf]
      %v3141 = vld [vmem:[%s3136 + $0x10] sm:$0xf]
      %v3142 = vld [vmem:[%s3136 + $0x14] sm:$0xf]
      %v3143 = vld [vmem:[%s3136 + $0x18] sm:$0xf]
      %v3144 = vld [vmem:[%s3136 + $0x1c] sm:$0xf]
      %v3145 = vld [vmem:[%s3136 + $0x20] sm:$0xf]
      %v3146 = vld [vmem:[%s3136 + $0x24] sm:$0xf]
      %v3147 = vld [vmem:[%s3136 + $0x28] sm:$0xf]
      %v3148 = vld [vmem:[%s3136 + $0x2c] sm:$0xf]
      %v3149 = vld [vmem:[%s3136 + $0x30] sm:$0xf]
      %v3150 = vld [vmem:[%s3136 + $0x34] sm:$0xf]
      %v3151 = vld [vmem:[%s3136 + $0x38] sm:$0xf]
      %v3152 = vld [vmem:[%s3136 + $0x3c] sm:$0xf]
      %s3153 = scalar_lea.vmem %s939, 3
      %v3154 = vld [vmem:[%s3153] sm:$0x1]
      %v3156 = vlaneseq
      %v3157 = vshrl.u32 %v3156, 7
      %v3158 = vsub.s32 0, %v3157
      %v3159 = vrot.slane %v3154, %v3158
      %v3177 = vunpack.c.l.b16 %v3137
      %v3178 = vunpack.c.l.b16 %v3138
      %v3179 = vunpack.c.l.b16 %v3139
      %v3180 = vunpack.c.l.b16 %v3140
      %v3181 = vunpack.c.l.b16 %v3141
      %v3182 = vunpack.c.l.b16 %v3142
      %v3183 = vunpack.c.l.b16 %v3143
      %v3184 = vunpack.c.l.b16 %v3144
      %v3185 = vunpack.c.l.b16 %v3145
      %v3186 = vunpack.c.l.b16 %v3146
      %v3187 = vunpack.c.l.b16 %v3147
      %v3188 = vunpack.c.l.b16 %v3148
      %v3189 = vunpack.c.l.b16 %v3149
      %v3190 = vunpack.c.l.b16 %v3150
      %v3191 = vunpack.c.l.b16 %v3151
      %v3192 = vunpack.c.l.b16 %v3152
      %v3193 = vpack.c.b16 %v3178, %v3177
      %v3194 = vpack.c.b16 %v3180, %v3179
      %v3195 = vpack.c.b16 %v3182, %v3181
      %v3196 = vpack.c.b16 %v3184, %v3183
      %v3197 = vpack.c.b16 %v3186, %v3185
      %v3198 = vpack.c.b16 %v3188, %v3187
      %v3199 = vpack.c.b16 %v3190, %v3189
      %v3200 = vpack.c.b16 %v3192, %v3191
      %3209 = vmatprep.subr.bf16.mxu0 0
      %3210 = vmatpush1.bf16.msra.mxu0 %v3193
      %3211 = vmatprep.subr.bf16.mxu0 0
      %3212 = vmatpush1.bf16.msra.mxu0 %v3194
      %3213 = vmatprep.subr.bf16.mxu0 0
      %3214 = vmatpush1.bf16.msra.mxu0 %v3195
      %3215 = vmatprep.subr.bf16.mxu0 0
      %3216 = vmatpush1.bf16.msra.mxu0 %v3196
      %3217 = vmatprep.subr.bf16.mxu0 0
      %3218 = vmatpush1.bf16.msra.mxu0 %v3197
      %3219 = vmatprep.subr.bf16.mxu0 0
      %3220 = vmatpush1.bf16.msra.mxu0 %v3198
      %3221 = vmatprep.subr.bf16.mxu0 0
      %3222 = vmatpush1.bf16.msra.mxu0 %v3199
      %3223 = vmatprep.subr.bf16.mxu0 0
      %3224 = vmatpush1.bf16.msra.mxu0 %v3200
      %3225 = vmatprep.subr.bf16.mxu0 0
      %3226 = vmatpush1.bf16.msra.mxu0 0
      %3227 = vmatprep.subr.bf16.mxu0 0
      %3228 = vmatpush1.bf16.msra.mxu0 0
      %3229 = vmatprep.subr.bf16.mxu0 0
      %3230 = vmatpush1.bf16.msra.mxu0 0
      %3231 = vmatprep.subr.bf16.mxu0 0
      %3232 = vmatpush1.bf16.msra.mxu0 0
      %3233 = vmatprep.subr.bf16.mxu0 0
      %3234 = vmatpush1.bf16.msra.mxu0 0
      %3235 = vmatprep.subr.bf16.mxu0 0
      %3236 = vmatpush1.bf16.msra.mxu0 0
      %3237 = vmatprep.subr.bf16.mxu0 0
      %3238 = vmatpush1.bf16.msra.mxu0 0
      %3239 = vmatprep.subr.bf16.mxu0 0
      %3240 = vmatpush1.bf16.msra.mxu0 0
      %3241 = vmatprep.mubr.bf16.mxu0 0
      %3242 = vmatmul.mubr.bf16.gmra.mrb[0].mxu0 %v1029
      %v3243 = vpop.f32.mrb[0].mxu0
      %v3244 = vadd.f32 %v3159, %v3243
      %v3245 = vpop.f32.mrb[0].mxu0
      %v3246 = vpop.f32.mrb[0].mxu0
      %v3247 = vadd.f32 %v3159, %v3246
      %v3248 = vpop.f32.mrb[0].mxu0
      %3249 = vdwg.mxu0
      %v3250 = vpack.c.bf16 %v3016, %v3016
      %v3251 = vpack.c.bf16 %v3019, %v3019
      %v3252 = vpack.c.bf16 %v3130, %v3130
      %v3253 = vpack.c.bf16 %v3133, %v3133
      %v3254 = vpack.c.bf16 %v3244, %v3244
      %v3255 = vpack.c.bf16 %v3247, %v3247
      %v3257 = vsel %vm1374, %v3250, 0
      %v3260 = vsel %vm1374, %v3252, 0
      %3262 = vmatprep.subr.bf16.mxu0 0
      %3263 = vmatpush1.bf16.xpose.msra.mxu0 %v3260
      %3264 = vmatprep.subr.bf16.mxu0 0
      %3265 = vmatpush1.bf16.xpose.msra.mxu0 0
      %3266 = vmatprep.subr.bf16.mxu0 0
      %3267 = vmatpush1.bf16.xpose.msra.mxu0 0
      %3268 = vmatprep.subr.bf16.mxu0 0
      %3269 = vmatpush1.bf16.xpose.msra.mxu0 0
      %3270 = vmatprep.subr.bf16.mxu0 0
      %3271 = vmatpush1.bf16.xpose.msra.mxu0 0
      %3272 = vmatprep.subr.bf16.mxu0 0
      %3273 = vmatpush1.bf16.xpose.msra.mxu0 0
      %3274 = vmatprep.subr.bf16.mxu0 0
      %3275 = vmatpush1.bf16.xpose.msra.mxu0 0
      %3276 = vmatprep.subr.bf16.mxu0 0
      %3277 = vmatpush1.bf16.xpose.msra.mxu0 0
      %3278 = vmatprep.subr.bf16.mxu0 0
      %3279 = vmatpush1.bf16.xpose.msra.mxu0 0
      %3280 = vmatprep.subr.bf16.mxu0 0
      %3281 = vmatpush1.bf16.xpose.msra.mxu0 0
      %3282 = vmatprep.subr.bf16.mxu0 0
      %3283 = vmatpush1.bf16.xpose.msra.mxu0 0
      %3284 = vmatprep.subr.bf16.mxu0 0
      %3285 = vmatpush1.bf16.xpose.msra.mxu0 0
      %3286 = vmatprep.subr.bf16.mxu0 0
      %3287 = vmatpush1.bf16.xpose.msra.mxu0 0
      %3288 = vmatprep.subr.bf16.mxu0 0
      %3289 = vmatpush1.bf16.xpose.msra.mxu0 0
      %3290 = vmatprep.subr.bf16.mxu0 0
      %3291 = vmatpush1.bf16.xpose.msra.mxu0 0
      %3292 = vmatprep.subr.bf16.mxu0 0
      %3293 = vmatpush1.bf16.xpose.msra.mxu0 0
      %3294 = vmatprep.mubr.bf16.mxu0 0
      %3295 = vmatmul.mubr.bf16.gmra.mrb[0].mxu0 %v3257
      %v3296 = vpop.f32.mrb[0].mxu0
      %v3297 = vadd.f32 0.0, %v3296
      %v3298 = vpop.f32.mrb[0].mxu0
      %v3299 = vpop.f32.mrb[0].mxu0
      %v3300 = vpop.f32.mrb[0].mxu0
      %3301 = vdwg.mxu0
      %v3303 = vsel %vm1374, %v3251, 0
      %v3306 = vsel %vm1374, %v3253, 0
      %3308 = vmatprep.subr.bf16.mxu0 0
      %3309 = vmatpush1.bf16.xpose.msra.mxu0 %v3306
      %3310 = vmatprep.subr.bf16.mxu0 0
      %3311 = vmatpush1.bf16.xpose.msra.mxu0 0
      %3312 = vmatprep.subr.bf16.mxu0 0
      %3313 = vmatpush1.bf16.xpose.msra.mxu0 0
      %3314 = vmatprep.subr.bf16.mxu0 0
      %3315 = vmatpush1.bf16.xpose.msra.mxu0 0
      %3316 = vmatprep.subr.bf16.mxu0 0
      %3317 = vmatpush1.bf16.xpose.msra.mxu0 0
      %3318 = vmatprep.subr.bf16.mxu0 0
      %3319 = vmatpush1.bf16.xpose.msra.mxu0 0
      %3320 = vmatprep.subr.bf16.mxu0 0
      %3321 = vmatpush1.bf16.xpose.msra.mxu0 0
      %3322 = vmatprep.subr.bf16.mxu0 0
      %3323 = vmatpush1.bf16.xpose.msra.mxu0 0
      %3324 = vmatprep.subr.bf16.mxu0 0
      %3325 = vmatpush1.bf16.xpose.msra.mxu0 0
      %3326 = vmatprep.subr.bf16.mxu0 0
      %3327 = vmatpush1.bf16.xpose.msra.mxu0 0
      %3328 = vmatprep.subr.bf16.mxu0 0
      %3329 = vmatpush1.bf16.xpose.msra.mxu0 0
      %3330 = vmatprep.subr.bf16.mxu0 0
      %3331 = vmatpush1.bf16.xpose.msra.mxu0 0
      %3332 = vmatprep.subr.bf16.mxu0 0
      %3333 = vmatpush1.bf16.xpose.msra.mxu0 0
      %3334 = vmatprep.subr.bf16.mxu0 0
      %3335 = vmatpush1.bf16.xpose.msra.mxu0 0
      %3336 = vmatprep.subr.bf16.mxu0 0
      %3337 = vmatpush1.bf16.xpose.msra.mxu0 0
      %3338 = vmatprep.subr.bf16.mxu0 0
      %3339 = vmatpush1.bf16.xpose.msra.mxu0 0
      %3340 = vmatprep.mubr.bf16.mxu0 0
      %3341 = vmatmul.mubr.bf16.gmra.mrb[0].mxu0 %v3303
      %v3342 = vpop.f32.mrb[0].mxu0
      %v3343 = vadd.f32 0.0, %v3342
      %v3344 = vpop.f32.mrb[0].mxu0
      %v3345 = vpop.f32.mrb[0].mxu0
      %v3346 = vpop.f32.mrb[0].mxu0
      %3347 = vdwg.mxu0
      %v3348 = vmul.f32 %v3297, 0.17677669
      %v3349 = vmul.f32 %v3343, 0.17677669
      %v3350 = vadd.f32 %v3348, %v1474
      %v3351 = vadd.f32 %v3349, %v1478
      %v3352 = vsel %vm1483, %v3350, -inf
      %3353 = vmax.xlane.f32.xlu0 %v3352
      %v3354 = vpop.xlane.xlu0 %3353
      %v3355 = vsel %vm1483, %v3351, -inf
      %3356 = vmax.xlane.f32.xlu0 %v3355
      %v3357 = vpop.xlane.xlu0 %3356
      %v3358 = vsub.f32 %v3350, %v3354
      %v3359 = vsub.f32 %v3351, %v3357
      %v3360 = vmul.f32 %v3358, 1.442695
      %v3361 = vpow.pop %v3360
      %v3362 = vmul.f32 %v3359, 1.442695
      %v3363 = vpow.pop %v3362
      %v3364 = vsel %vm1483, %v3361, 0.0
      %3365 = vadd.xlane.f32.xlu0 %v3364
      %v3366 = vpop.xlane.xlu0 %3365
      %v3367 = vsel %vm1483, %v3363, 0.0
      %3368 = vadd.xlane.f32.xlu0 %v3367
      %v3369 = vpop.xlane.xlu0 %3368
      %v3370 = vrcp.pop %v3366
      %v3371 = vrcp.pop %v3369
      %v3372 = vmul.f32 %v3361, %v3370
      %v3373 = vmul.f32 %v3363, %v3371
      %v3374 = vpack.c.bf16 %v3372, %v3372
      %v3375 = vpack.c.bf16 %v3373, %v3373
      %v3377 = vsel %vm1483, %v3374, 0
      %v3380 = vsel %vm1511, %v3254, 0
      %3382 = vmatprep.subr.bf16.mxu0 0
      %3383 = vmatpush1.bf16.msra.mxu0 %v3380
      %3384 = vmatprep.subr.bf16.mxu0 0
      %3385 = vmatpush1.bf16.msra.mxu0 0
      %3386 = vmatprep.subr.bf16.mxu0 0
      %3387 = vmatpush1.bf16.msra.mxu0 0
      %3388 = vmatprep.subr.bf16.mxu0 0
      %3389 = vmatpush1.bf16.msra.mxu0 0
      %3390 = vmatprep.subr.bf16.mxu0 0
      %3391 = vmatpush1.bf16.msra.mxu0 0
      %3392 = vmatprep.subr.bf16.mxu0 0
      %3393 = vmatpush1.bf16.msra.mxu0 0
      %3394 = vmatprep.subr.bf16.mxu0 0
      %3395 = vmatpush1.bf16.msra.mxu0 0
      %3396 = vmatprep.subr.bf16.mxu0 0
      %3397 = vmatpush1.bf16.msra.mxu0 0
      %3398 = vmatprep.subr.bf16.mxu0 0
      %3399 = vmatpush1.bf16.msra.mxu0 0
      %3400 = vmatprep.subr.bf16.mxu0 0
      %3401 = vmatpush1.bf16.msra.mxu0 0
      %3402 = vmatprep.subr.bf16.mxu0 0
      %3403 = vmatpush1.bf16.msra.mxu0 0
      %3404 = vmatprep.subr.bf16.mxu0 0
      %3405 = vmatpush1.bf16.msra.mxu0 0
      %3406 = vmatprep.subr.bf16.mxu0 0
      %3407 = vmatpush1.bf16.msra.mxu0 0
      %3408 = vmatprep.subr.bf16.mxu0 0
      %3409 = vmatpush1.bf16.msra.mxu0 0
      %3410 = vmatprep.subr.bf16.mxu0 0
      %3411 = vmatpush1.bf16.msra.mxu0 0
      %3412 = vmatprep.subr.bf16.mxu0 0
      %3413 = vmatpush1.bf16.msra.mxu0 0
      %3414 = vmatprep.mubr.bf16.mxu0 0
      %3415 = vmatmul.mubr.bf16.gmra.mrb[0].mxu0 %v3377
      %v3416 = vpop.f32.mrb[0].mxu0
      %v3417 = vadd.f32 0.0, %v3416
      %v3418 = vpop.f32.mrb[0].mxu0
      %v3419 = vpop.f32.mrb[0].mxu0
      %v3420 = vpop.f32.mrb[0].mxu0
      %3421 = vdwg.mxu0
      %v3423 = vsel %vm1483, %v3375, 0
      %v3426 = vsel %vm1511, %v3255, 0
      %3428 = vmatprep.subr.bf16.mxu0 0
      %3429 = vmatpush1.bf16.msra.mxu0 %v3426
      %3430 = vmatprep.subr.bf16.mxu0 0
      %3431 = vmatpush1.bf16.msra.mxu0 0
      %3432 = vmatprep.subr.bf16.mxu0 0
      %3433 = vmatpush1.bf16.msra.mxu0 0
      %3434 = vmatprep.subr.bf16.mxu0 0
      %3435 = vmatpush1.bf16.msra.mxu0 0
      %3436 = vmatprep.subr.bf16.mxu0 0
      %3437 = vmatpush1.bf16.msra.mxu0 0
      %3438 = vmatprep.subr.bf16.mxu0 0
      %3439 = vmatpush1.bf16.msra.mxu0 0
      %3440 = vmatprep.subr.bf16.mxu0 0
      %3441 = vmatpush1.bf16.msra.mxu0 0
      %3442 = vmatprep.subr.bf16.mxu0 0
      %3443 = vmatpush1.bf16.msra.mxu0 0
      %3444 = vmatprep.subr.bf16.mxu0 0
      %3445 = vmatpush1.bf16.msra.mxu0 0
      %3446 = vmatprep.subr.bf16.mxu0 0
      %3447 = vmatpush1.bf16.msra.mxu0 0
      %3448 = vmatprep.subr.bf16.mxu0 0
      %3449 = vmatpush1.bf16.msra.mxu0 0
      %3450 = vmatprep.subr.bf16.mxu0 0
      %3451 = vmatpush1.bf16.msra.mxu0 0
      %3452 = vmatprep.subr.bf16.mxu0 0
      %3453 = vmatpush1.bf16.msra.mxu0 0
      %3454 = vmatprep.subr.bf16.mxu0 0
      %3455 = vmatpush1.bf16.msra.mxu0 0
      %3456 = vmatprep.subr.bf16.mxu0 0
      %3457 = vmatpush1.bf16.msra.mxu0 0
      %3458 = vmatprep.subr.bf16.mxu0 0
      %3459 = vmatpush1.bf16.msra.mxu0 0
      %3460 = vmatprep.mubr.bf16.mxu0 0
      %3461 = vmatmul.mubr.bf16.gmra.mrb[0].mxu0 %v3423
      %v3462 = vpop.f32.mrb[0].mxu0
      %v3463 = vadd.f32 0.0, %v3462
      %v3464 = vpop.f32.mrb[0].mxu0
      %v3465 = vpop.f32.mrb[0].mxu0
      %v3466 = vpop.f32.mrb[0].mxu0
      %3467 = vdwg.mxu0
      %v3468 = vpack.c.bf16 %v3463, %v3417
      %s3469 = scalar_lea.vmem %s944, 48
      %v3470 = vld [vmem:[%s3469] sm:$0xf]
      %v3471 = vld [vmem:[%s3469 + $0x4] sm:$0xf]
      %v3472 = vld [vmem:[%s3469 + $0x8] sm:$0xf]
      %v3473 = vld [vmem:[%s3469 + $0xc] sm:$0xf]
      %v3478 = vunpack.c.l.b16 %v3470
      %v3479 = vunpack.c.l.b16 %v3471
      %v3480 = vunpack.c.l.b16 %v3472
      %v3481 = vunpack.c.l.b16 %v3473
      %v3482 = vpack.c.b16 %v3479, %v3478
      %v3483 = vpack.c.b16 %v3481, %v3480
      %v3487 = vsel %vm1374, %v3468, 0
      %3489 = vmatprep.subr.bf16.mxu0 0
      %3490 = vmatpush1.bf16.msra.mxu0 %v3482
      %3491 = vmatprep.subr.bf16.mxu0 0
      %3492 = vmatpush1.bf16.msra.mxu0 %v3483
      %3493 = vmatprep.subr.bf16.mxu0 0
      %3494 = vmatpush1.bf16.msra.mxu0 0
      %3495 = vmatprep.subr.bf16.mxu0 0
      %3496 = vmatpush1.bf16.msra.mxu0 0
      %3497 = vmatprep.subr.bf16.mxu0 0
      %3498 = vmatpush1.bf16.msra.mxu0 0
      %3499 = vmatprep.subr.bf16.mxu0 0
      %3500 = vmatpush1.bf16.msra.mxu0 0
      %3501 = vmatprep.subr.bf16.mxu0 0
      %3502 = vmatpush1.bf16.msra.mxu0 0
      %3503 = vmatprep.subr.bf16.mxu0 0
      %3504 = vmatpush1.bf16.msra.mxu0 0
      %3505 = vmatprep.subr.bf16.mxu0 0
      %3506 = vmatpush1.bf16.msra.mxu0 0
      %3507 = vmatprep.subr.bf16.mxu0 0
      %3508 = vmatpush1.bf16.msra.mxu0 0
      %3509 = vmatprep.subr.bf16.mxu0 0
      %3510 = vmatpush1.bf16.msra.mxu0 0
      %3511 = vmatprep.subr.bf16.mxu0 0
      %3512 = vmatpush1.bf16.msra.mxu0 0
      %3513 = vmatprep.subr.bf16.mxu0 0
      %3514 = vmatpush1.bf16.msra.mxu0 0
      %3515 = vmatprep.subr.bf16.mxu0 0
      %3516 = vmatpush1.bf16.msra.mxu0 0
      %3517 = vmatprep.subr.bf16.mxu0 0
      %3518 = vmatpush1.bf16.msra.mxu0 0
      %3519 = vmatprep.subr.bf16.mxu0 0
      %3520 = vmatpush1.bf16.msra.mxu0 0
      %3521 = vmatprep.mubr.bf16.mxu0 0
      %3522 = vmatmul.mubr.bf16.gmra.mrb[0].mxu0 %v3487
      %v3523 = vpop.f32.mrb[0].mxu0
      %v3524 = vadd.f32 0.0, %v3523
      %v3525 = vpop.f32.mrb[0].mxu0
      %v3526 = vpop.f32.mrb[0].mxu0
      %v3527 = vadd.f32 0.0, %v3526
      %v3528 = vpop.f32.mrb[0].mxu0
      %3529 = vdwg.mxu0
      %v3530 = vadd.f32 %v2906, %v3524
      %v3531 = vadd.f32 %v2907, %v3527
      %v3532 = vld [vmem:[%s947] sm:$0x1]
      %v3534 = vlaneseq
      %v3535 = vshrl.u32 %v3534, 7
      %v3536 = vsub.s32 0, %v3535
      %v3537 = vrot.slane %v3532, %v3536
      %v3539 = vadd.f32 %v3530, %v3537
      %v3540 = vadd.f32 %v3531, %v3537
      %v3541 = vadd.f32 %v1027, %v3539
      %v3542 = vadd.f32 %v1028, %v3540
      %v3543 = vld [vmem:[%s950] sm:$0x1]
      %v3544 = vld [vmem:[%s953] sm:$0x1]
      %3545 = vadd.xlane.f32.xlu0 %v3541
      %v3546 = vpop.xlane.xlu0 %3545
      %3547 = vadd.xlane.f32.xlu0 %v3542
      %v3548 = vpop.xlane.xlu0 %3547
      %v3549 = vrcp.pop 128.0
      %v3550 = vmul.f32 %v3546, %v3549
      %v3551 = vmul.f32 %v3548, %v3549
      %v3552 = vsub.f32 %v3541, %v3550
      %v3553 = vsub.f32 %v3542, %v3551
      %v3554 = vmul.f32 %v3552, %v3552
      %v3555 = vmul.f32 %v3553, %v3553
      %3556 = vadd.xlane.f32.xlu0 %v3554
      %v3557 = vpop.xlane.xlu0 %3556
      %3558 = vadd.xlane.f32.xlu0 %v3555
      %v3559 = vpop.xlane.xlu0 %3558
      %v3560 = vmul.f32 %v3557, %v3549
      %v3561 = vmul.f32 %v3559, %v3549
      %v3562 = vadd.f32 %v3560, 1e-12
      %v3563 = vadd.f32 %v3561, 1e-12
      %v3564 = vrsqrt.pop %v3562
      %v3565 = vrsqrt.pop %v3563
      %v3566 = vmul.f32 %v3552, %v3564
      %v3567 = vmul.f32 %v3553, %v3565
      %v3569 = vlaneseq
      %v3570 = vshrl.u32 %v3569, 7
      %v3571 = vsub.s32 0, %v3570
      %v3572 = vrot.slane %v3543, %v3571
      %v3574 = vmul.f32 %v3566, %v3572
      %v3575 = vmul.f32 %v3567, %v3572
      %v3577 = vlaneseq
      %v3578 = vshrl.u32 %v3577, 7
      %v3579 = vsub.s32 0, %v3578
      %v3580 = vrot.slane %v3544, %v3579
      %v3582 = vadd.f32 %v3574, %v3580
      %v3583 = vadd.f32 %v3575, %v3580
      %v3584 = vpack.c.bf16 %v3583, %v3582
      %v3585 = vld [vmem:[%s958] sm:$0xff]
      %v3586 = vld [vmem:[%s958 + $0x8] sm:$0xff]
      %v3587 = vld [vmem:[%s958 + $0x10] sm:$0xff]
      %v3588 = vld [vmem:[%s958 + $0x18] sm:$0xff]
      %v3589 = vld [vmem:[%s958 + $0x20] sm:$0xff]
      %v3590 = vld [vmem:[%s958 + $0x28] sm:$0xff]
      %v3591 = vld [vmem:[%s958 + $0x30] sm:$0xff]
      %v3592 = vld [vmem:[%s958 + $0x38] sm:$0xff]
      %v3593 = vld [vmem:[%s958 + $0x40] sm:$0xff]
      %v3594 = vld [vmem:[%s958 + $0x48] sm:$0xff]
      %v3595 = vld [vmem:[%s958 + $0x50] sm:$0xff]
      %v3596 = vld [vmem:[%s958 + $0x58] sm:$0xff]
      %v3597 = vld [vmem:[%s958 + $0x60] sm:$0xff]
      %v3598 = vld [vmem:[%s958 + $0x68] sm:$0xff]
      %v3599 = vld [vmem:[%s958 + $0x70] sm:$0xff]
      %v3600 = vld [vmem:[%s958 + $0x78] sm:$0xff]
      %v3601 = vld [vmem:[%s962] sm:$0x3]
      %v3603 = vlaneseq
      %v3604 = vshrl.u32 %v3603, 7
      %v3605 = vsub.s32 0, %v3604
      %v3606 = vrot.slane %v3601, %v3605
      %v3607 = vlaneseq
      %v3608 = vshrl.u32 %v3607, 7
      %v3609 = vsub.s32 1, %v3608
      %v3610 = vrot.slane %v3601, %v3609
      %v3629 = vunpack.c.l.b16 %v3585
      %v3630 = vunpack.c.h.b16 %v3585
      %v3631 = vunpack.c.l.b16 %v3586
      %v3632 = vunpack.c.h.b16 %v3586
      %v3633 = vunpack.c.l.b16 %v3587
      %v3634 = vunpack.c.h.b16 %v3587
      %v3635 = vunpack.c.l.b16 %v3588
      %v3636 = vunpack.c.h.b16 %v3588
      %v3637 = vunpack.c.l.b16 %v3589
      %v3638 = vunpack.c.h.b16 %v3589
      %v3639 = vunpack.c.l.b16 %v3590
      %v3640 = vunpack.c.h.b16 %v3590
      %v3641 = vunpack.c.l.b16 %v3591
      %v3642 = vunpack.c.h.b16 %v3591
      %v3643 = vunpack.c.l.b16 %v3592
      %v3644 = vunpack.c.h.b16 %v3592
      %v3645 = vunpack.c.l.b16 %v3593
      %v3646 = vunpack.c.h.b16 %v3593
      %v3647 = vunpack.c.l.b16 %v3594
      %v3648 = vunpack.c.h.b16 %v3594
      %v3649 = vunpack.c.l.b16 %v3595
      %v3650 = vunpack.c.h.b16 %v3595
      %v3651 = vunpack.c.l.b16 %v3596
      %v3652 = vunpack.c.h.b16 %v3596
      %v3653 = vunpack.c.l.b16 %v3597
      %v3654 = vunpack.c.h.b16 %v3597
      %v3655 = vunpack.c.l.b16 %v3598
      %v3656 = vunpack.c.h.b16 %v3598
      %v3657 = vunpack.c.l.b16 %v3599
      %v3658 = vunpack.c.h.b16 %v3599
      %v3659 = vunpack.c.l.b16 %v3600
      %v3660 = vunpack.c.h.b16 %v3600
      %v3661 = vpack.c.b16 %v3631, %v3629
      %v3662 = vpack.c.b16 %v3632, %v3630
      %v3663 = vpack.c.b16 %v3635, %v3633
      %v3664 = vpack.c.b16 %v3636, %v3634
      %v3665 = vpack.c.b16 %v3639, %v3637
      %v3666 = vpack.c.b16 %v3640, %v3638
      %v3667 = vpack.c.b16 %v3643, %v3641
      %v3668 = vpack.c.b16 %v3644, %v3642
      %v3669 = vpack.c.b16 %v3647, %v3645
      %v3670 = vpack.c.b16 %v3648, %v3646
      %v3671 = vpack.c.b16 %v3651, %v3649
      %v3672 = vpack.c.b16 %v3652, %v3650
      %v3673 = vpack.c.b16 %v3655, %v3653
      %v3674 = vpack.c.b16 %v3656, %v3654
      %v3675 = vpack.c.b16 %v3659, %v3657
      %v3676 = vpack.c.b16 %v3660, %v3658
      %3693 = vmatprep.subr.bf16.mxu0 %v3662
      %3694 = vmatpush1.bf16.msra.mxu0 %v3661
      %3695 = vmatprep.subr.bf16.mxu0 %v3664
      %3696 = vmatpush1.bf16.msra.mxu0 %v3663
      %3697 = vmatprep.subr.bf16.mxu0 %v3666
      %3698 = vmatpush1.bf16.msra.mxu0 %v3665
      %3699 = vmatprep.subr.bf16.mxu0 %v3668
      %3700 = vmatpush1.bf16.msra.mxu0 %v3667
      %3701 = vmatprep.subr.bf16.mxu0 %v3670
      %3702 = vmatpush1.bf16.msra.mxu0 %v3669
      %3703 = vmatprep.subr.bf16.mxu0 %v3672
      %3704 = vmatpush1.bf16.msra.mxu0 %v3671
      %3705 = vmatprep.subr.bf16.mxu0 %v3674
      %3706 = vmatpush1.bf16.msra.mxu0 %v3673
      %3707 = vmatprep.subr.bf16.mxu0 %v3676
      %3708 = vmatpush1.bf16.msra.mxu0 %v3675
      %3709 = vmatprep.subr.bf16.mxu0 0
      %3710 = vmatpush1.bf16.msra.mxu0 0
      %3711 = vmatprep.subr.bf16.mxu0 0
      %3712 = vmatpush1.bf16.msra.mxu0 0
      %3713 = vmatprep.subr.bf16.mxu0 0
      %3714 = vmatpush1.bf16.msra.mxu0 0
      %3715 = vmatprep.subr.bf16.mxu0 0
      %3716 = vmatpush1.bf16.msra.mxu0 0
      %3717 = vmatprep.subr.bf16.mxu0 0
      %3718 = vmatpush1.bf16.msra.mxu0 0
      %3719 = vmatprep.subr.bf16.mxu0 0
      %3720 = vmatpush1.bf16.msra.mxu0 0
      %3721 = vmatprep.subr.bf16.mxu0 0
      %3722 = vmatpush1.bf16.msra.mxu0 0
      %3723 = vmatprep.subr.bf16.mxu0 0
      %3724 = vmatpush1.bf16.msra.mxu0 0
      %3725 = vmatprep.mubr.bf16.mxu0 0
      %3726 = vmatmul.mubr.bf16.gmra.mrb[0].mxu0 %v3584
      %v3727 = vpop.f32.mrb[0].mxu0
      %v3728 = vadd.f32 %v3606, %v3727
      %v3729 = vpop.f32.mrb[0].mxu0
      %v3730 = vadd.f32 %v3610, %v3729
      %v3731 = vpop.f32.mrb[0].mxu0
      %v3732 = vadd.f32 %v3606, %v3731
      %v3733 = vpop.f32.mrb[0].mxu0
      %v3734 = vadd.f32 %v3610, %v3733
      %3735 = vdwg.mxu0
      %v3736 = vmul.f32 %v3728, 0.5
      %v3737 = vmul.f32 %v3730, 0.5
      %v3738 = vmul.f32 %v3732, 0.5
      %v3739 = vmul.f32 %v3734, 0.5
      %v3740 = vmul.f32 %v3728, 0.70710677
      %v3741 = vmul.f32 %v3730, 0.70710677
      %v3742 = vmul.f32 %v3732, 0.70710677
      %v3743 = vmul.f32 %v3734, 0.70710677
      %v3744 = verf.f32.pop %v3740
      %v3745 = verf.f32.pop %v3741
      %v3746 = verf.f32.pop %v3742
      %v3747 = verf.f32.pop %v3743
      %v3748 = vadd.f32 %v3744, 1.0
      %v3749 = vadd.f32 %v3745, 1.0
      %v3750 = vadd.f32 %v3746, 1.0
      %v3751 = vadd.f32 %v3747, 1.0
      %v3752 = vmul.f32 %v3736, %v3748
      %v3753 = vmul.f32 %v3737, %v3749
      %v3754 = vmul.f32 %v3738, %v3750
      %v3755 = vmul.f32 %v3739, %v3751
      %v3756 = vpack.c.bf16 %v3754, %v3752
      %v3757 = vpack.c.bf16 %v3755, %v3753
      %v3758 = vld [vmem:[%s967] sm:$0xf]
      %v3759 = vld [vmem:[%s967 + $0x4] sm:$0xf]
      %v3760 = vld [vmem:[%s967 + $0x8] sm:$0xf]
      %v3761 = vld [vmem:[%s967 + $0xc] sm:$0xf]
      %v3762 = vld [vmem:[%s967 + $0x10] sm:$0xf]
      %v3763 = vld [vmem:[%s967 + $0x14] sm:$0xf]
      %v3764 = vld [vmem:[%s967 + $0x18] sm:$0xf]
      %v3765 = vld [vmem:[%s967 + $0x1c] sm:$0xf]
      %v3766 = vld [vmem:[%s967 + $0x20] sm:$0xf]
      %v3767 = vld [vmem:[%s967 + $0x24] sm:$0xf]
      %v3768 = vld [vmem:[%s967 + $0x28] sm:$0xf]
      %v3769 = vld [vmem:[%s967 + $0x2c] sm:$0xf]
      %v3770 = vld [vmem:[%s967 + $0x30] sm:$0xf]
      %v3771 = vld [vmem:[%s967 + $0x34] sm:$0xf]
      %v3772 = vld [vmem:[%s967 + $0x38] sm:$0xf]
      %v3773 = vld [vmem:[%s967 + $0x3c] sm:$0xf]
      %v3774 = vld [vmem:[%s967 + $0x40] sm:$0xf]
      %v3775 = vld [vmem:[%s967 + $0x44] sm:$0xf]
      %v3776 = vld [vmem:[%s967 + $0x48] sm:$0xf]
      %v3777 = vld [vmem:[%s967 + $0x4c] sm:$0xf]
      %v3778 = vld [vmem:[%s967 + $0x50] sm:$0xf]
      %v3779 = vld [vmem:[%s967 + $0x54] sm:$0xf]
      %v3780 = vld [vmem:[%s967 + $0x58] sm:$0xf]
      %v3781 = vld [vmem:[%s967 + $0x5c] sm:$0xf]
      %v3782 = vld [vmem:[%s967 + $0x60] sm:$0xf]
      %v3783 = vld [vmem:[%s967 + $0x64] sm:$0xf]
      %v3784 = vld [vmem:[%s967 + $0x68] sm:$0xf]
      %v3785 = vld [vmem:[%s967 + $0x6c] sm:$0xf]
      %v3786 = vld [vmem:[%s967 + $0x70] sm:$0xf]
      %v3787 = vld [vmem:[%s967 + $0x74] sm:$0xf]
      %v3788 = vld [vmem:[%s967 + $0x78] sm:$0xf]
      %v3789 = vld [vmem:[%s967 + $0x7c] sm:$0xf]
      %v3790 = vld [vmem:[%s970] sm:$0x1]
      %v3792 = vlaneseq
      %v3793 = vshrl.u32 %v3792, 7
      %v3794 = vsub.s32 0, %v3793
      %v3795 = vrot.slane %v3790, %v3794
      %v3829 = vunpack.c.l.b16 %v3758
      %v3830 = vunpack.c.l.b16 %v3759
      %v3831 = vunpack.c.l.b16 %v3760
      %v3832 = vunpack.c.l.b16 %v3761
      %v3833 = vunpack.c.l.b16 %v3762
      %v3834 = vunpack.c.l.b16 %v3763
      %v3835 = vunpack.c.l.b16 %v3764
      %v3836 = vunpack.c.l.b16 %v3765
      %v3837 = vunpack.c.l.b16 %v3766
      %v3838 = vunpack.c.l.b16 %v3767
      %v3839 = vunpack.c.l.b16 %v3768
      %v3840 = vunpack.c.l.b16 %v3769
      %v3841 = vunpack.c.l.b16 %v3770
      %v3842 = vunpack.c.l.b16 %v3771
      %v3843 = vunpack.c.l.b16 %v3772
      %v3844 = vunpack.c.l.b16 %v3773
      %v3845 = vunpack.c.l.b16 %v3774
      %v3846 = vunpack.c.l.b16 %v3775
      %v3847 = vunpack.c.l.b16 %v3776
      %v3848 = vunpack.c.l.b16 %v3777
      %v3849 = vunpack.c.l.b16 %v3778
      %v3850 = vunpack.c.l.b16 %v3779
      %v3851 = vunpack.c.l.b16 %v3780
      %v3852 = vunpack.c.l.b16 %v3781
      %v3853 = vunpack.c.l.b16 %v3782
      %v3854 = vunpack.c.l.b16 %v3783
      %v3855 = vunpack.c.l.b16 %v3784
      %v3856 = vunpack.c.l.b16 %v3785
      %v3857 = vunpack.c.l.b16 %v3786
      %v3858 = vunpack.c.l.b16 %v3787
      %v3859 = vunpack.c.l.b16 %v3788
      %v3860 = vunpack.c.l.b16 %v3789
      %v3861 = vpack.c.b16 %v3830, %v3829
      %v3862 = vpack.c.b16 %v3832, %v3831
      %v3863 = vpack.c.b16 %v3834, %v3833
      %v3864 = vpack.c.b16 %v3836, %v3835
      %v3865 = vpack.c.b16 %v3838, %v3837
      %v3866 = vpack.c.b16 %v3840, %v3839
      %v3867 = vpack.c.b16 %v3842, %v3841
      %v3868 = vpack.c.b16 %v3844, %v3843
      %v3869 = vpack.c.b16 %v3846, %v3845
      %v3870 = vpack.c.b16 %v3848, %v3847
      %v3871 = vpack.c.b16 %v3850, %v3849
      %v3872 = vpack.c.b16 %v3852, %v3851
      %v3873 = vpack.c.b16 %v3854, %v3853
      %v3874 = vpack.c.b16 %v3856, %v3855
      %v3875 = vpack.c.b16 %v3858, %v3857
      %v3876 = vpack.c.b16 %v3860, %v3859
      %3893 = vmatprep.subr.bf16.mxu0 0
      %3894 = vmatpush1.bf16.msra.mxu0 %v3861
      %3895 = vmatprep.subr.bf16.mxu0 0
      %3896 = vmatpush1.bf16.msra.mxu0 %v3862
      %3897 = vmatprep.subr.bf16.mxu0 0
      %3898 = vmatpush1.bf16.msra.mxu0 %v3863
      %3899 = vmatprep.subr.bf16.mxu0 0
      %3900 = vmatpush1.bf16.msra.mxu0 %v3864
      %3901 = vmatprep.subr.bf16.mxu0 0
      %3902 = vmatpush1.bf16.msra.mxu0 %v3865
      %3903 = vmatprep.subr.bf16.mxu0 0
      %3904 = vmatpush1.bf16.msra.mxu0 %v3866
      %3905 = vmatprep.subr.bf16.mxu0 0
      %3906 = vmatpush1.bf16.msra.mxu0 %v3867
      %3907 = vmatprep.subr.bf16.mxu0 0
      %3908 = vmatpush1.bf16.msra.mxu0 %v3868
      %3909 = vmatprep.subr.bf16.mxu0 0
      %3910 = vmatpush1.bf16.msra.mxu0 %v3869
      %3911 = vmatprep.subr.bf16.mxu0 0
      %3912 = vmatpush1.bf16.msra.mxu0 %v3870
      %3913 = vmatprep.subr.bf16.mxu0 0
      %3914 = vmatpush1.bf16.msra.mxu0 %v3871
      %3915 = vmatprep.subr.bf16.mxu0 0
      %3916 = vmatpush1.bf16.msra.mxu0 %v3872
      %3917 = vmatprep.subr.bf16.mxu0 0
      %3918 = vmatpush1.bf16.msra.mxu0 %v3873
      %3919 = vmatprep.subr.bf16.mxu0 0
      %3920 = vmatpush1.bf16.msra.mxu0 %v3874
      %3921 = vmatprep.subr.bf16.mxu0 0
      %3922 = vmatpush1.bf16.msra.mxu0 %v3875
      %3923 = vmatprep.subr.bf16.mxu0 0
      %3924 = vmatpush1.bf16.msra.mxu0 %v3876
      %3925 = vmatprep.mubr.bf16.mxu0 %v3757
      %3926 = vmatmul.mubr.bf16.gmra.mrb[0].mxu0 %v3756
      %v3927 = vpop.f32.mrb[0].mxu0
      %v3928 = vadd.f32 %v3795, %v3927
      %v3929 = vpop.f32.mrb[0].mxu0
      %v3930 = vpop.f32.mrb[0].mxu0
      %v3931 = vadd.f32 %v3795, %v3930
      %v3932 = vpop.f32.mrb[0].mxu0
      %3933 = vdwg.mxu0
      %v3934 = vadd.f32 %v3582, %v3928
      %v3935 = vadd.f32 %v3583, %v3931
      %v3936 = vld [vmem:[%s973] sm:$0x1]
      %v3937 = vld [vmem:[%s976] sm:$0x1]
      %3938 = vadd.xlane.f32.xlu0 %v3934
      %v3939 = vpop.xlane.xlu0 %3938
      %3940 = vadd.xlane.f32.xlu0 %v3935
      %v3941 = vpop.xlane.xlu0 %3940
      %v3942 = vmul.f32 %v3939, %v3549
      %v3943 = vmul.f32 %v3941, %v3549
      %v3944 = vsub.f32 %v3934, %v3942
      %v3945 = vsub.f32 %v3935, %v3943
      %v3946 = vmul.f32 %v3944, %v3944
      %v3947 = vmul.f32 %v3945, %v3945
      %3948 = vadd.xlane.f32.xlu0 %v3946
      %v3949 = vpop.xlane.xlu0 %3948
      %3950 = vadd.xlane.f32.xlu0 %v3947
      %v3951 = vpop.xlane.xlu0 %3950
      %v3952 = vmul.f32 %v3949, %v3549
      %v3953 = vmul.f32 %v3951, %v3549
      %v3954 = vadd.f32 %v3952, 1e-12
      %v3955 = vadd.f32 %v3953, 1e-12
      %v3956 = vrsqrt.pop %v3954
      %v3957 = vrsqrt.pop %v3955
      %v3958 = vmul.f32 %v3944, %v3956
      %v3959 = vmul.f32 %v3945, %v3957
      %v3961 = vlaneseq
      %v3962 = vshrl.u32 %v3961, 7
      %v3963 = vsub.s32 0, %v3962
      %v3964 = vrot.slane %v3936, %v3963
      %v3966 = vmul.f32 %v3958, %v3964
      %v3967 = vmul.f32 %v3959, %v3964
      %v3969 = vlaneseq
      %v3970 = vshrl.u32 %v3969, 7
      %v3971 = vsub.s32 0, %v3970
      %v3972 = vrot.slane %v3937, %v3971
      %v3974 = vadd.f32 %v3966, %v3972
      %v3975 = vadd.f32 %v3967, %v3972
      %3976 = vst [vmem:[#allocation2] sm:$0xff] %v3974
      %3977 = vst [vmem:[#allocation2 + $0x8] sm:$0xff] %v3975
      %p3978 = scmp.eq.s32.totalorder %s37, 1
      // Predicated region
      $region121: #{bert_classifier_forward.1} parent=115 // pred_check
        %p3979 = pneg %p3978
      $region122: #{bert_classifier_forward.1} parent=115 // pred_check_branch
        %3981 = sbr.rel (%p3979) target = $region124
      $region123: #{bert_classifier_forward.1} parent=115 // pred_region
        %v3983 = vrot.slane %v3975, 7
        %vm3985 = vcmask 1040384
        %v3986 = vsel %vm3985, %v3974, %v3983
        %v3987 = vpack.c.bf16 %v3986, %v3986
        %v3988 = vld [vmem:[%s20] sm:$0xf]
        %v3989 = vld [vmem:[%s20 + $0x4] sm:$0xf]
        %v3990 = vld [vmem:[%s20 + $0x8] sm:$0xf]
        %v3991 = vld [vmem:[%s20 + $0xc] sm:$0xf]
        %v3992 = vld [vmem:[%s20 + $0x10] sm:$0xf]
        %v3993 = vld [vmem:[%s20 + $0x14] sm:$0xf]
        %v3994 = vld [vmem:[%s20 + $0x18] sm:$0xf]
        %v3995 = vld [vmem:[%s20 + $0x1c] sm:$0xf]
        %v3996 = vld [vmem:[%s20 + $0x20] sm:$0xf]
        %v3997 = vld [vmem:[%s20 + $0x24] sm:$0xf]
        %v3998 = vld [vmem:[%s20 + $0x28] sm:$0xf]
        %v3999 = vld [vmem:[%s20 + $0x2c] sm:$0xf]
        %v4000 = vld [vmem:[%s20 + $0x30] sm:$0xf]
        %v4001 = vld [vmem:[%s20 + $0x34] sm:$0xf]
        %v4002 = vld [vmem:[%s20 + $0x38] sm:$0xf]
        %v4003 = vld [vmem:[%s20 + $0x3c] sm:$0xf]
        %v4004 = vld [vmem:[%s21] sm:$0x1]
        %v4006 = vlaneseq
        %v4007 = vshrl.u32 %v4006, 7
        %v4008 = vsub.s32 0, %v4007
        %v4009 = vrot.slane %v4004, %v4008
        %v4027 = vunpack.c.l.b16 %v3988
        %v4028 = vunpack.c.l.b16 %v3989
        %v4029 = vunpack.c.l.b16 %v3990
        %v4030 = vunpack.c.l.b16 %v3991
        %v4031 = vunpack.c.l.b16 %v3992
        %v4032 = vunpack.c.l.b16 %v3993
        %v4033 = vunpack.c.l.b16 %v3994
        %v4034 = vunpack.c.l.b16 %v3995
        %v4035 = vunpack.c.l.b16 %v3996
        %v4036 = vunpack.c.l.b16 %v3997
        %v4037 = vunpack.c.l.b16 %v3998
        %v4038 = vunpack.c.l.b16 %v3999
        %v4039 = vunpack.c.l.b16 %v4000
        %v4040 = vunpack.c.l.b16 %v4001
        %v4041 = vunpack.c.l.b16 %v4002
        %v4042 = vunpack.c.l.b16 %v4003
        %v4043 = vpack.c.b16 %v4028, %v4027
        %v4044 = vpack.c.b16 %v4030, %v4029
        %v4045 = vpack.c.b16 %v4032, %v4031
        %v4046 = vpack.c.b16 %v4034, %v4033
        %v4047 = vpack.c.b16 %v4036, %v4035
        %v4048 = vpack.c.b16 %v4038, %v4037
        %v4049 = vpack.c.b16 %v4040, %v4039
        %v4050 = vpack.c.b16 %v4042, %v4041
        %4059 = vmatprep.subr.bf16.mxu0 0
        %4060 = vmatpush1.bf16.msra.mxu0 %v4043
        %4061 = vmatprep.subr.bf16.mxu0 0
        %4062 = vmatpush1.bf16.msra.mxu0 %v4044
        %4063 = vmatprep.subr.bf16.mxu0 0
        %4064 = vmatpush1.bf16.msra.mxu0 %v4045
        %4065 = vmatprep.subr.bf16.mxu0 0
        %4066 = vmatpush1.bf16.msra.mxu0 %v4046
        %4067 = vmatprep.subr.bf16.mxu0 0
        %4068 = vmatpush1.bf16.msra.mxu0 %v4047
        %4069 = vmatprep.subr.bf16.mxu0 0
        %4070 = vmatpush1.bf16.msra.mxu0 %v4048
        %4071 = vmatprep.subr.bf16.mxu0 0
        %4072 = vmatpush1.bf16.msra.mxu0 %v4049
        %4073 = vmatprep.subr.bf16.mxu0 0
        %4074 = vmatpush1.bf16.msra.mxu0 %v4050
        %4075 = vmatprep.subr.bf16.mxu0 0
        %4076 = vmatpush1.bf16.msra.mxu0 0
        %4077 = vmatprep.subr.bf16.mxu0 0
        %4078 = vmatpush1.bf16.msra.mxu0 0
        %4079 = vmatprep.subr.bf16.mxu0 0
        %4080 = vmatpush1.bf16.msra.mxu0 0
        %4081 = vmatprep.subr.bf16.mxu0 0
        %4082 = vmatpush1.bf16.msra.mxu0 0
        %4083 = vmatprep.subr.bf16.mxu0 0
        %4084 = vmatpush1.bf16.msra.mxu0 0
        %4085 = vmatprep.subr.bf16.mxu0 0
        %4086 = vmatpush1.bf16.msra.mxu0 0
        %4087 = vmatprep.subr.bf16.mxu0 0
        %4088 = vmatpush1.bf16.msra.mxu0 0
        %4089 = vmatprep.subr.bf16.mxu0 0
        %4090 = vmatpush1.bf16.msra.mxu0 0
        %4091 = vmatprep.mubr.bf16.mxu0 0
        %4092 = vmatmul.mubr.bf16.gmra.mrb[0].mxu0 %v3987
        %v4093 = vpop.f32.mrb[0].mxu0
        %v4094 = vadd.f32 %v4009, %v4093
        %v4095 = vpop.f32.mrb[0].mxu0
        %v4096 = vpop.f32.mrb[0].mxu0
        %v4097 = vpop.f32.mrb[0].mxu0
        %4098 = vdwg.mxu0
        %v4099 = vtanh.pop %v4094
        %v4100 = vld [vmem:[%s22] sm:$0x1]
        %v4102 = vlaneseq
        %v4103 = vshrl.u32 %v4102, 7
        %v4104 = vsub.s32 0, %v4103
        %v4105 = vrot.slane %v4100, %v4104
        %v4107 = vmul.f32 %v4099, %v4105
        %vm4108 = vcmask 1041408
        %v4109 = vsel %vm4108, %v4107, 0.0
        %4110 = vadd.xlane.f32.xlu0 %v4109
        %v4111 = vpop.xlane.xlu0 %4110
        %v4112 = vld [vmem:[#allocation3] sm:$0x1]
        %v4114 = vlaneseq
        %v4115 = vshrl.u32 %v4114, 7
        %v4116 = vsub.s32 0, %v4115
        %v4117 = vrot.slane %v4112, %v4116
        %v4119 = vadd.f32 %v4111, %v4117
        %vm4120 = vcmask 1024
        %4121 = vst.msk [vmem:[%s24] sm:$0x3] %vm4120, %v4119
      $region124: #{bert_classifier_forward.1} parent=115 // pred_fallthru
        _
      // Predicated region
      $region125: #{bert_classifier_forward.1} parent=115 // pred_check
        %p4122 = pneg %p634
      $region126: #{bert_classifier_forward.1} parent=115 // pred_check_branch
        %4124 = sbr.rel (%p4122) target = $region128
      $region127: #{bert_classifier_forward.1} parent=115 // pred_region
        _
      $region128: #{bert_classifier_forward.1} parent=115 // pred_fallthru
        _
      // Predicated region
      $region129: #{bert_classifier_forward.1} parent=115 // pred_check
        %p4125 = pneg %p634
      $region130: #{bert_classifier_forward.1} parent=115 // pred_check_branch
        %4127 = sbr.rel (%p4125) target = $region132
      $region131: #{bert_classifier_forward.1} parent=115 // pred_region
        _
      $region132: #{bert_classifier_forward.1} parent=115 // pred_fallthru
        _
    $region116: #{bert_classifier_forward.1} parent=5 // pred_fallthru
      _
    %p4128 = scmp.le.s32.totalorder 2, %s32
    // Predicated region
    $region133: #{bert_classifier_forward.1} parent=5 // pred_check
      %p4129 = pneg %p4128
    $region134: #{bert_classifier_forward.1} parent=5 // pred_check_branch
      %4131 = sbr.rel (%p4129) target = $region136
    $region135: #{bert_classifier_forward.1} parent=5 // pred_region
      %s4132 = ssub.s32 %s32, 2
    $region136: #{bert_classifier_forward.1} parent=5 // pred_fallthru
      _
  $region6: #{bert_classifier_forward.1} parent=0 // loop_footer
    %s36 = sadd.s32 1, %s32
  $region7: #{bert_classifier_forward.1} parent=0 // loop_footer_branch
    %31 = sbr.rel target = $region3
  $region8: #{bert_classifier_forward.1} parent=0 // loop_exit
    _

</llo_original>
